<compile_context>
chip_gen: v7x
topology: tpu7x:2x2x1
jax: 0.10.0
libtpu: 0.0.40
codegen_flags: <defaults>
</compile_context>

<pallas_src>
import functools
import math

import jax
import jax.numpy as jnp
from jax import lax
from jax.experimental import pallas as pl
from jax.experimental.pallas import tpu as pltpu

DIM_FF = 2048        # nn.TransformerEncoderLayer default dim_feedforward
LN_EPS = 1e-5        # nn.LayerNorm default eps
N_BRANCH_ARGS = 20   # per-branch weight operands (QKV split into 3 projections)
NEG_INF = -1e30


def _layer_norm(h, w, b):
    mu = jnp.mean(h, axis=-1, keepdims=True)
    var = jnp.mean((h - mu) ** 2, axis=-1, keepdims=True)
    return (h - mu) * lax.rsqrt(var + LN_EPS) * w + b


def _bdot(a_f32, w_bf16):
    """MXU matmul: bf16 operands, f32 accumulation (weights pre-cast to bf16)."""
    return jnp.dot(a_f32.astype(jnp.bfloat16), w_bf16,
                   preferred_element_type=jnp.float32)


def _branch(x2, w, sh_w, sh_b, chan_bias, nhead):
    """One modality branch on (BC, F) rows kept in PyTorch (B, C) row order.

    normalize -> pre Linear -> TransformerEncoderLayer (post-norm, relu FFN) ->
    shared Linear -> post Linear.  Returns (x_norm, z_shared, x_hat).
    """
    (pre_w, pre_b, q_w, q_b, k_w, k_b, v_w, v_b, ao_w, ao_b,
     ln1_w, ln1_b, ff1_w, ff1_b, ff2_w, ff2_b,
     ln2_w, ln2_b, post_w, post_b) = w

    BC = x2.shape[0]
    D = q_w.shape[-1]
    HD = D // nhead

    # normalize_input(x, '[-1,1]'): global min/max over the whole tensor.
    # (Faithful to PyTorch: no epsilon; a constant input would divide by zero.)
    x_min = jnp.min(x2)
    x_max = jnp.max(x2)
    xn = (x2 - x_min) / (x_max - x_min) * 2.0 - 1.0

    # pre_fc: Linear(F -> D)
    z = _bdot(xn, pre_w) + pre_b                                   # (BC, D) f32

    # Three natural (D,D) projections (no fused 3D-wide slab -> no lane rotates).
    q = (_bdot(z, q_w) + q_b) * (1.0 / math.sqrt(HD))
    k = _bdot(z, k_w) + k_b
    v = _bdot(z, v_w) + v_b
    k_bf = k.astype(jnp.bfloat16)

    # Head-masked attention over the B axis, batched over channels via the
    # additive same-channel bias.  Per-head (1, D) lane masks keep q/v full
    # width: no 8-lane slices, no concat; head outputs accumulate straight into
    # their final lane positions.
    lane = lax.broadcasted_iota(jnp.int32, (1, D), 1)
    contract_last = (((1,), (1,)), ((), ()))
    attn_pre = jnp.zeros((BC, D), jnp.float32)
    for h in range(nhead):
        hmask = ((lane >= h * HD) & (lane < (h + 1) * HD)).astype(jnp.float32)
        s = lax.dot_general((q * hmask).astype(jnp.bfloat16), k_bf,
                            contract_last, preferred_element_type=jnp.float32)
        s = s + chan_bias                                          # f32 mask add
        m = jnp.max(s, axis=-1, keepdims=True)
        e = jnp.exp(s - m)
        pr = e * pl.reciprocal(jnp.sum(e, axis=-1, keepdims=True), approx=True)
        attn_pre = attn_pre + jnp.dot(pr.astype(jnp.bfloat16),
                                      (v * hmask).astype(jnp.bfloat16),
                                      preferred_element_type=jnp.float32)

    attn = _bdot(attn_pre, ao_w) + ao_b                            # (BC, D)

    # Post-norm transformer layer (PyTorch default norm_first=False), relu FFN;
    # dropout is an eval-mode identity.
    h1 = _layer_norm(z + attn, ln1_w, ln1_b)
    ff = jnp.maximum(_bdot(h1, ff1_w) + ff1_b, 0.0)
    ff = _bdot(ff, ff2_w) + ff2_b
    h2 = _layer_norm(h1 + ff, ln2_w, ln2_b)

    # shred_layer (shared) + post_fc.
    zsh = _bdot(h2, sh_w) + sh_b                                   # (BC, D)
    xhat = _bdot(zsh, post_w) + post_b                             # (BC, F)
    return xn, zsh, xhat


def fused_kernel(x_ref, bias_ref, *rest, B, C, nhead):
    w_refs = rest[:N_BRANCH_ARGS]
    sh_w_ref, sh_b_ref, out_ref, z_scr, lm_scr = rest[N_BRANCH_ARGS:]

    i = pl.program_id(0)
    weights = tuple(r[...] for r in w_refs)
    xn, zsh, xhat = _branch(x_ref[...], weights, sh_w_ref[...], sh_b_ref[...],
                            bias_ref[...], nhead)

    # recon loss: MSE against the *normalized* input (as in the PyTorch forward).
    loss_rec = jnp.mean((xhat - xn) ** 2)

    @pl.when(i == 0)                       # meg branch: stash z_shared + loss_m
    def _():
        z_scr[...] = zsh
        lm_scr[0] = loss_rec

    @pl.when(i == pl.num_programs(0) - 1)  # fmri branch: proto loss + outputs
    def _():
        BC, D = zsh.shape
        zm_sh = z_scr[...]                                        # queries (meg)
        prototypes = jnp.mean(zsh.reshape(B, C, D), axis=1)       # (B, D) fmri

        # Pairwise squared L2 on the MXU: ||q||^2 + ||p||^2 - 2 q@p^T.
        contract_last = (((1,), (1,)), ((), ()))
        cross = lax.dot_general(zm_sh, prototypes, contract_last,
                                preferred_element_type=jnp.float32)       # (BC, B)
        q_sq = jnp.sum(zm_sh * zm_sh, axis=1, keepdims=True)              # (BC, 1)
        p_sq = lax.dot_general(jnp.ones((1, D), jnp.float32),
                               prototypes * prototypes, contract_last,
                               preferred_element_type=jnp.float32)        # (1, B)
        dist = q_sq + p_sq - 2.0 * cross                                  # (BC, B)

        # log_softmax(-dist) along the prototype axis.
        neg = -dist
        mx = jnp.max(neg, axis=1, keepdims=True)
        shifted = neg - mx
        lse = jnp.log(jnp.sum(jnp.exp(shifted), axis=1, keepdims=True))
        logp = shifted - lse

        # labels y = arange(B).repeat(C)  ->  y[i] = i % B (rows in (B,C) order)
        col = lax.broadcasted_iota(jnp.int32, (BC, B), 1)
        y1 = lax.broadcasted_iota(jnp.int32, (BC, 1), 0) % B
        onehot = (col == y1).astype(jnp.float32)
        loss_pn = -jnp.mean(jnp.sum(logp * onehot, axis=1, keepdims=True))  # NLL

        # acc: argmax(softmax(-dist)) == argmin(dist); first index on ties.
        row_min = jnp.min(dist, axis=1, keepdims=True)
        colf = col.astype(jnp.float32)
        pred = jnp.min(jnp.where(dist <= row_min, colf, jnp.float32(B)),
                       axis=1, keepdims=True)
        acc = jnp.mean((pred == y1.astype(jnp.float32)).astype(jnp.float32))

        out_ref[0] = loss_pn
        out_ref[1] = lm_scr[0]
        out_ref[2] = loss_rec
        out_ref[3] = acc


# ----------------------------------------------------------------------------------
# Parameter init (deterministic, synthetic — xavier-uniform for matrices)
# ----------------------------------------------------------------------------------
def _xavier(key, out_f, in_f):
    limit = math.sqrt(6.0 / (in_f + out_f))
    return jax.random.uniform(key, (out_f, in_f), jnp.float32, -limit, limit)


def init_branch_params(key, input_size, d_model):
    ks = jax.random.split(key, 12)
    D = d_model
    return {
        "pre_w": _xavier(ks[0], D, input_size),
        "pre_b": jax.random.uniform(ks[1], (D,), jnp.float32, -0.1, 0.1),
        "in_proj_w": _xavier(ks[2], 3 * D, D),
        "in_proj_b": jax.random.uniform(ks[3], (3 * D,), jnp.float32, -0.1, 0.1),
        "out_proj_w": _xavier(ks[4], D, D),
        "out_proj_b": jax.random.uniform(ks[5], (D,), jnp.float32, -0.1, 0.1),
        "ln1_w": jnp.ones((D,), jnp.float32),
        "ln1_b": jnp.zeros((D,), jnp.float32),
        "ff1_w": _xavier(ks[6], DIM_FF, D),
        "ff1_b": jax.random.uniform(ks[7], (DIM_FF,), jnp.float32, -0.02, 0.02),
        "ff2_w": _xavier(ks[8], D, DIM_FF),
        "ff2_b": jax.random.uniform(ks[9], (D,), jnp.float32, -0.02, 0.02),
        "ln2_w": jnp.ones((D,), jnp.float32),
        "ln2_b": jnp.zeros((D,), jnp.float32),
        "post_w": _xavier(ks[10], input_size, D),
        "post_b": jax.random.uniform(ks[11], (input_size,), jnp.float32, -0.1, 0.1),
    }


def pack_branch_args(p):
    """Torch-convention (out, in) weights -> kernel-ready slabs.

    Matmul weights become lane-dense bf16 (in, out) slabs (halves the dominant
    ff1/ff2 DMA bytes); biases / LayerNorm params stay f32 (1, N) rows.
    """
    D = p["out_proj_w"].shape[0]
    row = lambda v: v.reshape(1, -1).astype(jnp.float32)
    wgt = lambda v: v.T.astype(jnp.bfloat16)
    ipw, ipb = p["in_proj_w"], p["in_proj_b"]
    return [
        wgt(p["pre_w"]), row(p["pre_b"]),
        wgt(ipw[0:D]), row(ipb[0:D]),                # Q projection
        wgt(ipw[D:2 * D]), row(ipb[D:2 * D]),        # K projection
        wgt(ipw[2 * D:3 * D]), row(ipb[2 * D:3 * D]),  # V projection
        wgt(p["out_proj_w"]), row(p["out_proj_b"]),
        row(p["ln1_w"]), row(p["ln1_b"]),
        wgt(p["ff1_w"]), row(p["ff1_b"]),
        wgt(p["ff2_w"]), row(p["ff2_b"]),
        row(p["ln2_w"]), row(p["ln2_b"]),
        wgt(p["post_w"]), row(p["post_b"]),
    ]


# ----------------------------------------------------------------------------------
# Pallas wrapper — one fused pallas_call, grid over the two modality branches
# ----------------------------------------------------------------------------------
def transformer_encoder_forward(xm, xf, meg_args, fmri_args, shared_args, nhead):
    """xm, xf: (B, C, input_size) float32.  Returns ([loss_pn, loss_m, loss_f], acc)."""
    B, C, F = xm.shape
    BC = B * C
    sh_w, sh_b = shared_args
    D = sh_w.shape[0]

    # Grid step 0 = meg, step 1 = fmri: stack inputs and per-branch weight slabs
    # so Pallas can double-buffer branch-1's weight DMA behind branch-0 compute.
    x_stacked = jnp.stack([xm.reshape(BC, F), xf.reshape(BC, F)], axis=0)
    branch_stacked = [jnp.stack([m, f], axis=0) for m, f in zip(meg_args, fmri_args)]

    # Same-channel additive attention bias (depends only on B, C): hoisted out of
    # the kernel; attention runs over the B axis, batched over channels.
    r = jnp.arange(BC)
    same_c = (r[:, None] % C) == (r[None, :] % C)
    chan_bias = jnp.where(same_c, 0.0, NEG_INF).astype(jnp.float32)

    def branch_spec(a):
        nd = a.ndim
        return pl.BlockSpec((None,) + a.shape[1:],
                            lambda i, _nd=nd: (i,) + (0,) * (_nd - 1))

    def resident_spec(a):
        nd = a.ndim
        return pl.BlockSpec(a.shape, lambda i, _nd=nd: (0,) * _nd)

    in_specs = ([branch_spec(x_stacked), resident_spec(chan_bias)]
                + [branch_spec(a) for a in branch_stacked]
                + [resident_spec(sh_w), resident_spec(sh_b)])

    kernel = functools.partial(fused_kernel, B=B, C=C, nhead=nhead)
    out = pl.pallas_call(
        kernel,
        out_shape=jax.ShapeDtypeStruct((4,), jnp.float32),
        grid_spec=pltpu.PrefetchScalarGridSpec(
            num_scalar_prefetch=0,
            grid=(2,),
            in_specs=in_specs,
            out_specs=pl.BlockSpec(memory_space=pltpu.MemorySpace.SMEM),
            scratch_shapes=[pltpu.VMEM((BC, D), jnp.float32),   # z_shared (meg)
                            pltpu.SMEM((1,), jnp.float32)]),    # loss_m
        compiler_params=pltpu.CompilerParams(
            dimension_semantics=("arbitrary",)),   # step 1 consumes step-0 scratch
    )(x_stacked, chan_bias, *branch_stacked, sh_w, sh_b)
    # TODO(synk): on v7x, map one branch per TensorCore (core_map / "parallel")
    # with a CMEM/VMEM_SHARED cross-core reduce for proto_loss once B*C*D grows.
    # TODO(synk): for large C, switch to channel-major block-diagonal attention
    # and tile BC/FF with an explicit vmem_limit_bytes budget (v7x: 64 MiB VMEM).
    return [out[0], out[1], out[2]], out[3]


# ----------------------------------------------------------------------------------
# Pure-JAX reference (mirrors the kernel's bf16-operand / f32-accumulate scheme)
# ----------------------------------------------------------------------------------
def _ref_branch(x2, args, sh_w, sh_b, C, nhead):
    (pre_w, pre_b, q_w, q_b, k_w, k_b, v_w, v_b, ao_w, ao_b,
     ln1_w, ln1_b, ff1_w, ff1_b, ff2_w, ff2_b,
     ln2_w, ln2_b, post_w, post_b) = args
    BC = x2.shape[0]
    D = q_w.shape[-1]
    HD = D // nhead
    x_min, x_max = jnp.min(x2), jnp.max(x2)
    xn = (x2 - x_min) / (x_max - x_min) * 2.0 - 1.0
    z = _bdot(xn, pre_w) + pre_b
    q = (_bdot(z, q_w) + q_b) * (1.0 / math.sqrt(HD))
    k = _bdot(z, k_w) + k_b
    v = _bdot(z, v_w) + v_b
    r = jnp.arange(BC)
    same_c = (r[:, None] % C) == (r[None, :] % C)
    heads = []
    for h in range(nhead):
        sl = slice(h * HD, (h + 1) * HD)
        s = jnp.dot(q[:, sl].astype(jnp.bfloat16), k[:, sl].astype(jnp.bfloat16).T,
                    preferred_element_type=jnp.float32)
        s = jnp.where(same_c, s, NEG_INF)
        p = jax.nn.softmax(s, axis=-1)
        heads.append(jnp.dot(p.astype(jnp.bfloat16), v[:, sl].astype(jnp.bfloat16),
                             preferred_element_type=jnp.float32))
    attn = _bdot(jnp.concatenate(heads, axis=-1), ao_w) + ao_b
    h1 = _layer_norm(z + attn, ln1_w, ln1_b)
    ff = jnp.maximum(_bdot(h1, ff1_w) + ff1_b, 0.0)
    ff = _bdot(ff, ff2_w) + ff2_b
    h2 = _layer_norm(h1 + ff, ln2_w, ln2_b)
    zsh = _bdot(h2, sh_w) + sh_b
    xhat = _bdot(zsh, post_w) + post_b
    return xn, zsh, xhat


def _ref_forward(xm, xf, meg_args, fmri_args, shared_args, nhead):
    B, C, F = xm.shape
    sh_w, sh_b = shared_args
    xm_n, zm_sh, xm_hat = _ref_branch(xm.reshape(B * C, F), meg_args, sh_w, sh_b, C, nhead)
    xf_n, zf_sh, xf_hat = _ref_branch(xf.reshape(B * C, F), fmri_args, sh_w, sh_b, C, nhead)
    loss_m = jnp.mean((xm_hat - xm_n) ** 2)
    loss_f = jnp.mean((xf_hat - xf_n) ** 2)
    prototypes = jnp.mean(zf_sh.reshape(B, C, -1), axis=1)
    dist = jnp.sum((zm_sh[:, None, :] - prototypes[None, :, :]) ** 2, axis=-1)
    logp = jax.nn.log_softmax(-dist, axis=1)
    y = jnp.arange(B * C) % B
    loss_pn = -jnp.mean(logp[jnp.arange(B * C), y])
    acc = jnp.mean((jnp.argmax(-dist, axis=1) == y).astype(jnp.float32))
    return jnp.stack([loss_pn, loss_m, loss_f, acc])


# ----------------------------------------------------------------------------------
if __name__ == "__main__":
    # Module config: TransformerEncoder(input_size, d_model, nhead, num_layers, device)
    INPUT_SIZE, D_MODEL, NHEAD = 16, 32, 4
    NUM_LAYERS = 2  # unused by the original module's constructor (single layer built)
    B, C = 2, 8     # xm/xf: (batch, channels, input_size)

    key = jax.random.PRNGKey(0)
    k_xm, k_xf, k_meg, k_fmri, k_shw, k_shb = jax.random.split(key, 6)

    xm = jax.random.normal(k_xm, (B, C, INPUT_SIZE), jnp.float32)
    xf = jax.random.normal(k_xf, (B, C, INPUT_SIZE), jnp.float32)

    meg_args = pack_branch_args(init_branch_params(k_meg, INPUT_SIZE, D_MODEL))
    fmri_args = pack_branch_args(init_branch_params(k_fmri, INPUT_SIZE, D_MODEL))
    shared_w = _xavier(k_shw, D_MODEL, D_MODEL)
    shared_b = jax.random.uniform(k_shb, (D_MODEL,), jnp.float32, -0.1, 0.1)
    shared_args = [shared_w.T.astype(jnp.bfloat16), shared_b.reshape(1, -1)]

    fwd = jax.jit(functools.partial(transformer_encoder_forward, nhead=NHEAD))
    losses, acc = fwd(xm, xf, meg_args, fmri_args, shared_args)
    jax.block_until_ready(acc)

    got = jnp.stack([losses[0], losses[1], losses[2], acc])
    ref = _ref_forward(xm, xf, meg_args, fmri_args, shared_args, NHEAD)

    assert bool(jnp.all(jnp.isfinite(got))), f"non-finite outputs: {got}"
    # Loose tolerances: kernel uses approx reciprocal in the attention softmax.
    assert bool(jnp.allclose(got[:3], ref[:3], rtol=0.1, atol=0.05)), \
        f"loss mismatch: kernel={got} ref={ref}"
    assert abs(float(got[3]) - float(ref[3])) <= 2.0 / (B * C) + 1e-6, \
        f"acc mismatch: kernel={got[3]} ref={ref[3]}"
    print("KERNEL_OK")
</pallas_src>

<mosaic_0001>
module attributes {stable_mosaic.version = 11 : i64} {
  func.func @fused_kernel(%arg0: i32, %arg1: memref<1x16x16xf32, #tpu.memory_space<vmem>>, %arg2: memref<16x16xf32, #tpu.memory_space<vmem>>, %arg3: memref<1x16x32xbf16, #tpu.memory_space<vmem>>, %arg4: memref<1x1x32xf32, #tpu.memory_space<vmem>>, %arg5: memref<1x32x32xbf16, #tpu.memory_space<vmem>>, %arg6: memref<1x1x32xf32, #tpu.memory_space<vmem>>, %arg7: memref<1x32x32xbf16, #tpu.memory_space<vmem>>, %arg8: memref<1x1x32xf32, #tpu.memory_space<vmem>>, %arg9: memref<1x32x32xbf16, #tpu.memory_space<vmem>>, %arg10: memref<1x1x32xf32, #tpu.memory_space<vmem>>, %arg11: memref<1x32x32xbf16, #tpu.memory_space<vmem>>, %arg12: memref<1x1x32xf32, #tpu.memory_space<vmem>>, %arg13: memref<1x1x32xf32, #tpu.memory_space<vmem>>, %arg14: memref<1x1x32xf32, #tpu.memory_space<vmem>>, %arg15: memref<1x32x2048xbf16, #tpu.memory_space<vmem>>, %arg16: memref<1x1x2048xf32, #tpu.memory_space<vmem>>, %arg17: memref<1x2048x32xbf16, #tpu.memory_space<vmem>>, %arg18: memref<1x1x32xf32, #tpu.memory_space<vmem>>, %arg19: memref<1x1x32xf32, #tpu.memory_space<vmem>>, %arg20: memref<1x1x32xf32, #tpu.memory_space<vmem>>, %arg21: memref<1x32x16xbf16, #tpu.memory_space<vmem>>, %arg22: memref<1x1x16xf32, #tpu.memory_space<vmem>>, %arg23: memref<32x32xbf16, #tpu.memory_space<vmem>>, %arg24: memref<1x32xf32, #tpu.memory_space<vmem>>, %arg25: memref<4xf32, #tpu.memory_space<smem>>, %arg26: memref<16x32xf32, #tpu.memory_space<vmem>>, %arg27: memref<1xf32, #tpu.memory_space<smem>>) attributes {dimension_semantics = [#tpu.dimension_semantics<arbitrary>], iteration_bounds = array<i64: 2>, scalar_prefetch = 0 : i64, scratch_operands = 2 : i64, tpu.core_type = #tpu.core_type<tc>, window_params = [{transform_indices = @transform_0, window_bounds = array<i64: 1, 16, 16>}, {pipeline_mode = #tpu.pipeline_mode<synchronous>, transform_indices = @transform_1, window_bounds = array<i64: 16, 16>}, {transform_indices = @transform_2, window_bounds = array<i64: 1, 16, 32>}, {transform_indices = @transform_3, window_bounds = array<i64: 1, 1, 32>}, {transform_indices = @transform_4, window_bounds = array<i64: 1, 32, 32>}, {transform_indices = @transform_5, window_bounds = array<i64: 1, 1, 32>}, {transform_indices = @transform_6, window_bounds = array<i64: 1, 32, 32>}, {transform_indices = @transform_7, window_bounds = array<i64: 1, 1, 32>}, {transform_indices = @transform_8, window_bounds = array<i64: 1, 32, 32>}, {transform_indices = @transform_9, window_bounds = array<i64: 1, 1, 32>}, {transform_indices = @transform_10, window_bounds = array<i64: 1, 32, 32>}, {transform_indices = @transform_11, window_bounds = array<i64: 1, 1, 32>}, {transform_indices = @transform_12, window_bounds = array<i64: 1, 1, 32>}, {transform_indices = @transform_13, window_bounds = array<i64: 1, 1, 32>}, {transform_indices = @transform_14, window_bounds = array<i64: 1, 32, 2048>}, {transform_indices = @transform_15, window_bounds = array<i64: 1, 1, 2048>}, {transform_indices = @transform_16, window_bounds = array<i64: 1, 2048, 32>}, {transform_indices = @transform_17, window_bounds = array<i64: 1, 1, 32>}, {transform_indices = @transform_18, window_bounds = array<i64: 1, 1, 32>}, {transform_indices = @transform_19, window_bounds = array<i64: 1, 1, 32>}, {transform_indices = @transform_20, window_bounds = array<i64: 1, 32, 16>}, {transform_indices = @transform_21, window_bounds = array<i64: 1, 1, 16>}, {pipeline_mode = #tpu.pipeline_mode<synchronous>, transform_indices = @transform_22, window_bounds = array<i64: 32, 32>}, {pipeline_mode = #tpu.pipeline_mode<synchronous>, transform_indices = @transform_23, window_bounds = array<i64: 1, 32>}, {transform_indices = @transform_24, window_bounds = array<i64: 4>}]} {
    %c0 = arith.constant 0 : index
    %c0_0 = arith.constant 0 : index
    %c0_1 = arith.constant 0 : index
    %0 = vector.load %arg3[%c0, %c0_0, %c0_1] : memref<1x16x32xbf16, #tpu.memory_space<vmem>>, vector<1x16x32xbf16>
    %1 = vector.shape_cast %0 : vector<1x16x32xbf16> to vector<16x32xbf16>
    %c0_2 = arith.constant 0 : index
    %c0_3 = arith.constant 0 : index
    %c0_4 = arith.constant 0 : index
    %2 = vector.load %arg4[%c0_2, %c0_3, %c0_4] : memref<1x1x32xf32, #tpu.memory_space<vmem>>, vector<1x1x32xf32>
    %3 = vector.shape_cast %2 : vector<1x1x32xf32> to vector<1x32xf32>
    %c0_5 = arith.constant 0 : index
    %c0_6 = arith.constant 0 : index
    %c0_7 = arith.constant 0 : index
    %4 = vector.load %arg5[%c0_5, %c0_6, %c0_7] : memref<1x32x32xbf16, #tpu.memory_space<vmem>>, vector<1x32x32xbf16>
    %5 = vector.shape_cast %4 : vector<1x32x32xbf16> to vector<32x32xbf16>
    %c0_8 = arith.constant 0 : index
    %c0_9 = arith.constant 0 : index
    %c0_10 = arith.constant 0 : index
    %6 = vector.load %arg6[%c0_8, %c0_9, %c0_10] : memref<1x1x32xf32, #tpu.memory_space<vmem>>, vector<1x1x32xf32>
    %7 = vector.shape_cast %6 : vector<1x1x32xf32> to vector<1x32xf32>
    %c0_11 = arith.constant 0 : index
    %c0_12 = arith.constant 0 : index
    %c0_13 = arith.constant 0 : index
    %8 = vector.load %arg7[%c0_11, %c0_12, %c0_13] : memref<1x32x32xbf16, #tpu.memory_space<vmem>>, vector<1x32x32xbf16>
    %9 = vector.shape_cast %8 : vector<1x32x32xbf16> to vector<32x32xbf16>
    %c0_14 = arith.constant 0 : index
    %c0_15 = arith.constant 0 : index
    %c0_16 = arith.constant 0 : index
    %10 = vector.load %arg8[%c0_14, %c0_15, %c0_16] : memref<1x1x32xf32, #tpu.memory_space<vmem>>, vector<1x1x32xf32>
    %11 = vector.shape_cast %10 : vector<1x1x32xf32> to vector<1x32xf32>
    %c0_17 = arith.constant 0 : index
    %c0_18 = arith.constant 0 : index
    %c0_19 = arith.constant 0 : index
    %12 = vector.load %arg9[%c0_17, %c0_18, %c0_19] : memref<1x32x32xbf16, #tpu.memory_space<vmem>>, vector<1x32x32xbf16>
    %13 = vector.shape_cast %12 : vector<1x32x32xbf16> to vector<32x32xbf16>
    %c0_20 = arith.constant 0 : index
    %c0_21 = arith.constant 0 : index
    %c0_22 = arith.constant 0 : index
    %14 = vector.load %arg10[%c0_20, %c0_21, %c0_22] : memref<1x1x32xf32, #tpu.memory_space<vmem>>, vector<1x1x32xf32>
    %15 = vector.shape_cast %14 : vector<1x1x32xf32> to vector<1x32xf32>
    %c0_23 = arith.constant 0 : index
    %c0_24 = arith.constant 0 : index
    %c0_25 = arith.constant 0 : index
    %16 = vector.load %arg11[%c0_23, %c0_24, %c0_25] : memref<1x32x32xbf16, #tpu.memory_space<vmem>>, vector<1x32x32xbf16>
    %17 = vector.shape_cast %16 : vector<1x32x32xbf16> to vector<32x32xbf16>
    %c0_26 = arith.constant 0 : index
    %c0_27 = arith.constant 0 : index
    %c0_28 = arith.constant 0 : index
    %18 = vector.load %arg12[%c0_26, %c0_27, %c0_28] : memref<1x1x32xf32, #tpu.memory_space<vmem>>, vector<1x1x32xf32>
    %19 = vector.shape_cast %18 : vector<1x1x32xf32> to vector<1x32xf32>
    %c0_29 = arith.constant 0 : index
    %c0_30 = arith.constant 0 : index
    %c0_31 = arith.constant 0 : index
    %20 = vector.load %arg13[%c0_29, %c0_30, %c0_31] : memref<1x1x32xf32, #tpu.memory_space<vmem>>, vector<1x1x32xf32>
    %21 = vector.shape_cast %20 : vector<1x1x32xf32> to vector<1x32xf32>
    %c0_32 = arith.constant 0 : index
    %c0_33 = arith.constant 0 : index
    %c0_34 = arith.constant 0 : index
    %22 = vector.load %arg14[%c0_32, %c0_33, %c0_34] : memref<1x1x32xf32, #tpu.memory_space<vmem>>, vector<1x1x32xf32>
    %23 = vector.shape_cast %22 : vector<1x1x32xf32> to vector<1x32xf32>
    %c0_35 = arith.constant 0 : index
    %c0_36 = arith.constant 0 : index
    %c0_37 = arith.constant 0 : index
    %24 = vector.load %arg15[%c0_35, %c0_36, %c0_37] : memref<1x32x2048xbf16, #tpu.memory_space<vmem>>, vector<1x32x2048xbf16>
    %25 = vector.shape_cast %24 : vector<1x32x2048xbf16> to vector<32x2048xbf16>
    %c0_38 = arith.constant 0 : index
    %c0_39 = arith.constant 0 : index
    %c0_40 = arith.constant 0 : index
    %26 = vector.load %arg16[%c0_38, %c0_39, %c0_40] : memref<1x1x2048xf32, #tpu.memory_space<vmem>>, vector<1x1x2048xf32>
    %27 = vector.shape_cast %26 : vector<1x1x2048xf32> to vector<1x2048xf32>
    %c0_41 = arith.constant 0 : index
    %c0_42 = arith.constant 0 : index
    %c0_43 = arith.constant 0 : index
    %28 = vector.load %arg17[%c0_41, %c0_42, %c0_43] : memref<1x2048x32xbf16, #tpu.memory_space<vmem>>, vector<1x2048x32xbf16>
    %29 = vector.shape_cast %28 : vector<1x2048x32xbf16> to vector<2048x32xbf16>
    %c0_44 = arith.constant 0 : index
    %c0_45 = arith.constant 0 : index
    %c0_46 = arith.constant 0 : index
    %30 = vector.load %arg18[%c0_44, %c0_45, %c0_46] : memref<1x1x32xf32, #tpu.memory_space<vmem>>, vector<1x1x32xf32>
    %31 = vector.shape_cast %30 : vector<1x1x32xf32> to vector<1x32xf32>
    %c0_47 = arith.constant 0 : index
    %c0_48 = arith.constant 0 : index
    %c0_49 = arith.constant 0 : index
    %32 = vector.load %arg19[%c0_47, %c0_48, %c0_49] : memref<1x1x32xf32, #tpu.memory_space<vmem>>, vector<1x1x32xf32>
    %33 = vector.shape_cast %32 : vector<1x1x32xf32> to vector<1x32xf32>
    %c0_50 = arith.constant 0 : index
    %c0_51 = arith.constant 0 : index
    %c0_52 = arith.constant 0 : index
    %34 = vector.load %arg20[%c0_50, %c0_51, %c0_52] : memref<1x1x32xf32, #tpu.memory_space<vmem>>, vector<1x1x32xf32>
    %35 = vector.shape_cast %34 : vector<1x1x32xf32> to vector<1x32xf32>
    %c0_53 = arith.constant 0 : index
    %c0_54 = arith.constant 0 : index
    %c0_55 = arith.constant 0 : index
    %36 = vector.load %arg21[%c0_53, %c0_54, %c0_55] : memref<1x32x16xbf16, #tpu.memory_space<vmem>>, vector<1x32x16xbf16>
    %37 = vector.shape_cast %36 : vector<1x32x16xbf16> to vector<32x16xbf16>
    %c0_56 = arith.constant 0 : index
    %c0_57 = arith.constant 0 : index
    %c0_58 = arith.constant 0 : index
    %38 = vector.load %arg22[%c0_56, %c0_57, %c0_58] : memref<1x1x16xf32, #tpu.memory_space<vmem>>, vector<1x1x16xf32>
    %39 = vector.shape_cast %38 : vector<1x1x16xf32> to vector<1x16xf32>
    %c0_59 = arith.constant 0 : index
    %c0_60 = arith.constant 0 : index
    %c0_61 = arith.constant 0 : index
    %40 = vector.load %arg1[%c0_59, %c0_60, %c0_61] : memref<1x16x16xf32, #tpu.memory_space<vmem>>, vector<1x16x16xf32>
    %41 = vector.shape_cast %40 : vector<1x16x16xf32> to vector<16x16xf32>
    %c0_62 = arith.constant 0 : index
    %c0_63 = arith.constant 0 : index
    %42 = vector.load %arg23[%c0_62, %c0_63] : memref<32x32xbf16, #tpu.memory_space<vmem>>, vector<32x32xbf16>
    %c0_64 = arith.constant 0 : index
    %c0_65 = arith.constant 0 : index
    %43 = vector.load %arg24[%c0_64, %c0_65] : memref<1x32xf32, #tpu.memory_space<vmem>>, vector<1x32xf32>
    %c0_66 = arith.constant 0 : index
    %c0_67 = arith.constant 0 : index
    %44 = vector.load %arg2[%c0_66, %c0_67] : memref<16x16xf32, #tpu.memory_space<vmem>>, vector<16x16xf32>
    %45 = vector.shape_cast %41 : vector<16x16xf32> to vector<1x16x16xf32>
    %cst = arith.constant dense<0x7F800000> : vector<1xf32>
    %46 = vector.multi_reduction <minimumf>, %45, %cst [1, 2] : vector<1x16x16xf32> to vector<1xf32>
    %47 = vector.shape_cast %46 : vector<1xf32> to vector<1x1x1xf32>
    %48 = vector.extract %47[0, 0, 0] : f32 from vector<1x1x1xf32>
    %49 = vector.shape_cast %41 : vector<16x16xf32> to vector<1x16x16xf32>
    %cst_68 = arith.constant dense<0xFF800000> : vector<1xf32>
    %50 = vector.multi_reduction <maximumf>, %49, %cst_68 [1, 2] : vector<1x16x16xf32> to vector<1xf32>
    %51 = vector.shape_cast %50 : vector<1xf32> to vector<1x1x1xf32>
    %52 = vector.extract %51[0, 0, 0] : f32 from vector<1x1x1xf32>
    %53 = vector.broadcast %48 : f32 to vector<16x16xf32>
    %54 = arith.subf %41, %53 : vector<16x16xf32>
    %55 = arith.subf %52, %48 : f32
    %56 = vector.broadcast %55 : f32 to vector<16x16xf32>
    %57 = arith.divf %54, %56 : vector<16x16xf32>
    %cst_69 = arith.constant 2.000000e+00 : f32
    %58 = vector.broadcast %cst_69 : f32 to vector<16x16xf32>
    %59 = arith.mulf %57, %58 : vector<16x16xf32>
    %cst_70 = arith.constant 1.000000e+00 : f32
    %60 = vector.broadcast %cst_70 : f32 to vector<16x16xf32>
    %61 = arith.subf %59, %60 : vector<16x16xf32>
    %62 = arith.truncf %61 : vector<16x16xf32> to vector<16x16xbf16>
    %cst_71 = arith.constant dense<0.000000e+00> : vector<16x32xf32>
    %63 = tpu.matmul %62, %1, %cst_71 {dimension_numbers = #tpu.dot_dimension_numbers<[1], [0], [0], [1], [0, 0, 1, 1], [], []>} : vector<16x16xbf16>, vector<16x32xbf16>, vector<16x32xf32> -> vector<16x32xf32>
    %64 = vector.broadcast %3 : vector<1x32xf32> to vector<16x32xf32>
    %65 = arith.addf %63, %64 : vector<16x32xf32>
    %66 = arith.truncf %65 : vector<16x32xf32> to vector<16x32xbf16>
    %cst_72 = arith.constant dense<0.000000e+00> : vector<16x32xf32>
    %67 = tpu.matmul %66, %5, %cst_72 {dimension_numbers = #tpu.dot_dimension_numbers<[1], [0], [0], [1], [0, 0, 1, 1], [], []>} : vector<16x32xbf16>, vector<32x32xbf16>, vector<16x32xf32> -> vector<16x32xf32>
    %68 = vector.broadcast %7 : vector<1x32xf32> to vector<16x32xf32>
    %69 = arith.addf %67, %68 : vector<16x32xf32>
    %cst_73 = arith.constant 0.353553385 : f32
    %70 = vector.broadcast %cst_73 : f32 to vector<16x32xf32>
    %71 = arith.mulf %69, %70 : vector<16x32xf32>
    %72 = arith.truncf %65 : vector<16x32xf32> to vector<16x32xbf16>
    %cst_74 = arith.constant dense<0.000000e+00> : vector<16x32xf32>
    %73 = tpu.matmul %72, %9, %cst_74 {dimension_numbers = #tpu.dot_dimension_numbers<[1], [0], [0], [1], [0, 0, 1, 1], [], []>} : vector<16x32xbf16>, vector<32x32xbf16>, vector<16x32xf32> -> vector<16x32xf32>
    %74 = vector.broadcast %11 : vector<1x32xf32> to vector<16x32xf32>
    %75 = arith.addf %73, %74 : vector<16x32xf32>
    %76 = arith.truncf %65 : vector<16x32xf32> to vector<16x32xbf16>
    %cst_75 = arith.constant dense<0.000000e+00> : vector<16x32xf32>
    %77 = tpu.matmul %76, %13, %cst_75 {dimension_numbers = #tpu.dot_dimension_numbers<[1], [0], [0], [1], [0, 0, 1, 1], [], []>} : vector<16x32xbf16>, vector<32x32xbf16>, vector<16x32xf32> -> vector<16x32xf32>
    %78 = vector.broadcast %15 : vector<1x32xf32> to vector<16x32xf32>
    %79 = arith.addf %77, %78 : vector<16x32xf32>
    %80 = arith.truncf %75 : vector<16x32xf32> to vector<16x32xbf16>
    %81 = tpu.iota {dimensions = array<i32: 1>} : vector<1x32xi32>
    %cst_76 = arith.constant 0.000000e+00 : f32
    %82 = vector.broadcast %cst_76 : f32 to vector<16x32xf32>
    %c0_i32 = arith.constant 0 : i32
    %83 = vector.broadcast %c0_i32 : i32 to vector<1x32xi32>
    %84 = arith.cmpi sge, %81, %83 : vector<1x32xi32>
    %c8_i32 = arith.constant 8 : i32
    %85 = vector.broadcast %c8_i32 : i32 to vector<1x32xi32>
    %86 = arith.cmpi slt, %81, %85 : vector<1x32xi32>
    %87 = arith.andi %84, %86 : vector<1x32xi1>
    %88 = arith.extui %87 : vector<1x32xi1> to vector<1x32xi32>
    %89 = arith.sitofp %88 : vector<1x32xi32> to vector<1x32xf32>
    %90 = vector.broadcast %89 : vector<1x32xf32> to vector<16x32xf32>
    %91 = arith.mulf %71, %90 : vector<16x32xf32>
    %92 = arith.truncf %91 : vector<16x32xf32> to vector<16x32xbf16>
    %cst_77 = arith.constant dense<0.000000e+00> : vector<16x16xf32>
    %93 = tpu.matmul %92, %80, %cst_77 {dimension_numbers = #tpu.dot_dimension_numbers<[1], [1], [0], [0], [0, 0, 1, 0], [], []>} : vector<16x32xbf16>, vector<16x32xbf16>, vector<16x16xf32> -> vector<16x16xf32>
    %94 = arith.addf %93, %44 : vector<16x16xf32>
    %cst_78 = arith.constant dense<0xFF800000> : vector<16xf32>
    %95 = vector.multi_reduction <maximumf>, %94, %cst_78 [1] : vector<16x16xf32> to vector<16xf32>
    %96 = vector.shape_cast %95 : vector<16xf32> to vector<16x1xf32>
    %97 = vector.broadcast %96 : vector<16x1xf32> to vector<16x16xf32>
    %98 = arith.subf %94, %97 : vector<16x16xf32>
    %99 = math.exp %98 : vector<16x16xf32>
    %cst_79 = arith.constant dense<0.000000e+00> : vector<16xf32>
    %100 = vector.multi_reduction <add>, %99, %cst_79 [1] : vector<16x16xf32> to vector<16xf32>
    %101 = vector.shape_cast %100 : vector<16xf32> to vector<16x1xf32>
    %102 = tpu.reciprocal %101 {approx = true} : vector<16x1xf32> -> vector<16x1xf32>
    %103 = vector.broadcast %102 : vector<16x1xf32> to vector<16x16xf32>
    %104 = arith.mulf %99, %103 : vector<16x16xf32>
    %105 = arith.truncf %104 : vector<16x16xf32> to vector<16x16xbf16>
    %106 = vector.broadcast %89 : vector<1x32xf32> to vector<16x32xf32>
    %107 = arith.mulf %79, %106 : vector<16x32xf32>
    %108 = arith.truncf %107 : vector<16x32xf32> to vector<16x32xbf16>
    %cst_80 = arith.constant dense<0.000000e+00> : vector<16x32xf32>
    %109 = tpu.matmul %105, %108, %cst_80 {dimension_numbers = #tpu.dot_dimension_numbers<[1], [0], [0], [1], [0, 0, 1, 1], [], []>} : vector<16x16xbf16>, vector<16x32xbf16>, vector<16x32xf32> -> vector<16x32xf32>
    %110 = arith.addf %82, %109 : vector<16x32xf32>
    %c8_i32_81 = arith.constant 8 : i32
    %111 = vector.broadcast %c8_i32_81 : i32 to vector<1x32xi32>
    %112 = arith.cmpi sge, %81, %111 : vector<1x32xi32>
    %c16_i32 = arith.constant 16 : i32
    %113 = vector.broadcast %c16_i32 : i32 to vector<1x32xi32>
    %114 = arith.cmpi slt, %81, %113 : vector<1x32xi32>
    %115 = arith.andi %112, %114 : vector<1x32xi1>
    %116 = arith.extui %115 : vector<1x32xi1> to vector<1x32xi32>
    %117 = arith.sitofp %116 : vector<1x32xi32> to vector<1x32xf32>
    %118 = vector.broadcast %117 : vector<1x32xf32> to vector<16x32xf32>
    %119 = arith.mulf %71, %118 : vector<16x32xf32>
    %120 = arith.truncf %119 : vector<16x32xf32> to vector<16x32xbf16>
    %cst_82 = arith.constant dense<0.000000e+00> : vector<16x16xf32>
    %121 = tpu.matmul %120, %80, %cst_82 {dimension_numbers = #tpu.dot_dimension_numbers<[1], [1], [0], [0], [0, 0, 1, 0], [], []>} : vector<16x32xbf16>, vector<16x32xbf16>, vector<16x16xf32> -> vector<16x16xf32>
    %122 = arith.addf %121, %44 : vector<16x16xf32>
    %cst_83 = arith.constant dense<0xFF800000> : vector<16xf32>
    %123 = vector.multi_reduction <maximumf>, %122, %cst_83 [1] : vector<16x16xf32> to vector<16xf32>
    %124 = vector.shape_cast %123 : vector<16xf32> to vector<16x1xf32>
    %125 = vector.broadcast %124 : vector<16x1xf32> to vector<16x16xf32>
    %126 = arith.subf %122, %125 : vector<16x16xf32>
    %127 = math.exp %126 : vector<16x16xf32>
    %cst_84 = arith.constant dense<0.000000e+00> : vector<16xf32>
    %128 = vector.multi_reduction <add>, %127, %cst_84 [1] : vector<16x16xf32> to vector<16xf32>
    %129 = vector.shape_cast %128 : vector<16xf32> to vector<16x1xf32>
    %130 = tpu.reciprocal %129 {approx = true} : vector<16x1xf32> -> vector<16x1xf32>
    %131 = vector.broadcast %130 : vector<16x1xf32> to vector<16x16xf32>
    %132 = arith.mulf %127, %131 : vector<16x16xf32>
    %133 = arith.truncf %132 : vector<16x16xf32> to vector<16x16xbf16>
    %134 = vector.broadcast %117 : vector<1x32xf32> to vector<16x32xf32>
    %135 = arith.mulf %79, %134 : vector<16x32xf32>
    %136 = arith.truncf %135 : vector<16x32xf32> to vector<16x32xbf16>
    %cst_85 = arith.constant dense<0.000000e+00> : vector<16x32xf32>
    %137 = tpu.matmul %133, %136, %cst_85 {dimension_numbers = #tpu.dot_dimension_numbers<[1], [0], [0], [1], [0, 0, 1, 1], [], []>} : vector<16x16xbf16>, vector<16x32xbf16>, vector<16x32xf32> -> vector<16x32xf32>
    %138 = arith.addf %110, %137 : vector<16x32xf32>
    %c16_i32_86 = arith.constant 16 : i32
    %139 = vector.broadcast %c16_i32_86 : i32 to vector<1x32xi32>
    %140 = arith.cmpi sge, %81, %139 : vector<1x32xi32>
    %c24_i32 = arith.constant 24 : i32
    %141 = vector.broadcast %c24_i32 : i32 to vector<1x32xi32>
    %142 = arith.cmpi slt, %81, %141 : vector<1x32xi32>
    %143 = arith.andi %140, %142 : vector<1x32xi1>
    %144 = arith.extui %143 : vector<1x32xi1> to vector<1x32xi32>
    %145 = arith.sitofp %144 : vector<1x32xi32> to vector<1x32xf32>
    %146 = vector.broadcast %145 : vector<1x32xf32> to vector<16x32xf32>
    %147 = arith.mulf %71, %146 : vector<16x32xf32>
    %148 = arith.truncf %147 : vector<16x32xf32> to vector<16x32xbf16>
    %cst_87 = arith.constant dense<0.000000e+00> : vector<16x16xf32>
    %149 = tpu.matmul %148, %80, %cst_87 {dimension_numbers = #tpu.dot_dimension_numbers<[1], [1], [0], [0], [0, 0, 1, 0], [], []>} : vector<16x32xbf16>, vector<16x32xbf16>, vector<16x16xf32> -> vector<16x16xf32>
    %150 = arith.addf %149, %44 : vector<16x16xf32>
    %cst_88 = arith.constant dense<0xFF800000> : vector<16xf32>
    %151 = vector.multi_reduction <maximumf>, %150, %cst_88 [1] : vector<16x16xf32> to vector<16xf32>
    %152 = vector.shape_cast %151 : vector<16xf32> to vector<16x1xf32>
    %153 = vector.broadcast %152 : vector<16x1xf32> to vector<16x16xf32>
    %154 = arith.subf %150, %153 : vector<16x16xf32>
    %155 = math.exp %154 : vector<16x16xf32>
    %cst_89 = arith.constant dense<0.000000e+00> : vector<16xf32>
    %156 = vector.multi_reduction <add>, %155, %cst_89 [1] : vector<16x16xf32> to vector<16xf32>
    %157 = vector.shape_cast %156 : vector<16xf32> to vector<16x1xf32>
    %158 = tpu.reciprocal %157 {approx = true} : vector<16x1xf32> -> vector<16x1xf32>
    %159 = vector.broadcast %158 : vector<16x1xf32> to vector<16x16xf32>
    %160 = arith.mulf %155, %159 : vector<16x16xf32>
    %161 = arith.truncf %160 : vector<16x16xf32> to vector<16x16xbf16>
    %162 = vector.broadcast %145 : vector<1x32xf32> to vector<16x32xf32>
    %163 = arith.mulf %79, %162 : vector<16x32xf32>
    %164 = arith.truncf %163 : vector<16x32xf32> to vector<16x32xbf16>
    %cst_90 = arith.constant dense<0.000000e+00> : vector<16x32xf32>
    %165 = tpu.matmul %161, %164, %cst_90 {dimension_numbers = #tpu.dot_dimension_numbers<[1], [0], [0], [1], [0, 0, 1, 1], [], []>} : vector<16x16xbf16>, vector<16x32xbf16>, vector<16x32xf32> -> vector<16x32xf32>
    %166 = arith.addf %138, %165 : vector<16x32xf32>
    %c24_i32_91 = arith.constant 24 : i32
    %167 = vector.broadcast %c24_i32_91 : i32 to vector<1x32xi32>
    %168 = arith.cmpi sge, %81, %167 : vector<1x32xi32>
    %c32_i32 = arith.constant 32 : i32
    %169 = vector.broadcast %c32_i32 : i32 to vector<1x32xi32>
    %170 = arith.cmpi slt, %81, %169 : vector<1x32xi32>
    %171 = arith.andi %168, %170 : vector<1x32xi1>
    %172 = arith.extui %171 : vector<1x32xi1> to vector<1x32xi32>
    %173 = arith.sitofp %172 : vector<1x32xi32> to vector<1x32xf32>
    %174 = vector.broadcast %173 : vector<1x32xf32> to vector<16x32xf32>
    %175 = arith.mulf %71, %174 : vector<16x32xf32>
    %176 = arith.truncf %175 : vector<16x32xf32> to vector<16x32xbf16>
    %cst_92 = arith.constant dense<0.000000e+00> : vector<16x16xf32>
    %177 = tpu.matmul %176, %80, %cst_92 {dimension_numbers = #tpu.dot_dimension_numbers<[1], [1], [0], [0], [0, 0, 1, 0], [], []>} : vector<16x32xbf16>, vector<16x32xbf16>, vector<16x16xf32> -> vector<16x16xf32>
    %178 = arith.addf %177, %44 : vector<16x16xf32>
    %cst_93 = arith.constant dense<0xFF800000> : vector<16xf32>
    %179 = vector.multi_reduction <maximumf>, %178, %cst_93 [1] : vector<16x16xf32> to vector<16xf32>
    %180 = vector.shape_cast %179 : vector<16xf32> to vector<16x1xf32>
    %181 = vector.broadcast %180 : vector<16x1xf32> to vector<16x16xf32>
    %182 = arith.subf %178, %181 : vector<16x16xf32>
    %183 = math.exp %182 : vector<16x16xf32>
    %cst_94 = arith.constant dense<0.000000e+00> : vector<16xf32>
    %184 = vector.multi_reduction <add>, %183, %cst_94 [1] : vector<16x16xf32> to vector<16xf32>
    %185 = vector.shape_cast %184 : vector<16xf32> to vector<16x1xf32>
    %186 = tpu.reciprocal %185 {approx = true} : vector<16x1xf32> -> vector<16x1xf32>
    %187 = vector.broadcast %186 : vector<16x1xf32> to vector<16x16xf32>
    %188 = arith.mulf %183, %187 : vector<16x16xf32>
    %189 = arith.truncf %188 : vector<16x16xf32> to vector<16x16xbf16>
    %190 = vector.broadcast %173 : vector<1x32xf32> to vector<16x32xf32>
    %191 = arith.mulf %79, %190 : vector<16x32xf32>
    %192 = arith.truncf %191 : vector<16x32xf32> to vector<16x32xbf16>
    %cst_95 = arith.constant dense<0.000000e+00> : vector<16x32xf32>
    %193 = tpu.matmul %189, %192, %cst_95 {dimension_numbers = #tpu.dot_dimension_numbers<[1], [0], [0], [1], [0, 0, 1, 1], [], []>} : vector<16x16xbf16>, vector<16x32xbf16>, vector<16x32xf32> -> vector<16x32xf32>
    %194 = arith.addf %166, %193 : vector<16x32xf32>
    %195 = arith.truncf %194 : vector<16x32xf32> to vector<16x32xbf16>
    %cst_96 = arith.constant dense<0.000000e+00> : vector<16x32xf32>
    %196 = tpu.matmul %195, %17, %cst_96 {dimension_numbers = #tpu.dot_dimension_numbers<[1], [0], [0], [1], [0, 0, 1, 1], [], []>} : vector<16x32xbf16>, vector<32x32xbf16>, vector<16x32xf32> -> vector<16x32xf32>
    %197 = vector.broadcast %19 : vector<1x32xf32> to vector<16x32xf32>
    %198 = arith.addf %196, %197 : vector<16x32xf32>
    %199 = arith.addf %65, %198 : vector<16x32xf32>
    %cst_97 = arith.constant dense<0.000000e+00> : vector<16xf32>
    %200 = vector.multi_reduction <add>, %199, %cst_97 [1] : vector<16x32xf32> to vector<16xf32>
    %201 = vector.shape_cast %200 : vector<16xf32> to vector<16x1xf32>
    %cst_98 = arith.constant 3.200000e+01 : f32
    %202 = vector.broadcast %cst_98 : f32 to vector<16x1xf32>
    %203 = arith.divf %201, %202 : vector<16x1xf32>
    %204 = vector.broadcast %203 : vector<16x1xf32> to vector<16x32xf32>
    %205 = arith.subf %199, %204 : vector<16x32xf32>
    %206 = arith.mulf %205, %205 : vector<16x32xf32>
    %cst_99 = arith.constant dense<0.000000e+00> : vector<16xf32>
    %207 = vector.multi_reduction <add>, %206, %cst_99 [1] : vector<16x32xf32> to vector<16xf32>
    %208 = vector.shape_cast %207 : vector<16xf32> to vector<16x1xf32>
    %cst_100 = arith.constant 3.200000e+01 : f32
    %209 = vector.broadcast %cst_100 : f32 to vector<16x1xf32>
    %210 = arith.divf %208, %209 : vector<16x1xf32>
    %211 = vector.broadcast %203 : vector<16x1xf32> to vector<16x32xf32>
    %212 = arith.subf %199, %211 : vector<16x32xf32>
    %cst_101 = arith.constant 9.99999974E-6 : f32
    %213 = vector.broadcast %cst_101 : f32 to vector<16x1xf32>
    %214 = arith.addf %210, %213 : vector<16x1xf32>
    %215 = math.rsqrt %214 : vector<16x1xf32>
    %216 = vector.broadcast %215 : vector<16x1xf32> to vector<16x32xf32>
    %217 = arith.mulf %212, %216 : vector<16x32xf32>
    %218 = vector.broadcast %21 : vector<1x32xf32> to vector<16x32xf32>
    %219 = arith.mulf %217, %218 : vector<16x32xf32>
    %220 = vector.broadcast %23 : vector<1x32xf32> to vector<16x32xf32>
    %221 = arith.addf %219, %220 : vector<16x32xf32>
    %222 = arith.truncf %221 : vector<16x32xf32> to vector<16x32xbf16>
    %cst_102 = arith.constant dense<0.000000e+00> : vector<16x2048xf32>
    %223 = tpu.matmul %222, %25, %cst_102 {dimension_numbers = #tpu.dot_dimension_numbers<[1], [0], [0], [1], [0, 0, 1, 1], [], []>} : vector<16x32xbf16>, vector<32x2048xbf16>, vector<16x2048xf32> -> vector<16x2048xf32>
    %224 = vector.broadcast %27 : vector<1x2048xf32> to vector<16x2048xf32>
    %225 = arith.addf %223, %224 : vector<16x2048xf32>
    %cst_103 = arith.constant 0.000000e+00 : f32
    %226 = vector.broadcast %cst_103 : f32 to vector<16x2048xf32>
    %227 = arith.maximumf %225, %226 : vector<16x2048xf32>
    %228 = arith.truncf %227 : vector<16x2048xf32> to vector<16x2048xbf16>
    %cst_104 = arith.constant dense<0.000000e+00> : vector<16x32xf32>
    %229 = tpu.matmul %228, %29, %cst_104 {dimension_numbers = #tpu.dot_dimension_numbers<[1], [0], [0], [1], [0, 0, 1, 1], [], []>} : vector<16x2048xbf16>, vector<2048x32xbf16>, vector<16x32xf32> -> vector<16x32xf32>
    %230 = vector.broadcast %31 : vector<1x32xf32> to vector<16x32xf32>
    %231 = arith.addf %229, %230 : vector<16x32xf32>
    %232 = arith.addf %221, %231 : vector<16x32xf32>
    %cst_105 = arith.constant dense<0.000000e+00> : vector<16xf32>
    %233 = vector.multi_reduction <add>, %232, %cst_105 [1] : vector<16x32xf32> to vector<16xf32>
    %234 = vector.shape_cast %233 : vector<16xf32> to vector<16x1xf32>
    %cst_106 = arith.constant 3.200000e+01 : f32
    %235 = vector.broadcast %cst_106 : f32 to vector<16x1xf32>
    %236 = arith.divf %234, %235 : vector<16x1xf32>
    %237 = vector.broadcast %236 : vector<16x1xf32> to vector<16x32xf32>
    %238 = arith.subf %232, %237 : vector<16x32xf32>
    %239 = arith.mulf %238, %238 : vector<16x32xf32>
    %cst_107 = arith.constant dense<0.000000e+00> : vector<16xf32>
    %240 = vector.multi_reduction <add>, %239, %cst_107 [1] : vector<16x32xf32> to vector<16xf32>
    %241 = vector.shape_cast %240 : vector<16xf32> to vector<16x1xf32>
    %cst_108 = arith.constant 3.200000e+01 : f32
    %242 = vector.broadcast %cst_108 : f32 to vector<16x1xf32>
    %243 = arith.divf %241, %242 : vector<16x1xf32>
    %244 = vector.broadcast %236 : vector<16x1xf32> to vector<16x32xf32>
    %245 = arith.subf %232, %244 : vector<16x32xf32>
    %cst_109 = arith.constant 9.99999974E-6 : f32
    %246 = vector.broadcast %cst_109 : f32 to vector<16x1xf32>
    %247 = arith.addf %243, %246 : vector<16x1xf32>
    %248 = math.rsqrt %247 : vector<16x1xf32>
    %249 = vector.broadcast %248 : vector<16x1xf32> to vector<16x32xf32>
    %250 = arith.mulf %245, %249 : vector<16x32xf32>
    %251 = vector.broadcast %33 : vector<1x32xf32> to vector<16x32xf32>
    %252 = arith.mulf %250, %251 : vector<16x32xf32>
    %253 = vector.broadcast %35 : vector<1x32xf32> to vector<16x32xf32>
    %254 = arith.addf %252, %253 : vector<16x32xf32>
    %255 = arith.truncf %254 : vector<16x32xf32> to vector<16x32xbf16>
    %cst_110 = arith.constant dense<0.000000e+00> : vector<16x32xf32>
    %256 = tpu.matmul %255, %42, %cst_110 {dimension_numbers = #tpu.dot_dimension_numbers<[1], [0], [0], [1], [0, 0, 1, 1], [], []>} : vector<16x32xbf16>, vector<32x32xbf16>, vector<16x32xf32> -> vector<16x32xf32>
    %257 = vector.broadcast %43 : vector<1x32xf32> to vector<16x32xf32>
    %258 = arith.addf %256, %257 : vector<16x32xf32>
    %259 = arith.truncf %258 : vector<16x32xf32> to vector<16x32xbf16>
    %cst_111 = arith.constant dense<0.000000e+00> : vector<16x16xf32>
    %260 = tpu.matmul %259, %37, %cst_111 {dimension_numbers = #tpu.dot_dimension_numbers<[1], [0], [0], [1], [0, 0, 1, 1], [], []>} : vector<16x32xbf16>, vector<32x16xbf16>, vector<16x16xf32> -> vector<16x16xf32>
    %261 = vector.broadcast %39 : vector<1x16xf32> to vector<16x16xf32>
    %262 = arith.addf %260, %261 : vector<16x16xf32>
    %263 = arith.subf %262, %61 : vector<16x16xf32>
    %264 = arith.mulf %263, %263 : vector<16x16xf32>
    %265 = vector.shape_cast %264 : vector<16x16xf32> to vector<1x16x16xf32>
    %cst_112 = arith.constant dense<0.000000e+00> : vector<1xf32>
    %266 = vector.multi_reduction <add>, %265, %cst_112 [1, 2] : vector<1x16x16xf32> to vector<1xf32>
    %267 = vector.shape_cast %266 : vector<1xf32> to vector<1x1x1xf32>
    %268 = vector.extract %267[0, 0, 0] : f32 from vector<1x1x1xf32>
    %cst_113 = arith.constant 2.560000e+02 : f32
    %269 = arith.divf %268, %cst_113 : f32
    %c0_i32_114 = arith.constant 0 : i32
    %270 = arith.cmpi eq, %arg0, %c0_i32_114 : i32
    %271 = arith.extui %270 : i1 to i32
    %c0_i32_115 = arith.constant 0 : i32
    %272 = arith.cmpi ne, %271, %c0_i32_115 : i32
    scf.if %272 {
      %c0_117 = arith.constant 0 : index
      %c0_118 = arith.constant 0 : index
      %276 = vector.load %arg26[%c0_117, %c0_118] : memref<16x32xf32, #tpu.memory_space<vmem>>, vector<16x32xf32>
      tpu.vector_store %arg26[%c0_117, %c0_118], %258 {strides = array<i32>} : memref<16x32xf32, #tpu.memory_space<vmem>>, vector<16x32xf32>,
      %c0_119 = arith.constant 0 : index
      %277 = memref.load %arg27[%c0_119] : memref<1xf32, #tpu.memory_space<smem>>
      memref.store %269, %arg27[%c0_119] : memref<1xf32, #tpu.memory_space<smem>>
    } else {
    }
    %c1_i32 = arith.constant 1 : i32
    %273 = arith.cmpi eq, %arg0, %c1_i32 : i32
    %274 = arith.extui %273 : i1 to i32
    %c0_i32_116 = arith.constant 0 : i32
    %275 = arith.cmpi ne, %274, %c0_i32_116 : i32
    scf.if %275 {
      %c0_117 = arith.constant 0 : index
      %c0_118 = arith.constant 0 : index
      %276 = vector.load %arg26[%c0_117, %c0_118] : memref<16x32xf32, #tpu.memory_space<vmem>>, vector<16x32xf32>
      %277 = vector.shape_cast %258 : vector<16x32xf32> to vector<2x8x32xf32>
      %cst_119 = arith.constant dense<0.000000e+00> : vector<2x32xf32>
      %278 = vector.multi_reduction <add>, %277, %cst_119 [1] : vector<2x8x32xf32> to vector<2x32xf32>
      %cst_120 = arith.constant 8.000000e+00 : f32
      %279 = vector.broadcast %cst_120 : f32 to vector<2x32xf32>
      %280 = arith.divf %278, %279 : vector<2x32xf32>
      %cst_121 = arith.constant dense<0.000000e+00> : vector<16x2xf32>
      %281 = tpu.matmul %276, %280, %cst_121 {dimension_numbers = #tpu.dot_dimension_numbers<[1], [1], [0], [0], [0, 0, 1, 0], [], []>} : vector<16x32xf32>, vector<2x32xf32>, vector<16x2xf32> -> vector<16x2xf32>
      %282 = arith.mulf %276, %276 : vector<16x32xf32>
      %cst_122 = arith.constant dense<0.000000e+00> : vector<16xf32>
      %283 = vector.multi_reduction <add>, %282, %cst_122 [1] : vector<16x32xf32> to vector<16xf32>
      %284 = vector.shape_cast %283 : vector<16xf32> to vector<16x1xf32>
      %cst_123 = arith.constant 1.000000e+00 : f32
      %285 = vector.broadcast %cst_123 : f32 to vector<1x32xf32>
      %286 = arith.mulf %280, %280 : vector<2x32xf32>
      %cst_124 = arith.constant dense<0.000000e+00> : vector<1x2xf32>
      %287 = tpu.matmul %285, %286, %cst_124 {dimension_numbers = #tpu.dot_dimension_numbers<[1], [1], [0], [0], [0, 0, 1, 0], [], []>} : vector<1x32xf32>, vector<2x32xf32>, vector<1x2xf32> -> vector<1x2xf32>
      %288 = vector.broadcast %284 : vector<16x1xf32> to vector<16x2xf32>
      %289 = vector.broadcast %287 : vector<1x2xf32> to vector<16x2xf32>
      %290 = arith.addf %288, %289 : vector<16x2xf32>
      %cst_125 = arith.constant 2.000000e+00 : f32
      %291 = vector.broadcast %cst_125 : f32 to vector<16x2xf32>
      %292 = arith.mulf %291, %281 : vector<16x2xf32>
      %293 = arith.subf %290, %292 : vector<16x2xf32>
      %cst_126 = arith.constant 0.000000e+00 : f32
      %294 = vector.broadcast %cst_126 : f32 to vector<16x2xf32>
      %295 = arith.subf %294, %293 : vector<16x2xf32>
      %cst_127 = arith.constant dense<0xFF800000> : vector<16xf32>
      %296 = vector.multi_reduction <maximumf>, %295, %cst_127 [1] : vector<16x2xf32> to vector<16xf32>
      %297 = vector.shape_cast %296 : vector<16xf32> to vector<16x1xf32>
      %298 = vector.broadcast %297 : vector<16x1xf32> to vector<16x2xf32>
      %299 = arith.subf %295, %298 : vector<16x2xf32>
      %300 = math.exp %299 : vector<16x2xf32>
      %cst_128 = arith.constant dense<0.000000e+00> : vector<16xf32>
      %301 = vector.multi_reduction <add>, %300, %cst_128 [1] : vector<16x2xf32> to vector<16xf32>
      %302 = vector.shape_cast %301 : vector<16xf32> to vector<16x1xf32>
      %303 = math.log %302 : vector<16x1xf32>
      %304 = vector.broadcast %303 : vector<16x1xf32> to vector<16x2xf32>
      %305 = arith.subf %299, %304 : vector<16x2xf32>
      %306 = tpu.iota {dimensions = array<i32: 1>} : vector<16x2xi32>
      %307 = tpu.iota {dimensions = array<i32: 0>} : vector<16x1xi32>
      %c2_i32 = arith.constant 2 : i32
      %c0_i32_129 = arith.constant 0 : i32
      %308 = arith.cmpi eq, %c2_i32, %c0_i32_129 : i32
      %c1_i32_130 = arith.constant 1 : i32
      %309 = arith.select %308, %c1_i32_130, %c2_i32 : i32
      %310 = vector.broadcast %309 : i32 to vector<16x1xi32>
      %311 = arith.remsi %307, %310 : vector<16x1xi32>
      %c0_i32_131 = arith.constant 0 : i32
      %312 = vector.broadcast %c0_i32_131 : i32 to vector<16x1xi32>
      %313 = arith.cmpi ne, %311, %312 : vector<16x1xi32>
      %c0_i32_132 = arith.constant 0 : i32
      %314 = vector.broadcast %c0_i32_132 : i32 to vector<16x1xi32>
      %315 = arith.cmpi slt, %311, %314 : vector<16x1xi32>
      %c0_i32_133 = arith.constant 0 : i32
      %316 = arith.cmpi slt, %309, %c0_i32_133 : i32
      %317 = vector.broadcast %316 : i1 to vector<16x1xi1>
      %318 = vector.broadcast %317 : vector<16x1xi1> to vector<16x1xi1>
      %319 = arith.xori %315, %318 : vector<16x1xi1>
      %320 = arith.andi %319, %313 : vector<16x1xi1>
      %321 = vector.broadcast %309 : i32 to vector<16x1xi32>
      %322 = arith.addi %311, %321 : vector<16x1xi32>
      %323 = arith.select %320, %322, %311 : vector<16x1xi1>, vector<16x1xi32>
      %324 = vector.broadcast %323 : vector<16x1xi32> to vector<16x2xi32>
      %325 = arith.cmpi eq, %306, %324 : vector<16x2xi32>
      %326 = arith.extui %325 : vector<16x2xi1> to vector<16x2xi32>
      %327 = arith.sitofp %326 : vector<16x2xi32> to vector<16x2xf32>
      %328 = arith.mulf %305, %327 : vector<16x2xf32>
      %cst_134 = arith.constant dense<0.000000e+00> : vector<16xf32>
      %329 = vector.multi_reduction <add>, %328, %cst_134 [1] : vector<16x2xf32> to vector<16xf32>
      %330 = vector.shape_cast %329 : vector<16xf32> to vector<16x1xf32>
      %331 = vector.shape_cast %330 : vector<16x1xf32> to vector<1x16x1xf32>
      %cst_135 = arith.constant dense<0.000000e+00> : vector<1xf32>
      %332 = vector.multi_reduction <add>, %331, %cst_135 [1, 2] : vector<1x16x1xf32> to vector<1xf32>
      %333 = vector.shape_cast %332 : vector<1xf32> to vector<1x1x1xf32>
      %334 = vector.extract %333[0, 0, 0] : f32 from vector<1x1x1xf32>
      %cst_136 = arith.constant 1.600000e+01 : f32
      %335 = arith.divf %334, %cst_136 : f32
      %cst_137 = arith.constant 0.000000e+00 : f32
      %336 = arith.subf %cst_137, %335 : f32
      %cst_138 = arith.constant dense<0x7F800000> : vector<16xf32>
      %337 = vector.multi_reduction <minimumf>, %293, %cst_138 [1] : vector<16x2xf32> to vector<16xf32>
      %338 = vector.shape_cast %337 : vector<16xf32> to vector<16x1xf32>
      %339 = arith.sitofp %306 : vector<16x2xi32> to vector<16x2xf32>
      %340 = vector.broadcast %338 : vector<16x1xf32> to vector<16x2xf32>
      %341 = arith.cmpf ole, %293, %340 : vector<16x2xf32>
      %cst_139 = arith.constant 2.000000e+00 : f32
      %342 = vector.broadcast %cst_139 : f32 to vector<16x2xf32>
      %343 = arith.select %341, %339, %342 : vector<16x2xi1>, vector<16x2xf32>
      %cst_140 = arith.constant dense<0x7F800000> : vector<16xf32>
      %344 = vector.multi_reduction <minimumf>, %343, %cst_140 [1] : vector<16x2xf32> to vector<16xf32>
      %345 = vector.shape_cast %344 : vector<16xf32> to vector<16x1xf32>
      %346 = arith.sitofp %323 : vector<16x1xi32> to vector<16x1xf32>
      %347 = arith.cmpf oeq, %345, %346 : vector<16x1xf32>
      %348 = arith.extui %347 : vector<16x1xi1> to vector<16x1xi32>
      %349 = arith.sitofp %348 : vector<16x1xi32> to vector<16x1xf32>
      %350 = vector.shape_cast %349 : vector<16x1xf32> to vector<1x16x1xf32>
      %cst_141 = arith.constant dense<0.000000e+00> : vector<1xf32>
      %351 = vector.multi_reduction <add>, %350, %cst_141 [1, 2] : vector<1x16x1xf32> to vector<1xf32>
      %352 = vector.shape_cast %351 : vector<1xf32> to vector<1x1x1xf32>
      %353 = vector.extract %352[0, 0, 0] : f32 from vector<1x1x1xf32>
      %cst_142 = arith.constant 1.600000e+01 : f32
      %354 = arith.divf %353, %cst_142 : f32
      %c0_143 = arith.constant 0 : index
      %355 = memref.load %arg25[%c0_143] : memref<4xf32, #tpu.memory_space<smem>>
      memref.store %336, %arg25[%c0_143] : memref<4xf32, #tpu.memory_space<smem>>
      %c0_144 = arith.constant 0 : index
      %356 = memref.load %arg27[%c0_144] : memref<1xf32, #tpu.memory_space<smem>>
      %c1 = arith.constant 1 : index
      %357 = memref.load %arg25[%c1] : memref<4xf32, #tpu.memory_space<smem>>
      memref.store %356, %arg25[%c1] : memref<4xf32, #tpu.memory_space<smem>>
      %c2 = arith.constant 2 : index
      %358 = memref.load %arg25[%c2] : memref<4xf32, #tpu.memory_space<smem>>
      memref.store %269, %arg25[%c2] : memref<4xf32, #tpu.memory_space<smem>>
      %c3 = arith.constant 3 : index
      %359 = memref.load %arg25[%c3] : memref<4xf32, #tpu.memory_space<smem>>
      memref.store %354, %arg25[%c3] : memref<4xf32, #tpu.memory_space<smem>>
    } else {
    }
    return
  }
  func.func @transform_0(%arg0: i32) -> (i32, i32, i32) {
    %c0_i32 = arith.constant 0 : i32
    %c0_i32_0 = arith.constant 0 : i32
    %c0_i32_1 = arith.constant 0 : i32
    return %arg0, %c0_i32, %c0_i32_0 : i32, i32, i32
  }
  func.func @transform_1(%arg0: i32) -> (i32, i32) {
    %c0_i32 = arith.constant 0 : i32
    %c0_i32_0 = arith.constant 0 : i32
    %c0_i32_1 = arith.constant 0 : i32
    return %c0_i32, %c0_i32_0 : i32, i32
  }
  func.func @transform_2(%arg0: i32) -> (i32, i32, i32) {
    %c0_i32 = arith.constant 0 : i32
    %c0_i32_0 = arith.constant 0 : i32
    %c0_i32_1 = arith.constant 0 : i32
    return %arg0, %c0_i32, %c0_i32_0 : i32, i32, i32
  }
  func.func @transform_3(%arg0: i32) -> (i32, i32, i32) {
    %c0_i32 = arith.constant 0 : i32
    %c0_i32_0 = arith.constant 0 : i32
    %c0_i32_1 = arith.constant 0 : i32
    return %arg0, %c0_i32, %c0_i32_0 : i32, i32, i32
  }
  func.func @transform_4(%arg0: i32) -> (i32, i32, i32) {
    %c0_i32 = arith.constant 0 : i32
    %c0_i32_0 = arith.constant 0 : i32
    %c0_i32_1 = arith.constant 0 : i32
    return %arg0, %c0_i32, %c0_i32_0 : i32, i32, i32
  }
  func.func @transform_5(%arg0: i32) -> (i32, i32, i32) {
    %c0_i32 = arith.constant 0 : i32
    %c0_i32_0 = arith.constant 0 : i32
    %c0_i32_1 = arith.constant 0 : i32
    return %arg0, %c0_i32, %c0_i32_0 : i32, i32, i32
  }
  func.func @transform_6(%arg0: i32) -> (i32, i32, i32) {
    %c0_i32 = arith.constant 0 : i32
    %c0_i32_0 = arith.constant 0 : i32
    %c0_i32_1 = arith.constant 0 : i32
    return %arg0, %c0_i32, %c0_i32_0 : i32, i32, i32
  }
  func.func @transform_7(%arg0: i32) -> (i32, i32, i32) {
    %c0_i32 = arith.constant 0 : i32
    %c0_i32_0 = arith.constant 0 : i32
    %c0_i32_1 = arith.constant 0 : i32
    return %arg0, %c0_i32, %c0_i32_0 : i32, i32, i32
  }
  func.func @transform_8(%arg0: i32) -> (i32, i32, i32) {
    %c0_i32 = arith.constant 0 : i32
    %c0_i32_0 = arith.constant 0 : i32
    %c0_i32_1 = arith.constant 0 : i32
    return %arg0, %c0_i32, %c0_i32_0 : i32, i32, i32
  }
  func.func @transform_9(%arg0: i32) -> (i32, i32, i32) {
    %c0_i32 = arith.constant 0 : i32
    %c0_i32_0 = arith.constant 0 : i32
    %c0_i32_1 = arith.constant 0 : i32
    return %arg0, %c0_i32, %c0_i32_0 : i32, i32, i32
  }
  func.func @transform_10(%arg0: i32) -> (i32, i32, i32) {
    %c0_i32 = arith.constant 0 : i32
    %c0_i32_0 = arith.constant 0 : i32
    %c0_i32_1 = arith.constant 0 : i32
    return %arg0, %c0_i32, %c0_i32_0 : i32, i32, i32
  }
  func.func @transform_11(%arg0: i32) -> (i32, i32, i32) {
    %c0_i32 = arith.constant 0 : i32
    %c0_i32_0 = arith.constant 0 : i32
    %c0_i32_1 = arith.constant 0 : i32
    return %arg0, %c0_i32, %c0_i32_0 : i32, i32, i32
  }
  func.func @transform_12(%arg0: i32) -> (i32, i32, i32) {
    %c0_i32 = arith.constant 0 : i32
    %c0_i32_0 = arith.constant 0 : i32
    %c0_i32_1 = arith.constant 0 : i32
    return %arg0, %c0_i32, %c0_i32_0 : i32, i32, i32
  }
  func.func @transform_13(%arg0: i32) -> (i32, i32, i32) {
    %c0_i32 = arith.constant 0 : i32
    %c0_i32_0 = arith.constant 0 : i32
    %c0_i32_1 = arith.constant 0 : i32
    return %arg0, %c0_i32, %c0_i32_0 : i32, i32, i32
  }
  func.func @transform_14(%arg0: i32) -> (i32, i32, i32) {
    %c0_i32 = arith.constant 0 : i32
    %c0_i32_0 = arith.constant 0 : i32
    %c0_i32_1 = arith.constant 0 : i32
    return %arg0, %c0_i32, %c0_i32_0 : i32, i32, i32
  }
  func.func @transform_15(%arg0: i32) -> (i32, i32, i32) {
    %c0_i32 = arith.constant 0 : i32
    %c0_i32_0 = arith.constant 0 : i32
    %c0_i32_1 = arith.constant 0 : i32
    return %arg0, %c0_i32, %c0_i32_0 : i32, i32, i32
  }
  func.func @transform_16(%arg0: i32) -> (i32, i32, i32) {
    %c0_i32 = arith.constant 0 : i32
    %c0_i32_0 = arith.constant 0 : i32
    %c0_i32_1 = arith.constant 0 : i32
    return %arg0, %c0_i32, %c0_i32_0 : i32, i32, i32
  }
  func.func @transform_17(%arg0: i32) -> (i32, i32, i32) {
    %c0_i32 = arith.constant 0 : i32
    %c0_i32_0 = arith.constant 0 : i32
    %c0_i32_1 = arith.constant 0 : i32
    return %arg0, %c0_i32, %c0_i32_0 : i32, i32, i32
  }
  func.func @transform_18(%arg0: i32) -> (i32, i32, i32) {
    %c0_i32 = arith.constant 0 : i32
    %c0_i32_0 = arith.constant 0 : i32
    %c0_i32_1 = arith.constant 0 : i32
    return %arg0, %c0_i32, %c0_i32_0 : i32, i32, i32
  }
  func.func @transform_19(%arg0: i32) -> (i32, i32, i32) {
    %c0_i32 = arith.constant 0 : i32
    %c0_i32_0 = arith.constant 0 : i32
    %c0_i32_1 = arith.constant 0 : i32
    return %arg0, %c0_i32, %c0_i32_0 : i32, i32, i32
  }
  func.func @transform_20(%arg0: i32) -> (i32, i32, i32) {
    %c0_i32 = arith.constant 0 : i32
    %c0_i32_0 = arith.constant 0 : i32
    %c0_i32_1 = arith.constant 0 : i32
    return %arg0, %c0_i32, %c0_i32_0 : i32, i32, i32
  }
  func.func @transform_21(%arg0: i32) -> (i32, i32, i32) {
    %c0_i32 = arith.constant 0 : i32
    %c0_i32_0 = arith.constant 0 : i32
    %c0_i32_1 = arith.constant 0 : i32
    return %arg0, %c0_i32, %c0_i32_0 : i32, i32, i32
  }
  func.func @transform_22(%arg0: i32) -> (i32, i32) {
    %c0_i32 = arith.constant 0 : i32
    %c0_i32_0 = arith.constant 0 : i32
    %c0_i32_1 = arith.constant 0 : i32
    return %c0_i32, %c0_i32_0 : i32, i32
  }
  func.func @transform_23(%arg0: i32) -> (i32, i32) {
    %c0_i32 = arith.constant 0 : i32
    %c0_i32_0 = arith.constant 0 : i32
    %c0_i32_1 = arith.constant 0 : i32
    return %c0_i32, %c0_i32_0 : i32, i32
  }
  func.func @transform_24(%arg0: i32) -> i32 {
    %c0_i32 = arith.constant 0 : i32
    %c0_i32_0 = arith.constant 0 : i32
    return %c0_i32 : i32
  }
}

</mosaic_0001>

<llo_original>
// kernel: transformer_encoder_forward.1
$region0: #{transformer_encoder_forward.1}
  #allocation0 [shape = 'u32[]', space=smem, size = 0x4, offset = 0x4, fixed_abs, tag = 'smem constant byte address 0x4 - core index']
  #allocation1 [shape = 'u32[144,128]{1,0:T(1,128)}', space=vmem, size = 0x12000, scoped, tag = 'internal scratch']
  #allocation2 [shape = 'f32[16,32]{1,0:T(8,128)}', space=vmem, size = 0x2000, scoped, tag = 'scratch operand']
  #allocation3 [shape = 'f32[1]{0:T(128)}', space=smem, size = 0x200, scoped, tag = 'scratch operand']
  %s0 = inlined_call_operand.vmem [shape: f32[2,16,16], index: 0, kind: input, shape index: {}]
  %s1 = inlined_call_operand.vmem [shape: f32[16,16], index: 1, kind: input, shape index: {}]
  %s2 = inlined_call_operand.vmem [shape: bf16[2,16,32], index: 2, kind: input, shape index: {}]
  %s3 = inlined_call_operand.vmem [shape: f32[2,1,32], index: 3, kind: input, shape index: {}]
  %s4 = inlined_call_operand.vmem [shape: bf16[2,32,32], index: 4, kind: input, shape index: {}]
  %s5 = inlined_call_operand.vmem [shape: f32[2,1,32], index: 5, kind: input, shape index: {}]
  %s6 = inlined_call_operand.vmem [shape: bf16[2,32,32], index: 6, kind: input, shape index: {}]
  %s7 = inlined_call_operand.vmem [shape: f32[2,1,32], index: 7, kind: input, shape index: {}]
  %s8 = inlined_call_operand.vmem [shape: bf16[2,32,32], index: 8, kind: input, shape index: {}]
  %s9 = inlined_call_operand.vmem [shape: f32[2,1,32], index: 9, kind: input, shape index: {}]
  %s10 = inlined_call_operand.vmem [shape: bf16[2,32,32], index: 10, kind: input, shape index: {}]
  %s11 = inlined_call_operand.vmem [shape: f32[2,1,32], index: 11, kind: input, shape index: {}]
  %s12 = inlined_call_operand.vmem [shape: f32[2,1,32], index: 12, kind: input, shape index: {}]
  %s13 = inlined_call_operand.vmem [shape: f32[2,1,32], index: 13, kind: input, shape index: {}]
  %s14 = inlined_call_operand.vmem [shape: bf16[2,32,2048], index: 14, kind: input, shape index: {}]
  %s15 = inlined_call_operand.vmem [shape: f32[2,1,2048], index: 15, kind: input, shape index: {}]
  %s16 = inlined_call_operand.vmem [shape: bf16[2,2048,32], index: 16, kind: input, shape index: {}]
  %s17 = inlined_call_operand.vmem [shape: f32[2,1,32], index: 17, kind: input, shape index: {}]
  %s18 = inlined_call_operand.vmem [shape: f32[2,1,32], index: 18, kind: input, shape index: {}]
  %s19 = inlined_call_operand.vmem [shape: f32[2,1,32], index: 19, kind: input, shape index: {}]
  %s20 = inlined_call_operand.vmem [shape: bf16[2,32,16], index: 20, kind: input, shape index: {}]
  %s21 = inlined_call_operand.vmem [shape: f32[2,1,16], index: 21, kind: input, shape index: {}]
  %s22 = inlined_call_operand.vmem [shape: bf16[32,32], index: 22, kind: input, shape index: {}]
  %s23 = inlined_call_operand.vmem [shape: f32[1,32], index: 23, kind: input, shape index: {}]
  %s24 = inlined_call_operand.vmem [shape: f32[4], index: 24, kind: output, shape index: {}]
  %s25 = sld [smem:[#allocation0]]
  $region137: #{transformer_encoder_forward.1} parent=0
    _
  %s27 = ssub.s32 1, %s25
  %s28 = scalar_select 0, %s27, %s25
  $region1: #{transformer_encoder_forward.1} parent=0
    #allocation4 [shape = 'u8[512]{0}', space=smem, size = 0x200, scoped, tag = 'output window, operand 0, single buffered']
    #allocation5 [shape = 's32[2]{0}', space=sflag, size = 0x8, scoped, tag = 'scoped memory for transformer_encoder_forward.1']
    %29 = vsyncpa [#allocation5], 0
    loop: start=0, step=1, limit=4
    $region2: #{transformer_encoder_forward.1} parent=1 // loop_pre_header
      _
    $region3: #{transformer_encoder_forward.1} parent=1 // loop_header
      %s31 = sphi 0, %s35
      %p32 = scmp.ge.s32.totalorder %s31, 4
      %s41 = sphi 0, %s43
      %s44 = sphi 0, %s41
      %s45 = sphi 0, %s44
      %s61 = sphi 0, %s45
      %s65 = sphi 0, %s65
      %s67 = sphi 0, %s65
      %s68 = sphi 0, %s67
      %s82 = sphi 0, %s68
      %s88 = sphi 0, %s90
      %s91 = sphi 0, %s88
      %s92 = sphi 0, %s91
      %s108 = sphi 0, %s92
      %s114 = sphi 0, %s116
      %s117 = sphi 0, %s114
      %s118 = sphi 0, %s117
      %s134 = sphi 0, %s118
      %s140 = sphi 0, %s142
      %s143 = sphi 0, %s140
      %s144 = sphi 0, %s143
      %s160 = sphi 0, %s144
      %s166 = sphi 0, %s168
      %s169 = sphi 0, %s166
      %s170 = sphi 0, %s169
      %s186 = sphi 0, %s170
      %s192 = sphi 0, %s194
      %s195 = sphi 0, %s192
      %s196 = sphi 0, %s195
      %s212 = sphi 0, %s196
      %s218 = sphi 0, %s220
      %s221 = sphi 0, %s218
      %s222 = sphi 0, %s221
      %s238 = sphi 0, %s222
      %s244 = sphi 0, %s246
      %s247 = sphi 0, %s244
      %s248 = sphi 0, %s247
      %s264 = sphi 0, %s248
      %s270 = sphi 0, %s272
      %s273 = sphi 0, %s270
      %s274 = sphi 0, %s273
      %s290 = sphi 0, %s274
      %s296 = sphi 0, %s298
      %s299 = sphi 0, %s296
      %s300 = sphi 0, %s299
      %s316 = sphi 0, %s300
      %s322 = sphi 0, %s324
      %s325 = sphi 0, %s322
      %s326 = sphi 0, %s325
      %s342 = sphi 0, %s326
      %s348 = sphi 0, %s350
      %s351 = sphi 0, %s348
      %s352 = sphi 0, %s351
      %s368 = sphi 0, %s352
      %s374 = sphi 0, %s376
      %s377 = sphi 0, %s374
      %s378 = sphi 0, %s377
      %s394 = sphi 0, %s378
      %s400 = sphi 0, %s402
      %s403 = sphi 0, %s400
      %s404 = sphi 0, %s403
      %s420 = sphi 0, %s404
      %s426 = sphi 0, %s428
      %s429 = sphi 0, %s426
      %s430 = sphi 0, %s429
      %s446 = sphi 0, %s430
      %s452 = sphi 0, %s454
      %s455 = sphi 0, %s452
      %s456 = sphi 0, %s455
      %s472 = sphi 0, %s456
      %s478 = sphi 0, %s480
      %s481 = sphi 0, %s478
      %s482 = sphi 0, %s481
      %s498 = sphi 0, %s482
      %s504 = sphi 0, %s506
      %s507 = sphi 0, %s504
      %s508 = sphi 0, %s507
      %s524 = sphi 0, %s508
      %s530 = sphi 0, %s532
      %s533 = sphi 0, %s530
      %s534 = sphi 0, %s533
      %s550 = sphi 0, %s534
      %s556 = sphi 0, %s558
      %s559 = sphi 0, %s556
      %s560 = sphi 0, %s559
      %s576 = sphi 0, %s560
      %s582 = sphi 0, %s584
      %s585 = sphi 0, %s582
      %s586 = sphi 0, %s585
      %s602 = sphi 0, %s586
      %s606 = sphi 0, %s606
      %s608 = sphi 0, %s606
      %s609 = sphi 0, %s608
      %s623 = sphi 0, %s609
      %s627 = sphi 0, %s627
      %s629 = sphi 0, %s627
      %s630 = sphi 0, %s629
      %s644 = sphi 0, %s630
      %s648 = sphi 0, %s648
      %s650 = sphi 0, %s648
      %s651 = sphi 0, %s650
      %s665 = sphi 0, %s651
    $region4: #{transformer_encoder_forward.1} parent=1 // loop_header_branch
      %34 = sbr.rel (%p32) target = $region8
    $region5: #{transformer_encoder_forward.1} parent=1 // loop_body
      %s36 = ssub.s32 %s31, 1
      %s37 = ssub.s32 %s31, 2
      %s38 = sadd.s32 %s31, 1
      %s39 = ssub.s32 %s31, %s38
      %p40 = scmp.eq.s32.totalorder %s39, 0
      %s42 = sadd.s32 %s41, 1
      %s43 = scalar_select %p40, %s41, %s42
      %p46 = pneg %p40
      %p47 = scmp.eq.s32.totalorder %s31, 1
      %p48 = por %p46, %p47
      %p49 = scmp.ne.s32.totalorder %s41, %s44
      %p50 = scmp.eq.s32.totalorder %s31, 0
      %p51 = por %p49, %p50
      %p52 = scmp.ne.s32.totalorder %s41, %s44
      %p53 = scmp.eq.s32.totalorder %s36, 1
      %p54 = por %p52, %p53
      %p55 = scmp.ne.s32.totalorder %s44, %s45
      %p56 = scmp.eq.s32.totalorder %s36, 0
      %p57 = por %p55, %p56
      %p58 = scmp.ne.s32.totalorder %s44, %s45
      %p59 = scmp.eq.s32.totalorder %s37, 1
      %p60 = por %p58, %p59
      %p62 = scmp.ne.s32.totalorder %s45, %s61
      %p63 = scmp.eq.s32.totalorder %s37, 0
      %p64 = por %p62, %p63
      %s66 = sadd.s32 %s65, 1
      %p69 = scmp.eq.s32.totalorder %s31, 1
      %p70 = scmp.ne.s32.totalorder %s65, %s67
      %p71 = scmp.eq.s32.totalorder %s31, 0
      %p72 = por %p70, %p71
      %p73 = scmp.ne.s32.totalorder %s65, %s67
      %p74 = scmp.eq.s32.totalorder %s36, 1
      %p75 = por %p73, %p74
      %p76 = scmp.ne.s32.totalorder %s67, %s68
      %p77 = scmp.eq.s32.totalorder %s36, 0
      %p78 = por %p76, %p77
      %p79 = scmp.ne.s32.totalorder %s67, %s68
      %p80 = scmp.eq.s32.totalorder %s37, 1
      %p81 = por %p79, %p80
      %p83 = scmp.ne.s32.totalorder %s68, %s82
      %p84 = scmp.eq.s32.totalorder %s37, 0
      %p85 = por %p83, %p84
      %s86 = ssub.s32 %s31, %s38
      %p87 = scmp.eq.s32.totalorder %s86, 0
      %s89 = sadd.s32 %s88, 1
      %s90 = scalar_select %p87, %s88, %s89
      %p93 = pneg %p87
      %p94 = scmp.eq.s32.totalorder %s31, 1
      %p95 = por %p93, %p94
      %p96 = scmp.ne.s32.totalorder %s88, %s91
      %p97 = scmp.eq.s32.totalorder %s31, 0
      %p98 = por %p96, %p97
      %p99 = scmp.ne.s32.totalorder %s88, %s91
      %p100 = scmp.eq.s32.totalorder %s36, 1
      %p101 = por %p99, %p100
      %p102 = scmp.ne.s32.totalorder %s91, %s92
      %p103 = scmp.eq.s32.totalorder %s36, 0
      %p104 = por %p102, %p103
      %p105 = scmp.ne.s32.totalorder %s91, %s92
      %p106 = scmp.eq.s32.totalorder %s37, 1
      %p107 = por %p105, %p106
      %p109 = scmp.ne.s32.totalorder %s92, %s108
      %p110 = scmp.eq.s32.totalorder %s37, 0
      %p111 = por %p109, %p110
      %s112 = ssub.s32 %s31, %s38
      %p113 = scmp.eq.s32.totalorder %s112, 0
      %s115 = sadd.s32 %s114, 1
      %s116 = scalar_select %p113, %s114, %s115
      %p119 = pneg %p113
      %p120 = scmp.eq.s32.totalorder %s31, 1
      %p121 = por %p119, %p120
      %p122 = scmp.ne.s32.totalorder %s114, %s117
      %p123 = scmp.eq.s32.totalorder %s31, 0
      %p124 = por %p122, %p123
      %p125 = scmp.ne.s32.totalorder %s114, %s117
      %p126 = scmp.eq.s32.totalorder %s36, 1
      %p127 = por %p125, %p126
      %p128 = scmp.ne.s32.totalorder %s117, %s118
      %p129 = scmp.eq.s32.totalorder %s36, 0
      %p130 = por %p128, %p129
      %p131 = scmp.ne.s32.totalorder %s117, %s118
      %p132 = scmp.eq.s32.totalorder %s37, 1
      %p133 = por %p131, %p132
      %p135 = scmp.ne.s32.totalorder %s118, %s134
      %p136 = scmp.eq.s32.totalorder %s37, 0
      %p137 = por %p135, %p136
      %s138 = ssub.s32 %s31, %s38
      %p139 = scmp.eq.s32.totalorder %s138, 0
      %s141 = sadd.s32 %s140, 1
      %s142 = scalar_select %p139, %s140, %s141
      %p145 = pneg %p139
      %p146 = scmp.eq.s32.totalorder %s31, 1
      %p147 = por %p145, %p146
      %p148 = scmp.ne.s32.totalorder %s140, %s143
      %p149 = scmp.eq.s32.totalorder %s31, 0
      %p150 = por %p148, %p149
      %p151 = scmp.ne.s32.totalorder %s140, %s143
      %p152 = scmp.eq.s32.totalorder %s36, 1
      %p153 = por %p151, %p152
      %p154 = scmp.ne.s32.totalorder %s143, %s144
      %p155 = scmp.eq.s32.totalorder %s36, 0
      %p156 = por %p154, %p155
      %p157 = scmp.ne.s32.totalorder %s143, %s144
      %p158 = scmp.eq.s32.totalorder %s37, 1
      %p159 = por %p157, %p158
      %p161 = scmp.ne.s32.totalorder %s144, %s160
      %p162 = scmp.eq.s32.totalorder %s37, 0
      %p163 = por %p161, %p162
      %s164 = ssub.s32 %s31, %s38
      %p165 = scmp.eq.s32.totalorder %s164, 0
      %s167 = sadd.s32 %s166, 1
      %s168 = scalar_select %p165, %s166, %s167
      %p171 = pneg %p165
      %p172 = scmp.eq.s32.totalorder %s31, 1
      %p173 = por %p171, %p172
      %p174 = scmp.ne.s32.totalorder %s166, %s169
      %p175 = scmp.eq.s32.totalorder %s31, 0
      %p176 = por %p174, %p175
      %p177 = scmp.ne.s32.totalorder %s166, %s169
      %p178 = scmp.eq.s32.totalorder %s36, 1
      %p179 = por %p177, %p178
      %p180 = scmp.ne.s32.totalorder %s169, %s170
      %p181 = scmp.eq.s32.totalorder %s36, 0
      %p182 = por %p180, %p181
      %p183 = scmp.ne.s32.totalorder %s169, %s170
      %p184 = scmp.eq.s32.totalorder %s37, 1
      %p185 = por %p183, %p184
      %p187 = scmp.ne.s32.totalorder %s170, %s186
      %p188 = scmp.eq.s32.totalorder %s37, 0
      %p189 = por %p187, %p188
      %s190 = ssub.s32 %s31, %s38
      %p191 = scmp.eq.s32.totalorder %s190, 0
      %s193 = sadd.s32 %s192, 1
      %s194 = scalar_select %p191, %s192, %s193
      %p197 = pneg %p191
      %p198 = scmp.eq.s32.totalorder %s31, 1
      %p199 = por %p197, %p198
      %p200 = scmp.ne.s32.totalorder %s192, %s195
      %p201 = scmp.eq.s32.totalorder %s31, 0
      %p202 = por %p200, %p201
      %p203 = scmp.ne.s32.totalorder %s192, %s195
      %p204 = scmp.eq.s32.totalorder %s36, 1
      %p205 = por %p203, %p204
      %p206 = scmp.ne.s32.totalorder %s195, %s196
      %p207 = scmp.eq.s32.totalorder %s36, 0
      %p208 = por %p206, %p207
      %p209 = scmp.ne.s32.totalorder %s195, %s196
      %p210 = scmp.eq.s32.totalorder %s37, 1
      %p211 = por %p209, %p210
      %p213 = scmp.ne.s32.totalorder %s196, %s212
      %p214 = scmp.eq.s32.totalorder %s37, 0
      %p215 = por %p213, %p214
      %s216 = ssub.s32 %s31, %s38
      %p217 = scmp.eq.s32.totalorder %s216, 0
      %s219 = sadd.s32 %s218, 1
      %s220 = scalar_select %p217, %s218, %s219
      %p223 = pneg %p217
      %p224 = scmp.eq.s32.totalorder %s31, 1
      %p225 = por %p223, %p224
      %p226 = scmp.ne.s32.totalorder %s218, %s221
      %p227 = scmp.eq.s32.totalorder %s31, 0
      %p228 = por %p226, %p227
      %p229 = scmp.ne.s32.totalorder %s218, %s221
      %p230 = scmp.eq.s32.totalorder %s36, 1
      %p231 = por %p229, %p230
      %p232 = scmp.ne.s32.totalorder %s221, %s222
      %p233 = scmp.eq.s32.totalorder %s36, 0
      %p234 = por %p232, %p233
      %p235 = scmp.ne.s32.totalorder %s221, %s222
      %p236 = scmp.eq.s32.totalorder %s37, 1
      %p237 = por %p235, %p236
      %p239 = scmp.ne.s32.totalorder %s222, %s238
      %p240 = scmp.eq.s32.totalorder %s37, 0
      %p241 = por %p239, %p240
      %s242 = ssub.s32 %s31, %s38
      %p243 = scmp.eq.s32.totalorder %s242, 0
      %s245 = sadd.s32 %s244, 1
      %s246 = scalar_select %p243, %s244, %s245
      %p249 = pneg %p243
      %p250 = scmp.eq.s32.totalorder %s31, 1
      %p251 = por %p249, %p250
      %p252 = scmp.ne.s32.totalorder %s244, %s247
      %p253 = scmp.eq.s32.totalorder %s31, 0
      %p254 = por %p252, %p253
      %p255 = scmp.ne.s32.totalorder %s244, %s247
      %p256 = scmp.eq.s32.totalorder %s36, 1
      %p257 = por %p255, %p256
      %p258 = scmp.ne.s32.totalorder %s247, %s248
      %p259 = scmp.eq.s32.totalorder %s36, 0
      %p260 = por %p258, %p259
      %p261 = scmp.ne.s32.totalorder %s247, %s248
      %p262 = scmp.eq.s32.totalorder %s37, 1
      %p263 = por %p261, %p262
      %p265 = scmp.ne.s32.totalorder %s248, %s264
      %p266 = scmp.eq.s32.totalorder %s37, 0
      %p267 = por %p265, %p266
      %s268 = ssub.s32 %s31, %s38
      %p269 = scmp.eq.s32.totalorder %s268, 0
      %s271 = sadd.s32 %s270, 1
      %s272 = scalar_select %p269, %s270, %s271
      %p275 = pneg %p269
      %p276 = scmp.eq.s32.totalorder %s31, 1
      %p277 = por %p275, %p276
      %p278 = scmp.ne.s32.totalorder %s270, %s273
      %p279 = scmp.eq.s32.totalorder %s31, 0
      %p280 = por %p278, %p279
      %p281 = scmp.ne.s32.totalorder %s270, %s273
      %p282 = scmp.eq.s32.totalorder %s36, 1
      %p283 = por %p281, %p282
      %p284 = scmp.ne.s32.totalorder %s273, %s274
      %p285 = scmp.eq.s32.totalorder %s36, 0
      %p286 = por %p284, %p285
      %p287 = scmp.ne.s32.totalorder %s273, %s274
      %p288 = scmp.eq.s32.totalorder %s37, 1
      %p289 = por %p287, %p288
      %p291 = scmp.ne.s32.totalorder %s274, %s290
      %p292 = scmp.eq.s32.totalorder %s37, 0
      %p293 = por %p291, %p292
      %s294 = ssub.s32 %s31, %s38
      %p295 = scmp.eq.s32.totalorder %s294, 0
      %s297 = sadd.s32 %s296, 1
      %s298 = scalar_select %p295, %s296, %s297
      %p301 = pneg %p295
      %p302 = scmp.eq.s32.totalorder %s31, 1
      %p303 = por %p301, %p302
      %p304 = scmp.ne.s32.totalorder %s296, %s299
      %p305 = scmp.eq.s32.totalorder %s31, 0
      %p306 = por %p304, %p305
      %p307 = scmp.ne.s32.totalorder %s296, %s299
      %p308 = scmp.eq.s32.totalorder %s36, 1
      %p309 = por %p307, %p308
      %p310 = scmp.ne.s32.totalorder %s299, %s300
      %p311 = scmp.eq.s32.totalorder %s36, 0
      %p312 = por %p310, %p311
      %p313 = scmp.ne.s32.totalorder %s299, %s300
      %p314 = scmp.eq.s32.totalorder %s37, 1
      %p315 = por %p313, %p314
      %p317 = scmp.ne.s32.totalorder %s300, %s316
      %p318 = scmp.eq.s32.totalorder %s37, 0
      %p319 = por %p317, %p318
      %s320 = ssub.s32 %s31, %s38
      %p321 = scmp.eq.s32.totalorder %s320, 0
      %s323 = sadd.s32 %s322, 1
      %s324 = scalar_select %p321, %s322, %s323
      %p327 = pneg %p321
      %p328 = scmp.eq.s32.totalorder %s31, 1
      %p329 = por %p327, %p328
      %p330 = scmp.ne.s32.totalorder %s322, %s325
      %p331 = scmp.eq.s32.totalorder %s31, 0
      %p332 = por %p330, %p331
      %p333 = scmp.ne.s32.totalorder %s322, %s325
      %p334 = scmp.eq.s32.totalorder %s36, 1
      %p335 = por %p333, %p334
      %p336 = scmp.ne.s32.totalorder %s325, %s326
      %p337 = scmp.eq.s32.totalorder %s36, 0
      %p338 = por %p336, %p337
      %p339 = scmp.ne.s32.totalorder %s325, %s326
      %p340 = scmp.eq.s32.totalorder %s37, 1
      %p341 = por %p339, %p340
      %p343 = scmp.ne.s32.totalorder %s326, %s342
      %p344 = scmp.eq.s32.totalorder %s37, 0
      %p345 = por %p343, %p344
      %s346 = ssub.s32 %s31, %s38
      %p347 = scmp.eq.s32.totalorder %s346, 0
      %s349 = sadd.s32 %s348, 1
      %s350 = scalar_select %p347, %s348, %s349
      %p353 = pneg %p347
      %p354 = scmp.eq.s32.totalorder %s31, 1
      %p355 = por %p353, %p354
      %p356 = scmp.ne.s32.totalorder %s348, %s351
      %p357 = scmp.eq.s32.totalorder %s31, 0
      %p358 = por %p356, %p357
      %p359 = scmp.ne.s32.totalorder %s348, %s351
      %p360 = scmp.eq.s32.totalorder %s36, 1
      %p361 = por %p359, %p360
      %p362 = scmp.ne.s32.totalorder %s351, %s352
      %p363 = scmp.eq.s32.totalorder %s36, 0
      %p364 = por %p362, %p363
      %p365 = scmp.ne.s32.totalorder %s351, %s352
      %p366 = scmp.eq.s32.totalorder %s37, 1
      %p367 = por %p365, %p366
      %p369 = scmp.ne.s32.totalorder %s352, %s368
      %p370 = scmp.eq.s32.totalorder %s37, 0
      %p371 = por %p369, %p370
      %s372 = ssub.s32 %s31, %s38
      %p373 = scmp.eq.s32.totalorder %s372, 0
      %s375 = sadd.s32 %s374, 1
      %s376 = scalar_select %p373, %s374, %s375
      %p379 = pneg %p373
      %p380 = scmp.eq.s32.totalorder %s31, 1
      %p381 = por %p379, %p380
      %p382 = scmp.ne.s32.totalorder %s374, %s377
      %p383 = scmp.eq.s32.totalorder %s31, 0
      %p384 = por %p382, %p383
      %p385 = scmp.ne.s32.totalorder %s374, %s377
      %p386 = scmp.eq.s32.totalorder %s36, 1
      %p387 = por %p385, %p386
      %p388 = scmp.ne.s32.totalorder %s377, %s378
      %p389 = scmp.eq.s32.totalorder %s36, 0
      %p390 = por %p388, %p389
      %p391 = scmp.ne.s32.totalorder %s377, %s378
      %p392 = scmp.eq.s32.totalorder %s37, 1
      %p393 = por %p391, %p392
      %p395 = scmp.ne.s32.totalorder %s378, %s394
      %p396 = scmp.eq.s32.totalorder %s37, 0
      %p397 = por %p395, %p396
      %s398 = ssub.s32 %s31, %s38
      %p399 = scmp.eq.s32.totalorder %s398, 0
      %s401 = sadd.s32 %s400, 1
      %s402 = scalar_select %p399, %s400, %s401
      %p405 = pneg %p399
      %p406 = scmp.eq.s32.totalorder %s31, 1
      %p407 = por %p405, %p406
      %p408 = scmp.ne.s32.totalorder %s400, %s403
      %p409 = scmp.eq.s32.totalorder %s31, 0
      %p410 = por %p408, %p409
      %p411 = scmp.ne.s32.totalorder %s400, %s403
      %p412 = scmp.eq.s32.totalorder %s36, 1
      %p413 = por %p411, %p412
      %p414 = scmp.ne.s32.totalorder %s403, %s404
      %p415 = scmp.eq.s32.totalorder %s36, 0
      %p416 = por %p414, %p415
      %p417 = scmp.ne.s32.totalorder %s403, %s404
      %p418 = scmp.eq.s32.totalorder %s37, 1
      %p419 = por %p417, %p418
      %p421 = scmp.ne.s32.totalorder %s404, %s420
      %p422 = scmp.eq.s32.totalorder %s37, 0
      %p423 = por %p421, %p422
      %s424 = ssub.s32 %s31, %s38
      %p425 = scmp.eq.s32.totalorder %s424, 0
      %s427 = sadd.s32 %s426, 1
      %s428 = scalar_select %p425, %s426, %s427
      %p431 = pneg %p425
      %p432 = scmp.eq.s32.totalorder %s31, 1
      %p433 = por %p431, %p432
      %p434 = scmp.ne.s32.totalorder %s426, %s429
      %p435 = scmp.eq.s32.totalorder %s31, 0
      %p436 = por %p434, %p435
      %p437 = scmp.ne.s32.totalorder %s426, %s429
      %p438 = scmp.eq.s32.totalorder %s36, 1
      %p439 = por %p437, %p438
      %p440 = scmp.ne.s32.totalorder %s429, %s430
      %p441 = scmp.eq.s32.totalorder %s36, 0
      %p442 = por %p440, %p441
      %p443 = scmp.ne.s32.totalorder %s429, %s430
      %p444 = scmp.eq.s32.totalorder %s37, 1
      %p445 = por %p443, %p444
      %p447 = scmp.ne.s32.totalorder %s430, %s446
      %p448 = scmp.eq.s32.totalorder %s37, 0
      %p449 = por %p447, %p448
      %s450 = ssub.s32 %s31, %s38
      %p451 = scmp.eq.s32.totalorder %s450, 0
      %s453 = sadd.s32 %s452, 1
      %s454 = scalar_select %p451, %s452, %s453
      %p457 = pneg %p451
      %p458 = scmp.eq.s32.totalorder %s31, 1
      %p459 = por %p457, %p458
      %p460 = scmp.ne.s32.totalorder %s452, %s455
      %p461 = scmp.eq.s32.totalorder %s31, 0
      %p462 = por %p460, %p461
      %p463 = scmp.ne.s32.totalorder %s452, %s455
      %p464 = scmp.eq.s32.totalorder %s36, 1
      %p465 = por %p463, %p464
      %p466 = scmp.ne.s32.totalorder %s455, %s456
      %p467 = scmp.eq.s32.totalorder %s36, 0
      %p468 = por %p466, %p467
      %p469 = scmp.ne.s32.totalorder %s455, %s456
      %p470 = scmp.eq.s32.totalorder %s37, 1
      %p471 = por %p469, %p470
      %p473 = scmp.ne.s32.totalorder %s456, %s472
      %p474 = scmp.eq.s32.totalorder %s37, 0
      %p475 = por %p473, %p474
      %s476 = ssub.s32 %s31, %s38
      %p477 = scmp.eq.s32.totalorder %s476, 0
      %s479 = sadd.s32 %s478, 1
      %s480 = scalar_select %p477, %s478, %s479
      %p483 = pneg %p477
      %p484 = scmp.eq.s32.totalorder %s31, 1
      %p485 = por %p483, %p484
      %p486 = scmp.ne.s32.totalorder %s478, %s481
      %p487 = scmp.eq.s32.totalorder %s31, 0
      %p488 = por %p486, %p487
      %p489 = scmp.ne.s32.totalorder %s478, %s481
      %p490 = scmp.eq.s32.totalorder %s36, 1
      %p491 = por %p489, %p490
      %p492 = scmp.ne.s32.totalorder %s481, %s482
      %p493 = scmp.eq.s32.totalorder %s36, 0
      %p494 = por %p492, %p493
      %p495 = scmp.ne.s32.totalorder %s481, %s482
      %p496 = scmp.eq.s32.totalorder %s37, 1
      %p497 = por %p495, %p496
      %p499 = scmp.ne.s32.totalorder %s482, %s498
      %p500 = scmp.eq.s32.totalorder %s37, 0
      %p501 = por %p499, %p500
      %s502 = ssub.s32 %s31, %s38
      %p503 = scmp.eq.s32.totalorder %s502, 0
      %s505 = sadd.s32 %s504, 1
      %s506 = scalar_select %p503, %s504, %s505
      %p509 = pneg %p503
      %p510 = scmp.eq.s32.totalorder %s31, 1
      %p511 = por %p509, %p510
      %p512 = scmp.ne.s32.totalorder %s504, %s507
      %p513 = scmp.eq.s32.totalorder %s31, 0
      %p514 = por %p512, %p513
      %p515 = scmp.ne.s32.totalorder %s504, %s507
      %p516 = scmp.eq.s32.totalorder %s36, 1
      %p517 = por %p515, %p516
      %p518 = scmp.ne.s32.totalorder %s507, %s508
      %p519 = scmp.eq.s32.totalorder %s36, 0
      %p520 = por %p518, %p519
      %p521 = scmp.ne.s32.totalorder %s507, %s508
      %p522 = scmp.eq.s32.totalorder %s37, 1
      %p523 = por %p521, %p522
      %p525 = scmp.ne.s32.totalorder %s508, %s524
      %p526 = scmp.eq.s32.totalorder %s37, 0
      %p527 = por %p525, %p526
      %s528 = ssub.s32 %s31, %s38
      %p529 = scmp.eq.s32.totalorder %s528, 0
      %s531 = sadd.s32 %s530, 1
      %s532 = scalar_select %p529, %s530, %s531
      %p535 = pneg %p529
      %p536 = scmp.eq.s32.totalorder %s31, 1
      %p537 = por %p535, %p536
      %p538 = scmp.ne.s32.totalorder %s530, %s533
      %p539 = scmp.eq.s32.totalorder %s31, 0
      %p540 = por %p538, %p539
      %p541 = scmp.ne.s32.totalorder %s530, %s533
      %p542 = scmp.eq.s32.totalorder %s36, 1
      %p543 = por %p541, %p542
      %p544 = scmp.ne.s32.totalorder %s533, %s534
      %p545 = scmp.eq.s32.totalorder %s36, 0
      %p546 = por %p544, %p545
      %p547 = scmp.ne.s32.totalorder %s533, %s534
      %p548 = scmp.eq.s32.totalorder %s37, 1
      %p549 = por %p547, %p548
      %p551 = scmp.ne.s32.totalorder %s534, %s550
      %p552 = scmp.eq.s32.totalorder %s37, 0
      %p553 = por %p551, %p552
      %s554 = ssub.s32 %s31, %s38
      %p555 = scmp.eq.s32.totalorder %s554, 0
      %s557 = sadd.s32 %s556, 1
      %s558 = scalar_select %p555, %s556, %s557
      %p561 = pneg %p555
      %p562 = scmp.eq.s32.totalorder %s31, 1
      %p563 = por %p561, %p562
      %p564 = scmp.ne.s32.totalorder %s556, %s559
      %p565 = scmp.eq.s32.totalorder %s31, 0
      %p566 = por %p564, %p565
      %p567 = scmp.ne.s32.totalorder %s556, %s559
      %p568 = scmp.eq.s32.totalorder %s36, 1
      %p569 = por %p567, %p568
      %p570 = scmp.ne.s32.totalorder %s559, %s560
      %p571 = scmp.eq.s32.totalorder %s36, 0
      %p572 = por %p570, %p571
      %p573 = scmp.ne.s32.totalorder %s559, %s560
      %p574 = scmp.eq.s32.totalorder %s37, 1
      %p575 = por %p573, %p574
      %p577 = scmp.ne.s32.totalorder %s560, %s576
      %p578 = scmp.eq.s32.totalorder %s37, 0
      %p579 = por %p577, %p578
      %s580 = ssub.s32 %s31, %s38
      %p581 = scmp.eq.s32.totalorder %s580, 0
      %s583 = sadd.s32 %s582, 1
      %s584 = scalar_select %p581, %s582, %s583
      %p587 = pneg %p581
      %p588 = scmp.eq.s32.totalorder %s31, 1
      %p589 = por %p587, %p588
      %p590 = scmp.ne.s32.totalorder %s582, %s585
      %p591 = scmp.eq.s32.totalorder %s31, 0
      %p592 = por %p590, %p591
      %p593 = scmp.ne.s32.totalorder %s582, %s585
      %p594 = scmp.eq.s32.totalorder %s36, 1
      %p595 = por %p593, %p594
      %p596 = scmp.ne.s32.totalorder %s585, %s586
      %p597 = scmp.eq.s32.totalorder %s36, 0
      %p598 = por %p596, %p597
      %p599 = scmp.ne.s32.totalorder %s585, %s586
      %p600 = scmp.eq.s32.totalorder %s37, 1
      %p601 = por %p599, %p600
      %p603 = scmp.ne.s32.totalorder %s586, %s602
      %p604 = scmp.eq.s32.totalorder %s37, 0
      %p605 = por %p603, %p604
      %s607 = sadd.s32 %s606, 1
      %p610 = scmp.eq.s32.totalorder %s31, 1
      %p611 = scmp.ne.s32.totalorder %s606, %s608
      %p612 = scmp.eq.s32.totalorder %s31, 0
      %p613 = por %p611, %p612
      %p614 = scmp.ne.s32.totalorder %s606, %s608
      %p615 = scmp.eq.s32.totalorder %s36, 1
      %p616 = por %p614, %p615
      %p617 = scmp.ne.s32.totalorder %s608, %s609
      %p618 = scmp.eq.s32.totalorder %s36, 0
      %p619 = por %p617, %p618
      %p620 = scmp.ne.s32.totalorder %s608, %s609
      %p621 = scmp.eq.s32.totalorder %s37, 1
      %p622 = por %p620, %p621
      %p624 = scmp.ne.s32.totalorder %s609, %s623
      %p625 = scmp.eq.s32.totalorder %s37, 0
      %p626 = por %p624, %p625
      %s628 = sadd.s32 %s627, 1
      %p631 = scmp.eq.s32.totalorder %s31, 1
      %p632 = scmp.ne.s32.totalorder %s627, %s629
      %p633 = scmp.eq.s32.totalorder %s31, 0
      %p634 = por %p632, %p633
      %p635 = scmp.ne.s32.totalorder %s627, %s629
      %p636 = scmp.eq.s32.totalorder %s36, 1
      %p637 = por %p635, %p636
      %p638 = scmp.ne.s32.totalorder %s629, %s630
      %p639 = scmp.eq.s32.totalorder %s36, 0
      %p640 = por %p638, %p639
      %p641 = scmp.ne.s32.totalorder %s629, %s630
      %p642 = scmp.eq.s32.totalorder %s37, 1
      %p643 = por %p641, %p642
      %p645 = scmp.ne.s32.totalorder %s630, %s644
      %p646 = scmp.eq.s32.totalorder %s37, 0
      %p647 = por %p645, %p646
      %s649 = sadd.s32 %s648, 1
      %p652 = scmp.eq.s32.totalorder %s31, 1
      %p653 = scmp.ne.s32.totalorder %s648, %s650
      %p654 = scmp.eq.s32.totalorder %s31, 0
      %p655 = por %p653, %p654
      %p656 = scmp.ne.s32.totalorder %s648, %s650
      %p657 = scmp.eq.s32.totalorder %s36, 1
      %p658 = por %p656, %p657
      %p659 = scmp.ne.s32.totalorder %s650, %s651
      %p660 = scmp.eq.s32.totalorder %s36, 0
      %p661 = por %p659, %p660
      %p662 = scmp.ne.s32.totalorder %s650, %s651
      %p663 = scmp.eq.s32.totalorder %s37, 1
      %p664 = por %p662, %p663
      %p666 = scmp.ne.s32.totalorder %s651, %s665
      %p667 = scmp.eq.s32.totalorder %s37, 0
      %p668 = por %p666, %p667
      %p669 = scmp.le.s32.totalorder 1, %s31
      %p670 = scmp.lt.s32.totalorder %s31, 3
      %p671 = pnand %p669, %p670
      %p672 = pneg %p671
      // Predicated region
      $region9: #{transformer_encoder_forward.1} parent=5 // pred_check
        _
      $region10: #{transformer_encoder_forward.1} parent=5 // pred_check_branch
        %674 = sbr.rel (%p671) target = $region12
      $region11: #{transformer_encoder_forward.1} parent=5 // pred_region
        %s675 = ssub.s32 %s31, 1
        // Predicated region
        $region13: #{transformer_encoder_forward.1} parent=11 // pred_check
          %p676 = pneg %p78
        $region14: #{transformer_encoder_forward.1} parent=11 // pred_check_branch
          %678 = sbr.rel (%p676) target = $region16
        $region15: #{transformer_encoder_forward.1} parent=11 // pred_region
          _
        $region16: #{transformer_encoder_forward.1} parent=11 // pred_fallthru
          _
        // Predicated region
        $region17: #{transformer_encoder_forward.1} parent=11 // pred_check
          %p679 = pneg %p619
        $region18: #{transformer_encoder_forward.1} parent=11 // pred_check_branch
          %681 = sbr.rel (%p679) target = $region20
        $region19: #{transformer_encoder_forward.1} parent=11 // pred_region
          _
        $region20: #{transformer_encoder_forward.1} parent=11 // pred_fallthru
          _
        // Predicated region
        $region21: #{transformer_encoder_forward.1} parent=11 // pred_check
          %p682 = pneg %p640
        $region22: #{transformer_encoder_forward.1} parent=11 // pred_check_branch
          %684 = sbr.rel (%p682) target = $region24
        $region23: #{transformer_encoder_forward.1} parent=11 // pred_region
          _
        $region24: #{transformer_encoder_forward.1} parent=11 // pred_fallthru
          _
      $region12: #{transformer_encoder_forward.1} parent=5 // pred_fallthru
        _
      %p685 = scmp.lt.s32.totalorder %s31, 2
      // Predicated region
      $region25: #{transformer_encoder_forward.1} parent=5 // pred_check
        %p686 = pneg %p685
      $region26: #{transformer_encoder_forward.1} parent=5 // pred_check_branch
        %688 = sbr.rel (%p686) target = $region28
      $region27: #{transformer_encoder_forward.1} parent=5 // pred_region
        // Predicated region
        $region29: #{transformer_encoder_forward.1} parent=27 // pred_check
          %p689 = pneg %p51
        $region30: #{transformer_encoder_forward.1} parent=27 // pred_check_branch
          %691 = sbr.rel (%p689) target = $region32
        $region31: #{transformer_encoder_forward.1} parent=27 // pred_region
          %p692 = scmp.lt.s32.totalorder %s31, 1
          %s693 = scalar_select %p692, %s31, 1
          %s694 = smul.addr %s693, 2
          %s695 = smul.addr %s694, 8
          %s696 = scalar_lea.vmem %s0, %s695
        $region32: #{transformer_encoder_forward.1} parent=27 // pred_fallthru
          _
        // Predicated region
        $region33: #{transformer_encoder_forward.1} parent=27 // pred_check
          %p697 = pneg %p98
        $region34: #{transformer_encoder_forward.1} parent=27 // pred_check_branch
          %699 = sbr.rel (%p697) target = $region36
        $region35: #{transformer_encoder_forward.1} parent=27 // pred_region
          %p700 = scmp.lt.s32.totalorder %s31, 1
          %s701 = scalar_select %p700, %s31, 1
          %s702 = smul.addr %s701, 2
          %s703 = smul.addr %s702, 4
          %s704 = scalar_lea.vmem %s2, %s703
        $region36: #{transformer_encoder_forward.1} parent=27 // pred_fallthru
          _
        // Predicated region
        $region37: #{transformer_encoder_forward.1} parent=27 // pred_check
          %p705 = pneg %p124
        $region38: #{transformer_encoder_forward.1} parent=27 // pred_check_branch
          %707 = sbr.rel (%p705) target = $region40
        $region39: #{transformer_encoder_forward.1} parent=27 // pred_region
          %p708 = scmp.lt.s32.totalorder %s31, 1
          %s709 = scalar_select %p708, %s31, 1
          %s710 = scalar_lea.vmem %s3, %s709
        $region40: #{transformer_encoder_forward.1} parent=27 // pred_fallthru
          _
        // Predicated region
        $region41: #{transformer_encoder_forward.1} parent=27 // pred_check
          %p711 = pneg %p150
        $region42: #{transformer_encoder_forward.1} parent=27 // pred_check_branch
          %713 = sbr.rel (%p711) target = $region44
        $region43: #{transformer_encoder_forward.1} parent=27 // pred_region
          %p714 = scmp.lt.s32.totalorder %s31, 1
          %s715 = scalar_select %p714, %s31, 1
          %s716 = smul.addr %s715, 4
          %s717 = smul.addr %s716, 4
          %s718 = scalar_lea.vmem %s4, %s717
        $region44: #{transformer_encoder_forward.1} parent=27 // pred_fallthru
          _
        // Predicated region
        $region45: #{transformer_encoder_forward.1} parent=27 // pred_check
          %p719 = pneg %p176
        $region46: #{transformer_encoder_forward.1} parent=27 // pred_check_branch
          %721 = sbr.rel (%p719) target = $region48
        $region47: #{transformer_encoder_forward.1} parent=27 // pred_region
          %p722 = scmp.lt.s32.totalorder %s31, 1
          %s723 = scalar_select %p722, %s31, 1
          %s724 = scalar_lea.vmem %s5, %s723
        $region48: #{transformer_encoder_forward.1} parent=27 // pred_fallthru
          _
        // Predicated region
        $region49: #{transformer_encoder_forward.1} parent=27 // pred_check
          %p725 = pneg %p202
        $region50: #{transformer_encoder_forward.1} parent=27 // pred_check_branch
          %727 = sbr.rel (%p725) target = $region52
        $region51: #{transformer_encoder_forward.1} parent=27 // pred_region
          %p728 = scmp.lt.s32.totalorder %s31, 1
          %s729 = scalar_select %p728, %s31, 1
          %s730 = smul.addr %s729, 4
          %s731 = smul.addr %s730, 4
          %s732 = scalar_lea.vmem %s6, %s731
        $region52: #{transformer_encoder_forward.1} parent=27 // pred_fallthru
          _
        // Predicated region
        $region53: #{transformer_encoder_forward.1} parent=27 // pred_check
          %p733 = pneg %p228
        $region54: #{transformer_encoder_forward.1} parent=27 // pred_check_branch
          %735 = sbr.rel (%p733) target = $region56
        $region55: #{transformer_encoder_forward.1} parent=27 // pred_region
          %p736 = scmp.lt.s32.totalorder %s31, 1
          %s737 = scalar_select %p736, %s31, 1
          %s738 = scalar_lea.vmem %s7, %s737
        $region56: #{transformer_encoder_forward.1} parent=27 // pred_fallthru
          _
        // Predicated region
        $region57: #{transformer_encoder_forward.1} parent=27 // pred_check
          %p739 = pneg %p254
        $region58: #{transformer_encoder_forward.1} parent=27 // pred_check_branch
          %741 = sbr.rel (%p739) target = $region60
        $region59: #{transformer_encoder_forward.1} parent=27 // pred_region
          %p742 = scmp.lt.s32.totalorder %s31, 1
          %s743 = scalar_select %p742, %s31, 1
          %s744 = smul.addr %s743, 4
          %s745 = smul.addr %s744, 4
          %s746 = scalar_lea.vmem %s8, %s745
        $region60: #{transformer_encoder_forward.1} parent=27 // pred_fallthru
          _
        // Predicated region
        $region61: #{transformer_encoder_forward.1} parent=27 // pred_check
          %p747 = pneg %p280
        $region62: #{transformer_encoder_forward.1} parent=27 // pred_check_branch
          %749 = sbr.rel (%p747) target = $region64
        $region63: #{transformer_encoder_forward.1} parent=27 // pred_region
          %p750 = scmp.lt.s32.totalorder %s31, 1
          %s751 = scalar_select %p750, %s31, 1
          %s752 = scalar_lea.vmem %s9, %s751
        $region64: #{transformer_encoder_forward.1} parent=27 // pred_fallthru
          _
        // Predicated region
        $region65: #{transformer_encoder_forward.1} parent=27 // pred_check
          %p753 = pneg %p306
        $region66: #{transformer_encoder_forward.1} parent=27 // pred_check_branch
          %755 = sbr.rel (%p753) target = $region68
        $region67: #{transformer_encoder_forward.1} parent=27 // pred_region
          %p756 = scmp.lt.s32.totalorder %s31, 1
          %s757 = scalar_select %p756, %s31, 1
          %s758 = smul.addr %s757, 4
          %s759 = smul.addr %s758, 4
          %s760 = scalar_lea.vmem %s10, %s759
        $region68: #{transformer_encoder_forward.1} parent=27 // pred_fallthru
          _
        // Predicated region
        $region69: #{transformer_encoder_forward.1} parent=27 // pred_check
          %p761 = pneg %p332
        $region70: #{transformer_encoder_forward.1} parent=27 // pred_check_branch
          %763 = sbr.rel (%p761) target = $region72
        $region71: #{transformer_encoder_forward.1} parent=27 // pred_region
          %p764 = scmp.lt.s32.totalorder %s31, 1
          %s765 = scalar_select %p764, %s31, 1
          %s766 = scalar_lea.vmem %s11, %s765
        $region72: #{transformer_encoder_forward.1} parent=27 // pred_fallthru
          _
        // Predicated region
        $region73: #{transformer_encoder_forward.1} parent=27 // pred_check
          %p767 = pneg %p358
        $region74: #{transformer_encoder_forward.1} parent=27 // pred_check_branch
          %769 = sbr.rel (%p767) target = $region76
        $region75: #{transformer_encoder_forward.1} parent=27 // pred_region
          %p770 = scmp.lt.s32.totalorder %s31, 1
          %s771 = scalar_select %p770, %s31, 1
          %s772 = scalar_lea.vmem %s12, %s771
        $region76: #{transformer_encoder_forward.1} parent=27 // pred_fallthru
          _
        // Predicated region
        $region77: #{transformer_encoder_forward.1} parent=27 // pred_check
          %p773 = pneg %p384
        $region78: #{transformer_encoder_forward.1} parent=27 // pred_check_branch
          %775 = sbr.rel (%p773) target = $region80
        $region79: #{transformer_encoder_forward.1} parent=27 // pred_region
          %p776 = scmp.lt.s32.totalorder %s31, 1
          %s777 = scalar_select %p776, %s31, 1
          %s778 = scalar_lea.vmem %s13, %s777
        $region80: #{transformer_encoder_forward.1} parent=27 // pred_fallthru
          _
        // Predicated region
        $region81: #{transformer_encoder_forward.1} parent=27 // pred_check
          %p779 = pneg %p410
        $region82: #{transformer_encoder_forward.1} parent=27 // pred_check_branch
          %781 = sbr.rel (%p779) target = $region84
        $region83: #{transformer_encoder_forward.1} parent=27 // pred_region
          %p782 = scmp.lt.s32.totalorder %s31, 1
          %s783 = scalar_select %p782, %s31, 1
          %s784 = smul.addr %s783, 64
          %s785 = smul.addr %s784, 4
          %s786 = scalar_lea.vmem %s14, %s785
        $region84: #{transformer_encoder_forward.1} parent=27 // pred_fallthru
          _
        // Predicated region
        $region85: #{transformer_encoder_forward.1} parent=27 // pred_check
          %p787 = pneg %p436
        $region86: #{transformer_encoder_forward.1} parent=27 // pred_check_branch
          %789 = sbr.rel (%p787) target = $region88
        $region87: #{transformer_encoder_forward.1} parent=27 // pred_region
          %p790 = scmp.lt.s32.totalorder %s31, 1
          %s791 = scalar_select %p790, %s31, 1
          %s792 = smul.addr %s791, 16
          %s793 = scalar_lea.vmem %s15, %s792
        $region88: #{transformer_encoder_forward.1} parent=27 // pred_fallthru
          _
        // Predicated region
        $region89: #{transformer_encoder_forward.1} parent=27 // pred_check
          %p794 = pneg %p462
        $region90: #{transformer_encoder_forward.1} parent=27 // pred_check_branch
          %796 = sbr.rel (%p794) target = $region92
        $region91: #{transformer_encoder_forward.1} parent=27 // pred_region
          %p797 = scmp.lt.s32.totalorder %s31, 1
          %s798 = scalar_select %p797, %s31, 1
          %s799 = smul.addr %s798, 256
          %s800 = smul.addr %s799, 4
          %s801 = scalar_lea.vmem %s16, %s800
        $region92: #{transformer_encoder_forward.1} parent=27 // pred_fallthru
          _
        // Predicated region
        $region93: #{transformer_encoder_forward.1} parent=27 // pred_check
          %p802 = pneg %p488
        $region94: #{transformer_encoder_forward.1} parent=27 // pred_check_branch
          %804 = sbr.rel (%p802) target = $region96
        $region95: #{transformer_encoder_forward.1} parent=27 // pred_region
          %p805 = scmp.lt.s32.totalorder %s31, 1
          %s806 = scalar_select %p805, %s31, 1
          %s807 = scalar_lea.vmem %s17, %s806
        $region96: #{transformer_encoder_forward.1} parent=27 // pred_fallthru
          _
        // Predicated region
        $region97: #{transformer_encoder_forward.1} parent=27 // pred_check
          %p808 = pneg %p514
        $region98: #{transformer_encoder_forward.1} parent=27 // pred_check_branch
          %810 = sbr.rel (%p808) target = $region100
        $region99: #{transformer_encoder_forward.1} parent=27 // pred_region
          %p811 = scmp.lt.s32.totalorder %s31, 1
          %s812 = scalar_select %p811, %s31, 1
          %s813 = scalar_lea.vmem %s18, %s812
        $region100: #{transformer_encoder_forward.1} parent=27 // pred_fallthru
          _
        // Predicated region
        $region101: #{transformer_encoder_forward.1} parent=27 // pred_check
          %p814 = pneg %p540
        $region102: #{transformer_encoder_forward.1} parent=27 // pred_check_branch
          %816 = sbr.rel (%p814) target = $region104
        $region103: #{transformer_encoder_forward.1} parent=27 // pred_region
          %p817 = scmp.lt.s32.totalorder %s31, 1
          %s818 = scalar_select %p817, %s31, 1
          %s819 = scalar_lea.vmem %s19, %s818
        $region104: #{transformer_encoder_forward.1} parent=27 // pred_fallthru
          _
        // Predicated region
        $region105: #{transformer_encoder_forward.1} parent=27 // pred_check
          %p820 = pneg %p566
        $region106: #{transformer_encoder_forward.1} parent=27 // pred_check_branch
          %822 = sbr.rel (%p820) target = $region108
        $region107: #{transformer_encoder_forward.1} parent=27 // pred_region
          %p823 = scmp.lt.s32.totalorder %s31, 1
          %s824 = scalar_select %p823, %s31, 1
          %s825 = smul.addr %s824, 4
          %s826 = smul.addr %s825, 4
          %s827 = scalar_lea.vmem %s20, %s826
        $region108: #{transformer_encoder_forward.1} parent=27 // pred_fallthru
          _
        // Predicated region
        $region109: #{transformer_encoder_forward.1} parent=27 // pred_check
          %p828 = pneg %p592
        $region110: #{transformer_encoder_forward.1} parent=27 // pred_check_branch
          %830 = sbr.rel (%p828) target = $region112
        $region111: #{transformer_encoder_forward.1} parent=27 // pred_region
          %p831 = scmp.lt.s32.totalorder %s31, 1
          %s832 = scalar_select %p831, %s31, 1
          %s833 = scalar_lea.vmem %s21, %s832
        $region112: #{transformer_encoder_forward.1} parent=27 // pred_fallthru
          _
      $region28: #{transformer_encoder_forward.1} parent=5 // pred_fallthru
        _
      %p834 = scmp.le.s32.totalorder 1, %s31
      %p835 = scmp.lt.s32.totalorder %s31, 3
      %p836 = pnand %p834, %p835
      %p837 = pneg %p836
      // Predicated region
      $region113: #{transformer_encoder_forward.1} parent=5 // pred_check
        _
      $region114: #{transformer_encoder_forward.1} parent=5 // pred_check_branch
        %839 = sbr.rel (%p836) target = $region116
      $region115: #{transformer_encoder_forward.1} parent=5 // pred_region
        %s840 = ssub.s32 %s31, 1
        %p841 = scmp.lt.s32.totalorder %s36, 1
        %s842 = scalar_select %p841, %s36, 1
        %s843 = smul.addr %s842, 2
        %s844 = smul.addr %s843, 8
        %s845 = scalar_lea.vmem %s0, %s844
        %p846 = pneg %p57
        %p847 = pneg %p54
        %p848 = pneg %p78
        %p849 = pneg %p75
        %p850 = scmp.lt.s32.totalorder %s36, 1
        %s851 = scalar_select %p850, %s36, 1
        %s852 = smul.addr %s851, 2
        %s853 = smul.addr %s852, 4
        %s854 = scalar_lea.vmem %s2, %s853
        %p855 = pneg %p104
        %p856 = pneg %p101
        %p857 = scmp.lt.s32.totalorder %s36, 1
        %s858 = scalar_select %p857, %s36, 1
        %s859 = scalar_lea.vmem %s3, %s858
        %p860 = pneg %p130
        %p861 = pneg %p127
        %p862 = scmp.lt.s32.totalorder %s36, 1
        %s863 = scalar_select %p862, %s36, 1
        %s864 = smul.addr %s863, 4
        %s865 = smul.addr %s864, 4
        %s866 = scalar_lea.vmem %s4, %s865
        %p867 = pneg %p156
        %p868 = pneg %p153
        %p869 = scmp.lt.s32.totalorder %s36, 1
        %s870 = scalar_select %p869, %s36, 1
        %s871 = scalar_lea.vmem %s5, %s870
        %p872 = pneg %p182
        %p873 = pneg %p179
        %p874 = scmp.lt.s32.totalorder %s36, 1
        %s875 = scalar_select %p874, %s36, 1
        %s876 = smul.addr %s875, 4
        %s877 = smul.addr %s876, 4
        %s878 = scalar_lea.vmem %s6, %s877
        %p879 = pneg %p208
        %p880 = pneg %p205
        %p881 = scmp.lt.s32.totalorder %s36, 1
        %s882 = scalar_select %p881, %s36, 1
        %s883 = scalar_lea.vmem %s7, %s882
        %p884 = pneg %p234
        %p885 = pneg %p231
        %p886 = scmp.lt.s32.totalorder %s36, 1
        %s887 = scalar_select %p886, %s36, 1
        %s888 = smul.addr %s887, 4
        %s889 = smul.addr %s888, 4
        %s890 = scalar_lea.vmem %s8, %s889
        %p891 = pneg %p260
        %p892 = pneg %p257
        %p893 = scmp.lt.s32.totalorder %s36, 1
        %s894 = scalar_select %p893, %s36, 1
        %s895 = scalar_lea.vmem %s9, %s894
        %p896 = pneg %p286
        %p897 = pneg %p283
        %p898 = scmp.lt.s32.totalorder %s36, 1
        %s899 = scalar_select %p898, %s36, 1
        %s900 = smul.addr %s899, 4
        %s901 = smul.addr %s900, 4
        %s902 = scalar_lea.vmem %s10, %s901
        %p903 = pneg %p312
        %p904 = pneg %p309
        %p905 = scmp.lt.s32.totalorder %s36, 1
        %s906 = scalar_select %p905, %s36, 1
        %s907 = scalar_lea.vmem %s11, %s906
        %p908 = pneg %p338
        %p909 = pneg %p335
        %p910 = scmp.lt.s32.totalorder %s36, 1
        %s911 = scalar_select %p910, %s36, 1
        %s912 = scalar_lea.vmem %s12, %s911
        %p913 = pneg %p364
        %p914 = pneg %p361
        %p915 = scmp.lt.s32.totalorder %s36, 1
        %s916 = scalar_select %p915, %s36, 1
        %s917 = scalar_lea.vmem %s13, %s916
        %p918 = pneg %p390
        %p919 = pneg %p387
        %p920 = scmp.lt.s32.totalorder %s36, 1
        %s921 = scalar_select %p920, %s36, 1
        %s922 = smul.addr %s921, 64
        %s923 = smul.addr %s922, 4
        %s924 = scalar_lea.vmem %s14, %s923
        %p925 = pneg %p416
        %p926 = pneg %p413
        %p927 = scmp.lt.s32.totalorder %s36, 1
        %s928 = scalar_select %p927, %s36, 1
        %s929 = smul.addr %s928, 16
        %s930 = scalar_lea.vmem %s15, %s929
        %p931 = pneg %p442
        %p932 = pneg %p439
        %p933 = scmp.lt.s32.totalorder %s36, 1
        %s934 = scalar_select %p933, %s36, 1
        %s935 = smul.addr %s934, 256
        %s936 = smul.addr %s935, 4
        %s937 = scalar_lea.vmem %s16, %s936
        %p938 = pneg %p468
        %p939 = pneg %p465
        %p940 = scmp.lt.s32.totalorder %s36, 1
        %s941 = scalar_select %p940, %s36, 1
        %s942 = scalar_lea.vmem %s17, %s941
        %p943 = pneg %p494
        %p944 = pneg %p491
        %p945 = scmp.lt.s32.totalorder %s36, 1
        %s946 = scalar_select %p945, %s36, 1
        %s947 = scalar_lea.vmem %s18, %s946
        %p948 = pneg %p520
        %p949 = pneg %p517
        %p950 = scmp.lt.s32.totalorder %s36, 1
        %s951 = scalar_select %p950, %s36, 1
        %s952 = scalar_lea.vmem %s19, %s951
        %p953 = pneg %p546
        %p954 = pneg %p543
        %p955 = scmp.lt.s32.totalorder %s36, 1
        %s956 = scalar_select %p955, %s36, 1
        %s957 = smul.addr %s956, 4
        %s958 = smul.addr %s957, 4
        %s959 = scalar_lea.vmem %s20, %s958
        %p960 = pneg %p572
        %p961 = pneg %p569
        %p962 = scmp.lt.s32.totalorder %s36, 1
        %s963 = scalar_select %p962, %s36, 1
        %s964 = scalar_lea.vmem %s21, %s963
        %p965 = pneg %p598
        %p966 = pneg %p595
        %p967 = pneg %p619
        %p968 = pneg %p616
        %p969 = pneg %p640
        %p970 = pneg %p637
        %p971 = pneg %p661
        %p972 = pneg %p658
        %p973 = scmp.lt.s32.totalorder %s36, 1
        %s974 = scalar_select %p973, %s36, 1
        %s975 = smul.addr %s974, 2
        %s976 = smul.addr %s975, 8
        %s977 = scalar_lea.vmem %s0, %s976
        %p978 = scmp.lt.s32.totalorder %s36, 1
        %s979 = scalar_select %p978, %s36, 1
        %s980 = smul.addr %s979, 2
        %s981 = smul.addr %s980, 4
        %s982 = scalar_lea.vmem %s2, %s981
        %p983 = scmp.lt.s32.totalorder %s36, 1
        %s984 = scalar_select %p983, %s36, 1
        %s985 = scalar_lea.vmem %s3, %s984
        %p986 = scmp.lt.s32.totalorder %s36, 1
        %s987 = scalar_select %p986, %s36, 1
        %s988 = smul.addr %s987, 4
        %s989 = smul.addr %s988, 4
        %s990 = scalar_lea.vmem %s4, %s989
        %p991 = scmp.lt.s32.totalorder %s36, 1
        %s992 = scalar_select %p991, %s36, 1
        %s993 = scalar_lea.vmem %s5, %s992
        %p994 = scmp.lt.s32.totalorder %s36, 1
        %s995 = scalar_select %p994, %s36, 1
        %s996 = smul.addr %s995, 4
        %s997 = smul.addr %s996, 4
        %s998 = scalar_lea.vmem %s6, %s997
        %p999 = scmp.lt.s32.totalorder %s36, 1
        %s1000 = scalar_select %p999, %s36, 1
        %s1001 = scalar_lea.vmem %s7, %s1000
        %p1002 = scmp.lt.s32.totalorder %s36, 1
        %s1003 = scalar_select %p1002, %s36, 1
        %s1004 = smul.addr %s1003, 4
        %s1005 = smul.addr %s1004, 4
        %s1006 = scalar_lea.vmem %s8, %s1005
        %p1007 = scmp.lt.s32.totalorder %s36, 1
        %s1008 = scalar_select %p1007, %s36, 1
        %s1009 = scalar_lea.vmem %s9, %s1008
        %p1010 = scmp.lt.s32.totalorder %s36, 1
        %s1011 = scalar_select %p1010, %s36, 1
        %s1012 = smul.addr %s1011, 4
        %s1013 = smul.addr %s1012, 4
        %s1014 = scalar_lea.vmem %s10, %s1013
        %p1015 = scmp.lt.s32.totalorder %s36, 1
        %s1016 = scalar_select %p1015, %s36, 1
        %s1017 = scalar_lea.vmem %s11, %s1016
        %p1018 = scmp.lt.s32.totalorder %s36, 1
        %s1019 = scalar_select %p1018, %s36, 1
        %s1020 = scalar_lea.vmem %s12, %s1019
        %p1021 = scmp.lt.s32.totalorder %s36, 1
        %s1022 = scalar_select %p1021, %s36, 1
        %s1023 = scalar_lea.vmem %s13, %s1022
        %p1024 = scmp.lt.s32.totalorder %s36, 1
        %s1025 = scalar_select %p1024, %s36, 1
        %s1026 = smul.addr %s1025, 64
        %s1027 = smul.addr %s1026, 4
        %s1028 = scalar_lea.vmem %s14, %s1027
        %p1029 = scmp.lt.s32.totalorder %s36, 1
        %s1030 = scalar_select %p1029, %s36, 1
        %s1031 = smul.addr %s1030, 16
        %s1032 = scalar_lea.vmem %s15, %s1031
        %p1033 = scmp.lt.s32.totalorder %s36, 1
        %s1034 = scalar_select %p1033, %s36, 1
        %s1035 = smul.addr %s1034, 256
        %s1036 = smul.addr %s1035, 4
        %s1037 = scalar_lea.vmem %s16, %s1036
        %p1038 = scmp.lt.s32.totalorder %s36, 1
        %s1039 = scalar_select %p1038, %s36, 1
        %s1040 = scalar_lea.vmem %s17, %s1039
        %p1041 = scmp.lt.s32.totalorder %s36, 1
        %s1042 = scalar_select %p1041, %s36, 1
        %s1043 = scalar_lea.vmem %s18, %s1042
        %p1044 = scmp.lt.s32.totalorder %s36, 1
        %s1045 = scalar_select %p1044, %s36, 1
        %s1046 = scalar_lea.vmem %s19, %s1045
        %p1047 = scmp.lt.s32.totalorder %s36, 1
        %s1048 = scalar_select %p1047, %s36, 1
        %s1049 = smul.addr %s1048, 4
        %s1050 = smul.addr %s1049, 4
        %s1051 = scalar_lea.vmem %s20, %s1050
        %p1052 = scmp.lt.s32.totalorder %s36, 1
        %s1053 = scalar_select %p1052, %s36, 1
        %s1054 = scalar_lea.vmem %s21, %s1053
        %v1056 = vld [vmem:[%s982] sm:$0xf]
        %v1057 = vld [vmem:[%s982 + $0x4] sm:$0xf]
        %v1058 = vld [vmem:[%s985] sm:$0x1]
        %v1059 = vld [vmem:[%s990] sm:$0xf]
        %v1060 = vld [vmem:[%s990 + $0x4] sm:$0xf]
        %v1061 = vld [vmem:[%s990 + $0x8] sm:$0xf]
        %v1062 = vld [vmem:[%s990 + $0xc] sm:$0xf]
        %v1063 = vld [vmem:[%s993] sm:$0x1]
        %v1064 = vld [vmem:[%s998] sm:$0xf]
        %v1065 = vld [vmem:[%s998 + $0x4] sm:$0xf]
        %v1066 = vld [vmem:[%s998 + $0x8] sm:$0xf]
        %v1067 = vld [vmem:[%s998 + $0xc] sm:$0xf]
        %v1068 = vld [vmem:[%s1001] sm:$0x1]
        %v1069 = vld [vmem:[%s1006] sm:$0xf]
        %v1070 = vld [vmem:[%s1006 + $0x4] sm:$0xf]
        %v1071 = vld [vmem:[%s1006 + $0x8] sm:$0xf]
        %v1072 = vld [vmem:[%s1006 + $0xc] sm:$0xf]
        %v1073 = vld [vmem:[%s1009] sm:$0x1]
        %v1074 = vld [vmem:[%s1014] sm:$0xf]
        %v1075 = vld [vmem:[%s1014 + $0x4] sm:$0xf]
        %v1076 = vld [vmem:[%s1014 + $0x8] sm:$0xf]
        %v1077 = vld [vmem:[%s1014 + $0xc] sm:$0xf]
        %v1078 = vld [vmem:[%s1017] sm:$0x1]
        %v1079 = vld [vmem:[%s1020] sm:$0x1]
        %v1080 = vld [vmem:[%s1023] sm:$0x1]
        %v1081 = vld [vmem:[%s1028] sm:$0xff]
        %v1082 = vld [vmem:[%s1028 + $0x8] sm:$0xff]
        %v1083 = vld [vmem:[%s1028 + $0x10] sm:$0xff]
        %v1084 = vld [vmem:[%s1028 + $0x18] sm:$0xff]
        %v1085 = vld [vmem:[%s1028 + $0x20] sm:$0xff]
        %v1086 = vld [vmem:[%s1028 + $0x28] sm:$0xff]
        %v1087 = vld [vmem:[%s1028 + $0x30] sm:$0xff]
        %v1088 = vld [vmem:[%s1028 + $0x38] sm:$0xff]
        %v1089 = vld [vmem:[%s1028 + $0x40] sm:$0xff]
        %v1090 = vld [vmem:[%s1028 + $0x48] sm:$0xff]
        %v1091 = vld [vmem:[%s1028 + $0x50] sm:$0xff]
        %v1092 = vld [vmem:[%s1028 + $0x58] sm:$0xff]
        %v1093 = vld [vmem:[%s1028 + $0x60] sm:$0xff]
        %v1094 = vld [vmem:[%s1028 + $0x68] sm:$0xff]
        %v1095 = vld [vmem:[%s1028 + $0x70] sm:$0xff]
        %v1096 = vld [vmem:[%s1028 + $0x78] sm:$0xff]
        %v1097 = vld [vmem:[%s1028 + $0x80] sm:$0xff]
        %v1098 = vld [vmem:[%s1028 + $0x88] sm:$0xff]
        %v1099 = vld [vmem:[%s1028 + $0x90] sm:$0xff]
        %v1100 = vld [vmem:[%s1028 + $0x98] sm:$0xff]
        %v1101 = vld [vmem:[%s1028 + $0xa0] sm:$0xff]
        %v1102 = vld [vmem:[%s1028 + $0xa8] sm:$0xff]
        %v1103 = vld [vmem:[%s1028 + $0xb0] sm:$0xff]
        %v1104 = vld [vmem:[%s1028 + $0xb8] sm:$0xff]
        %v1105 = vld [vmem:[%s1028 + $0xc0] sm:$0xff]
        %v1106 = vld [vmem:[%s1028 + $0xc8] sm:$0xff]
        %v1107 = vld [vmem:[%s1028 + $0xd0] sm:$0xff]
        %v1108 = vld [vmem:[%s1028 + $0xd8] sm:$0xff]
        %v1109 = vld [vmem:[%s1028 + $0xe0] sm:$0xff]
        %v1110 = vld [vmem:[%s1028 + $0xe8] sm:$0xff]
        %v1111 = vld [vmem:[%s1028 + $0xf0] sm:$0xff]
        %v1112 = vld [vmem:[%s1028 + $0xf8] sm:$0xff]
        %v1113 = vld [vmem:[%s1032] sm:$0xff]
        %v1114 = vld [vmem:[%s1032 + $0x8] sm:$0xff]
        %v1115 = vld [vmem:[%s1037] sm:$0xf]
        %v1116 = vld [vmem:[%s1037 + $0x4] sm:$0xf]
        %v1117 = vld [vmem:[%s1037 + $0x8] sm:$0xf]
        %v1118 = vld [vmem:[%s1037 + $0xc] sm:$0xf]
        %v1119 = vld [vmem:[%s1037 + $0x10] sm:$0xf]
        %v1120 = vld [vmem:[%s1037 + $0x14] sm:$0xf]
        %v1121 = vld [vmem:[%s1037 + $0x18] sm:$0xf]
        %v1122 = vld [vmem:[%s1037 + $0x1c] sm:$0xf]
        %v1123 = vld [vmem:[%s1037 + $0x20] sm:$0xf]
        %v1124 = vld [vmem:[%s1037 + $0x24] sm:$0xf]
        %v1125 = vld [vmem:[%s1037 + $0x28] sm:$0xf]
        %v1126 = vld [vmem:[%s1037 + $0x2c] sm:$0xf]
        %v1127 = vld [vmem:[%s1037 + $0x30] sm:$0xf]
        %v1128 = vld [vmem:[%s1037 + $0x34] sm:$0xf]
        %v1129 = vld [vmem:[%s1037 + $0x38] sm:$0xf]
        %v1130 = vld [vmem:[%s1037 + $0x3c] sm:$0xf]
        %v1131 = vld [vmem:[%s1037 + $0x40] sm:$0xf]
        %v1132 = vld [vmem:[%s1037 + $0x44] sm:$0xf]
        %v1133 = vld [vmem:[%s1037 + $0x48] sm:$0xf]
        %v1134 = vld [vmem:[%s1037 + $0x4c] sm:$0xf]
        %v1135 = vld [vmem:[%s1037 + $0x50] sm:$0xf]
        %v1136 = vld [vmem:[%s1037 + $0x54] sm:$0xf]
        %v1137 = vld [vmem:[%s1037 + $0x58] sm:$0xf]
        %v1138 = vld [vmem:[%s1037 + $0x5c] sm:$0xf]
        %v1139 = vld [vmem:[%s1037 + $0x60] sm:$0xf]
        %v1140 = vld [vmem:[%s1037 + $0x64] sm:$0xf]
        %v1141 = vld [vmem:[%s1037 + $0x68] sm:$0xf]
        %v1142 = vld [vmem:[%s1037 + $0x6c] sm:$0xf]
        %v1143 = vld [vmem:[%s1037 + $0x70] sm:$0xf]
        %v1144 = vld [vmem:[%s1037 + $0x74] sm:$0xf]
        %v1145 = vld [vmem:[%s1037 + $0x78] sm:$0xf]
        %v1146 = vld [vmem:[%s1037 + $0x7c] sm:$0xf]
        %v1147 = vld [vmem:[%s1037 + $0x80] sm:$0xf]
        %v1148 = vld [vmem:[%s1037 + $0x84] sm:$0xf]
        %v1149 = vld [vmem:[%s1037 + $0x88] sm:$0xf]
        %v1150 = vld [vmem:[%s1037 + $0x8c] sm:$0xf]
        %v1151 = vld [vmem:[%s1037 + $0x90] sm:$0xf]
        %v1152 = vld [vmem:[%s1037 + $0x94] sm:$0xf]
        %v1153 = vld [vmem:[%s1037 + $0x98] sm:$0xf]
        %v1154 = vld [vmem:[%s1037 + $0x9c] sm:$0xf]
        %v1155 = vld [vmem:[%s1037 + $0xa0] sm:$0xf]
        %v1156 = vld [vmem:[%s1037 + $0xa4] sm:$0xf]
        %v1157 = vld [vmem:[%s1037 + $0xa8] sm:$0xf]
        %v1158 = vld [vmem:[%s1037 + $0xac] sm:$0xf]
        %v1159 = vld [vmem:[%s1037 + $0xb0] sm:$0xf]
        %v1160 = vld [vmem:[%s1037 + $0xb4] sm:$0xf]
        %v1161 = vld [vmem:[%s1037 + $0xb8] sm:$0xf]
        %v1162 = vld [vmem:[%s1037 + $0xbc] sm:$0xf]
        %v1163 = vld [vmem:[%s1037 + $0xc0] sm:$0xf]
        %v1164 = vld [vmem:[%s1037 + $0xc4] sm:$0xf]
        %v1165 = vld [vmem:[%s1037 + $0xc8] sm:$0xf]
        %v1166 = vld [vmem:[%s1037 + $0xcc] sm:$0xf]
        %v1167 = vld [vmem:[%s1037 + $0xd0] sm:$0xf]
        %v1168 = vld [vmem:[%s1037 + $0xd4] sm:$0xf]
        %v1169 = vld [vmem:[%s1037 + $0xd8] sm:$0xf]
        %v1170 = vld [vmem:[%s1037 + $0xdc] sm:$0xf]
        %v1171 = vld [vmem:[%s1037 + $0xe0] sm:$0xf]
        %v1172 = vld [vmem:[%s1037 + $0xe4] sm:$0xf]
        %v1173 = vld [vmem:[%s1037 + $0xe8] sm:$0xf]
        %v1174 = vld [vmem:[%s1037 + $0xec] sm:$0xf]
        %v1175 = vld [vmem:[%s1037 + $0xf0] sm:$0xf]
        %v1176 = vld [vmem:[%s1037 + $0xf4] sm:$0xf]
        %v1177 = vld [vmem:[%s1037 + $0xf8] sm:$0xf]
        %v1178 = vld [vmem:[%s1037 + $0xfc] sm:$0xf]
        %v1179 = vld [vmem:[%s1037 + $0x100] sm:$0xf]
        %v1180 = vld [vmem:[%s1037 + $0x104] sm:$0xf]
        %v1181 = vld [vmem:[%s1037 + $0x108] sm:$0xf]
        %v1182 = vld [vmem:[%s1037 + $0x10c] sm:$0xf]
        %v1183 = vld [vmem:[%s1037 + $0x110] sm:$0xf]
        %v1184 = vld [vmem:[%s1037 + $0x114] sm:$0xf]
        %v1185 = vld [vmem:[%s1037 + $0x118] sm:$0xf]
        %v1186 = vld [vmem:[%s1037 + $0x11c] sm:$0xf]
        %v1187 = vld [vmem:[%s1037 + $0x120] sm:$0xf]
        %v1188 = vld [vmem:[%s1037 + $0x124] sm:$0xf]
        %v1189 = vld [vmem:[%s1037 + $0x128] sm:$0xf]
        %v1190 = vld [vmem:[%s1037 + $0x12c] sm:$0xf]
        %v1191 = vld [vmem:[%s1037 + $0x130] sm:$0xf]
        %v1192 = vld [vmem:[%s1037 + $0x134] sm:$0xf]
        %v1193 = vld [vmem:[%s1037 + $0x138] sm:$0xf]
        %v1194 = vld [vmem:[%s1037 + $0x13c] sm:$0xf]
        %v1195 = vld [vmem:[%s1037 + $0x140] sm:$0xf]
        %v1196 = vld [vmem:[%s1037 + $0x144] sm:$0xf]
        %v1197 = vld [vmem:[%s1037 + $0x148] sm:$0xf]
        %v1198 = vld [vmem:[%s1037 + $0x14c] sm:$0xf]
        %v1199 = vld [vmem:[%s1037 + $0x150] sm:$0xf]
        %v1200 = vld [vmem:[%s1037 + $0x154] sm:$0xf]
        %v1201 = vld [vmem:[%s1037 + $0x158] sm:$0xf]
        %v1202 = vld [vmem:[%s1037 + $0x15c] sm:$0xf]
        %v1203 = vld [vmem:[%s1037 + $0x160] sm:$0xf]
        %v1204 = vld [vmem:[%s1037 + $0x164] sm:$0xf]
        %v1205 = vld [vmem:[%s1037 + $0x168] sm:$0xf]
        %v1206 = vld [vmem:[%s1037 + $0x16c] sm:$0xf]
        %v1207 = vld [vmem:[%s1037 + $0x170] sm:$0xf]
        %v1208 = vld [vmem:[%s1037 + $0x174] sm:$0xf]
        %v1209 = vld [vmem:[%s1037 + $0x178] sm:$0xf]
        %v1210 = vld [vmem:[%s1037 + $0x17c] sm:$0xf]
        %v1211 = vld [vmem:[%s1037 + $0x180] sm:$0xf]
        %v1212 = vld [vmem:[%s1037 + $0x184] sm:$0xf]
        %v1213 = vld [vmem:[%s1037 + $0x188] sm:$0xf]
        %v1214 = vld [vmem:[%s1037 + $0x18c] sm:$0xf]
        %v1215 = vld [vmem:[%s1037 + $0x190] sm:$0xf]
        %v1216 = vld [vmem:[%s1037 + $0x194] sm:$0xf]
        %v1217 = vld [vmem:[%s1037 + $0x198] sm:$0xf]
        %v1218 = vld [vmem:[%s1037 + $0x19c] sm:$0xf]
        %v1219 = vld [vmem:[%s1037 + $0x1a0] sm:$0xf]
        %v1220 = vld [vmem:[%s1037 + $0x1a4] sm:$0xf]
        %v1221 = vld [vmem:[%s1037 + $0x1a8] sm:$0xf]
        %v1222 = vld [vmem:[%s1037 + $0x1ac] sm:$0xf]
        %v1223 = vld [vmem:[%s1037 + $0x1b0] sm:$0xf]
        %v1224 = vld [vmem:[%s1037 + $0x1b4] sm:$0xf]
        %v1225 = vld [vmem:[%s1037 + $0x1b8] sm:$0xf]
        %v1226 = vld [vmem:[%s1037 + $0x1bc] sm:$0xf]
        %v1227 = vld [vmem:[%s1037 + $0x1c0] sm:$0xf]
        %v1228 = vld [vmem:[%s1037 + $0x1c4] sm:$0xf]
        %v1229 = vld [vmem:[%s1037 + $0x1c8] sm:$0xf]
        %v1230 = vld [vmem:[%s1037 + $0x1cc] sm:$0xf]
        %v1231 = vld [vmem:[%s1037 + $0x1d0] sm:$0xf]
        %v1232 = vld [vmem:[%s1037 + $0x1d4] sm:$0xf]
        %v1233 = vld [vmem:[%s1037 + $0x1d8] sm:$0xf]
        %v1234 = vld [vmem:[%s1037 + $0x1dc] sm:$0xf]
        %v1235 = vld [vmem:[%s1037 + $0x1e0] sm:$0xf]
        %v1236 = vld [vmem:[%s1037 + $0x1e4] sm:$0xf]
        %v1237 = vld [vmem:[%s1037 + $0x1e8] sm:$0xf]
        %v1238 = vld [vmem:[%s1037 + $0x1ec] sm:$0xf]
        %v1239 = vld [vmem:[%s1037 + $0x1f0] sm:$0xf]
        %v1240 = vld [vmem:[%s1037 + $0x1f4] sm:$0xf]
        %v1241 = vld [vmem:[%s1037 + $0x1f8] sm:$0xf]
        %v1242 = vld [vmem:[%s1037 + $0x1fc] sm:$0xf]
        %v1243 = vld [vmem:[%s1037 + $0x200] sm:$0xf]
        %v1244 = vld [vmem:[%s1037 + $0x204] sm:$0xf]
        %v1245 = vld [vmem:[%s1037 + $0x208] sm:$0xf]
        %v1246 = vld [vmem:[%s1037 + $0x20c] sm:$0xf]
        %v1247 = vld [vmem:[%s1037 + $0x210] sm:$0xf]
        %v1248 = vld [vmem:[%s1037 + $0x214] sm:$0xf]
        %v1249 = vld [vmem:[%s1037 + $0x218] sm:$0xf]
        %v1250 = vld [vmem:[%s1037 + $0x21c] sm:$0xf]
        %v1251 = vld [vmem:[%s1037 + $0x220] sm:$0xf]
        %v1252 = vld [vmem:[%s1037 + $0x224] sm:$0xf]
        %v1253 = vld [vmem:[%s1037 + $0x228] sm:$0xf]
        %v1254 = vld [vmem:[%s1037 + $0x22c] sm:$0xf]
        %v1255 = vld [vmem:[%s1037 + $0x230] sm:$0xf]
        %v1256 = vld [vmem:[%s1037 + $0x234] sm:$0xf]
        %v1257 = vld [vmem:[%s1037 + $0x238] sm:$0xf]
        %v1258 = vld [vmem:[%s1037 + $0x23c] sm:$0xf]
        %v1259 = vld [vmem:[%s1037 + $0x240] sm:$0xf]
        %v1260 = vld [vmem:[%s1037 + $0x244] sm:$0xf]
        %v1261 = vld [vmem:[%s1037 + $0x248] sm:$0xf]
        %v1262 = vld [vmem:[%s1037 + $0x24c] sm:$0xf]
        %v1263 = vld [vmem:[%s1037 + $0x250] sm:$0xf]
        %v1264 = vld [vmem:[%s1037 + $0x254] sm:$0xf]
        %v1265 = vld [vmem:[%s1037 + $0x258] sm:$0xf]
        %v1266 = vld [vmem:[%s1037 + $0x25c] sm:$0xf]
        %v1267 = vld [vmem:[%s1037 + $0x260] sm:$0xf]
        %v1268 = vld [vmem:[%s1037 + $0x264] sm:$0xf]
        %v1269 = vld [vmem:[%s1037 + $0x268] sm:$0xf]
        %v1270 = vld [vmem:[%s1037 + $0x26c] sm:$0xf]
        %v1271 = vld [vmem:[%s1037 + $0x270] sm:$0xf]
        %v1272 = vld [vmem:[%s1037 + $0x274] sm:$0xf]
        %v1273 = vld [vmem:[%s1037 + $0x278] sm:$0xf]
        %v1274 = vld [vmem:[%s1037 + $0x27c] sm:$0xf]
        %v1275 = vld [vmem:[%s1037 + $0x280] sm:$0xf]
        %v1276 = vld [vmem:[%s1037 + $0x284] sm:$0xf]
        %v1277 = vld [vmem:[%s1037 + $0x288] sm:$0xf]
        %v1278 = vld [vmem:[%s1037 + $0x28c] sm:$0xf]
        %v1279 = vld [vmem:[%s1037 + $0x290] sm:$0xf]
        %v1280 = vld [vmem:[%s1037 + $0x294] sm:$0xf]
        %v1281 = vld [vmem:[%s1037 + $0x298] sm:$0xf]
        %v1282 = vld [vmem:[%s1037 + $0x29c] sm:$0xf]
        %v1283 = vld [vmem:[%s1037 + $0x2a0] sm:$0xf]
        %v1284 = vld [vmem:[%s1037 + $0x2a4] sm:$0xf]
        %v1285 = vld [vmem:[%s1037 + $0x2a8] sm:$0xf]
        %v1286 = vld [vmem:[%s1037 + $0x2ac] sm:$0xf]
        %v1287 = vld [vmem:[%s1037 + $0x2b0] sm:$0xf]
        %v1288 = vld [vmem:[%s1037 + $0x2b4] sm:$0xf]
        %v1289 = vld [vmem:[%s1037 + $0x2b8] sm:$0xf]
        %v1290 = vld [vmem:[%s1037 + $0x2bc] sm:$0xf]
        %v1291 = vld [vmem:[%s1037 + $0x2c0] sm:$0xf]
        %v1292 = vld [vmem:[%s1037 + $0x2c4] sm:$0xf]
        %v1293 = vld [vmem:[%s1037 + $0x2c8] sm:$0xf]
        %v1294 = vld [vmem:[%s1037 + $0x2cc] sm:$0xf]
        %v1295 = vld [vmem:[%s1037 + $0x2d0] sm:$0xf]
        %v1296 = vld [vmem:[%s1037 + $0x2d4] sm:$0xf]
        %v1297 = vld [vmem:[%s1037 + $0x2d8] sm:$0xf]
        %v1298 = vld [vmem:[%s1037 + $0x2dc] sm:$0xf]
        %v1299 = vld [vmem:[%s1037 + $0x2e0] sm:$0xf]
        %v1300 = vld [vmem:[%s1037 + $0x2e4] sm:$0xf]
        %v1301 = vld [vmem:[%s1037 + $0x2e8] sm:$0xf]
        %v1302 = vld [vmem:[%s1037 + $0x2ec] sm:$0xf]
        %v1303 = vld [vmem:[%s1037 + $0x2f0] sm:$0xf]
        %v1304 = vld [vmem:[%s1037 + $0x2f4] sm:$0xf]
        %v1305 = vld [vmem:[%s1037 + $0x2f8] sm:$0xf]
        %v1306 = vld [vmem:[%s1037 + $0x2fc] sm:$0xf]
        %v1307 = vld [vmem:[%s1037 + $0x300] sm:$0xf]
        %v1308 = vld [vmem:[%s1037 + $0x304] sm:$0xf]
        %v1309 = vld [vmem:[%s1037 + $0x308] sm:$0xf]
        %v1310 = vld [vmem:[%s1037 + $0x30c] sm:$0xf]
        %v1311 = vld [vmem:[%s1037 + $0x310] sm:$0xf]
        %v1312 = vld [vmem:[%s1037 + $0x314] sm:$0xf]
        %v1313 = vld [vmem:[%s1037 + $0x318] sm:$0xf]
        %v1314 = vld [vmem:[%s1037 + $0x31c] sm:$0xf]
        %v1315 = vld [vmem:[%s1037 + $0x320] sm:$0xf]
        %v1316 = vld [vmem:[%s1037 + $0x324] sm:$0xf]
        %v1317 = vld [vmem:[%s1037 + $0x328] sm:$0xf]
        %v1318 = vld [vmem:[%s1037 + $0x32c] sm:$0xf]
        %v1319 = vld [vmem:[%s1037 + $0x330] sm:$0xf]
        %v1320 = vld [vmem:[%s1037 + $0x334] sm:$0xf]
        %v1321 = vld [vmem:[%s1037 + $0x338] sm:$0xf]
        %v1322 = vld [vmem:[%s1037 + $0x33c] sm:$0xf]
        %v1323 = vld [vmem:[%s1037 + $0x340] sm:$0xf]
        %v1324 = vld [vmem:[%s1037 + $0x344] sm:$0xf]
        %v1325 = vld [vmem:[%s1037 + $0x348] sm:$0xf]
        %v1326 = vld [vmem:[%s1037 + $0x34c] sm:$0xf]
        %v1327 = vld [vmem:[%s1037 + $0x350] sm:$0xf]
        %v1328 = vld [vmem:[%s1037 + $0x354] sm:$0xf]
        %v1329 = vld [vmem:[%s1037 + $0x358] sm:$0xf]
        %v1330 = vld [vmem:[%s1037 + $0x35c] sm:$0xf]
        %v1331 = vld [vmem:[%s1037 + $0x360] sm:$0xf]
        %v1332 = vld [vmem:[%s1037 + $0x364] sm:$0xf]
        %v1333 = vld [vmem:[%s1037 + $0x368] sm:$0xf]
        %v1334 = vld [vmem:[%s1037 + $0x36c] sm:$0xf]
        %v1335 = vld [vmem:[%s1037 + $0x370] sm:$0xf]
        %v1336 = vld [vmem:[%s1037 + $0x374] sm:$0xf]
        %v1337 = vld [vmem:[%s1037 + $0x378] sm:$0xf]
        %v1338 = vld [vmem:[%s1037 + $0x37c] sm:$0xf]
        %v1339 = vld [vmem:[%s1037 + $0x380] sm:$0xf]
        %v1340 = vld [vmem:[%s1037 + $0x384] sm:$0xf]
        %v1341 = vld [vmem:[%s1037 + $0x388] sm:$0xf]
        %v1342 = vld [vmem:[%s1037 + $0x38c] sm:$0xf]
        %v1343 = vld [vmem:[%s1037 + $0x390] sm:$0xf]
        %v1344 = vld [vmem:[%s1037 + $0x394] sm:$0xf]
        %v1345 = vld [vmem:[%s1037 + $0x398] sm:$0xf]
        %v1346 = vld [vmem:[%s1037 + $0x39c] sm:$0xf]
        %v1347 = vld [vmem:[%s1037 + $0x3a0] sm:$0xf]
        %v1348 = vld [vmem:[%s1037 + $0x3a4] sm:$0xf]
        %v1349 = vld [vmem:[%s1037 + $0x3a8] sm:$0xf]
        %v1350 = vld [vmem:[%s1037 + $0x3ac] sm:$0xf]
        %v1351 = vld [vmem:[%s1037 + $0x3b0] sm:$0xf]
        %v1352 = vld [vmem:[%s1037 + $0x3b4] sm:$0xf]
        %v1353 = vld [vmem:[%s1037 + $0x3b8] sm:$0xf]
        %v1354 = vld [vmem:[%s1037 + $0x3bc] sm:$0xf]
        %v1355 = vld [vmem:[%s1037 + $0x3c0] sm:$0xf]
        %v1356 = vld [vmem:[%s1037 + $0x3c4] sm:$0xf]
        %v1357 = vld [vmem:[%s1037 + $0x3c8] sm:$0xf]
        %v1358 = vld [vmem:[%s1037 + $0x3cc] sm:$0xf]
        %v1359 = vld [vmem:[%s1037 + $0x3d0] sm:$0xf]
        %v1360 = vld [vmem:[%s1037 + $0x3d4] sm:$0xf]
        %v1361 = vld [vmem:[%s1037 + $0x3d8] sm:$0xf]
        %v1362 = vld [vmem:[%s1037 + $0x3dc] sm:$0xf]
        %v1363 = vld [vmem:[%s1037 + $0x3e0] sm:$0xf]
        %v1364 = vld [vmem:[%s1037 + $0x3e4] sm:$0xf]
        %v1365 = vld [vmem:[%s1037 + $0x3e8] sm:$0xf]
        %v1366 = vld [vmem:[%s1037 + $0x3ec] sm:$0xf]
        %v1367 = vld [vmem:[%s1037 + $0x3f0] sm:$0xf]
        %v1368 = vld [vmem:[%s1037 + $0x3f4] sm:$0xf]
        %v1369 = vld [vmem:[%s1037 + $0x3f8] sm:$0xf]
        %v1370 = vld [vmem:[%s1037 + $0x3fc] sm:$0xf]
        %v1371 = vld [vmem:[%s1040] sm:$0x1]
        %v1372 = vld [vmem:[%s1043] sm:$0x1]
        %v1373 = vld [vmem:[%s1046] sm:$0x1]
        %v1374 = vld [vmem:[%s1051] sm:$0xf]
        %v1375 = vld [vmem:[%s1051 + $0x4] sm:$0xf]
        %v1376 = vld [vmem:[%s1051 + $0x8] sm:$0xf]
        %v1377 = vld [vmem:[%s1051 + $0xc] sm:$0xf]
        %v1378 = vld [vmem:[%s1054] sm:$0x1]
        %v1379 = vld [vmem:[%s977] sm:$0xff]
        %v1380 = vld [vmem:[%s977 + $0x8] sm:$0xff]
        %v1381 = vld [vmem:[%s22] sm:$0xf]
        %v1382 = vld [vmem:[%s22 + $0x4] sm:$0xf]
        %v1383 = vld [vmem:[%s22 + $0x8] sm:$0xf]
        %v1384 = vld [vmem:[%s22 + $0xc] sm:$0xf]
        %v1385 = vld [vmem:[%s23] sm:$0x1]
        %v1386 = vld [vmem:[%s1] sm:$0xff]
        %v1387 = vld [vmem:[%s1 + $0x8] sm:$0xff]
        %vm1388 = vcmask 130048
        %v1389 = vsel %vm1388, %v1379, inf
        %v1390 = vsel %vm1388, %v1380, inf
        %v1391 = vmin.f32 %v1389, %v1390
        %1392 = vmin.xlane.f32.xlu0 %v1391
        %v1393 = vpop.xlane.xlu0 %1392
        %v1394 = vrot.slane %v1393, 4
        %v1395 = vmin.f32 %v1393, %v1394
        %v1396 = vrot.slane %v1395, 2
        %v1397 = vmin.f32 %v1395, %v1396
        %v1398 = vrot.slane %v1397, 1
        %v1399 = vmin.f32 %v1397, %v1398
        %s1400 = vtos %v1399
        %v1401 = vsel %vm1388, %v1379, -inf
        %v1402 = vsel %vm1388, %v1380, -inf
        %v1403 = vmax.f32 %v1401, %v1402
        %1404 = vmax.xlane.f32.xlu0 %v1403
        %v1405 = vpop.xlane.xlu0 %1404
        %v1406 = vrot.slane %v1405, 4
        %v1407 = vmax.f32 %v1405, %v1406
        %v1408 = vrot.slane %v1407, 2
        %v1409 = vmax.f32 %v1407, %v1408
        %v1410 = vrot.slane %v1409, 1
        %v1411 = vmax.f32 %v1409, %v1410
        %s1412 = vtos %v1411
        %v1413 = vstv %s1400
        %v1414 = vsub.f32 %v1379, %v1413
        %v1415 = vsub.f32 %v1380, %v1413
        %s1416 = ssub.f32 %s1412, %s1400
        %v1417 = vstv %s1416
        %v1418 = vrcp.pop %v1417
        %v1419 = vmul.f32 %v1414, %v1418
        %v1420 = vmul.f32 %v1415, %v1418
        %v1421 = vmul.f32 %v1419, 2.0
        %v1422 = vmul.f32 %v1420, 2.0
        %v1423 = vsub.f32 %v1421, 1.0
        %v1424 = vsub.f32 %v1422, 1.0
        %v1425 = vpack.c.bf16 %v1424, %v1423
        %v1427 = vlaneseq
        %v1428 = vshrl.u32 %v1427, 7
        %v1429 = vsub.s32 0, %v1428
        %v1430 = vrot.slane %v1058, %v1429
        %v1434 = vunpack.c.l.b16 %v1056
        %v1435 = vunpack.c.l.b16 %v1057
        %v1436 = vpack.c.b16 %v1435, %v1434
        %v1439 = vsel %vm1388, %v1425, 0
        %1441 = vmatprep.subr.bf16.mxu0 0
        %1442 = vmatpush1.bf16.msra.mxu0 %v1436
        %1443 = vmatprep.subr.bf16.mxu0 0
        %1444 = vmatpush1.bf16.msra.mxu0 0
        %1445 = vmatprep.subr.bf16.mxu0 0
        %1446 = vmatpush1.bf16.msra.mxu0 0
        %1447 = vmatprep.subr.bf16.mxu0 0
        %1448 = vmatpush1.bf16.msra.mxu0 0
        %1449 = vmatprep.subr.bf16.mxu0 0
        %1450 = vmatpush1.bf16.msra.mxu0 0
        %1451 = vmatprep.subr.bf16.mxu0 0
        %1452 = vmatpush1.bf16.msra.mxu0 0
        %1453 = vmatprep.subr.bf16.mxu0 0
        %1454 = vmatpush1.bf16.msra.mxu0 0
        %1455 = vmatprep.subr.bf16.mxu0 0
        %1456 = vmatpush1.bf16.msra.mxu0 0
        %1457 = vmatprep.subr.bf16.mxu0 0
        %1458 = vmatpush1.bf16.msra.mxu0 0
        %1459 = vmatprep.subr.bf16.mxu0 0
        %1460 = vmatpush1.bf16.msra.mxu0 0
        %1461 = vmatprep.subr.bf16.mxu0 0
        %1462 = vmatpush1.bf16.msra.mxu0 0
        %1463 = vmatprep.subr.bf16.mxu0 0
        %1464 = vmatpush1.bf16.msra.mxu0 0
        %1465 = vmatprep.subr.bf16.mxu0 0
        %1466 = vmatpush1.bf16.msra.mxu0 0
        %1467 = vmatprep.subr.bf16.mxu0 0
        %1468 = vmatpush1.bf16.msra.mxu0 0
        %1469 = vmatprep.subr.bf16.mxu0 0
        %1470 = vmatpush1.bf16.msra.mxu0 0
        %1471 = vmatprep.subr.bf16.mxu0 0
        %1472 = vmatpush1.bf16.msra.mxu0 0
        %1473 = vmatprep.mubr.bf16.mxu0 0
        %1474 = vmatmul.mubr.bf16.gmra.mrb[0].mxu0 %v1439
        %v1475 = vpop.f32.mrb[0].mxu0
        %v1476 = vadd.f32 %v1430, %v1475
        %v1477 = vpop.f32.mrb[0].mxu0
        %v1478 = vpop.f32.mrb[0].mxu0
        %v1479 = vadd.f32 %v1430, %v1478
        %v1480 = vpop.f32.mrb[0].mxu0
        %1481 = vdwg.mxu0
        %v1482 = vpack.c.bf16 %v1479, %v1476
        %v1484 = vlaneseq
        %v1485 = vshrl.u32 %v1484, 7
        %v1486 = vsub.s32 0, %v1485
        %v1487 = vrot.slane %v1063, %v1486
        %v1493 = vunpack.c.l.b16 %v1059
        %v1494 = vunpack.c.l.b16 %v1060
        %v1495 = vunpack.c.l.b16 %v1061
        %v1496 = vunpack.c.l.b16 %v1062
        %v1497 = vpack.c.b16 %v1494, %v1493
        %v1498 = vpack.c.b16 %v1496, %v1495
        %vm1501 = vcmask 261120
        %v1503 = vsel %vm1501, %v1482, 0
        %1505 = vmatprep.subr.bf16.mxu0 0
        %1506 = vmatpush1.bf16.msra.mxu0 %v1497
        %1507 = vmatprep.subr.bf16.mxu0 0
        %1508 = vmatpush1.bf16.msra.mxu0 %v1498
        %1509 = vmatprep.subr.bf16.mxu0 0
        %1510 = vmatpush1.bf16.msra.mxu0 0
        %1511 = vmatprep.subr.bf16.mxu0 0
        %1512 = vmatpush1.bf16.msra.mxu0 0
        %1513 = vmatprep.subr.bf16.mxu0 0
        %1514 = vmatpush1.bf16.msra.mxu0 0
        %1515 = vmatprep.subr.bf16.mxu0 0
        %1516 = vmatpush1.bf16.msra.mxu0 0
        %1517 = vmatprep.subr.bf16.mxu0 0
        %1518 = vmatpush1.bf16.msra.mxu0 0
        %1519 = vmatprep.subr.bf16.mxu0 0
        %1520 = vmatpush1.bf16.msra.mxu0 0
        %1521 = vmatprep.subr.bf16.mxu0 0
        %1522 = vmatpush1.bf16.msra.mxu0 0
        %1523 = vmatprep.subr.bf16.mxu0 0
        %1524 = vmatpush1.bf16.msra.mxu0 0
        %1525 = vmatprep.subr.bf16.mxu0 0
        %1526 = vmatpush1.bf16.msra.mxu0 0
        %1527 = vmatprep.subr.bf16.mxu0 0
        %1528 = vmatpush1.bf16.msra.mxu0 0
        %1529 = vmatprep.subr.bf16.mxu0 0
        %1530 = vmatpush1.bf16.msra.mxu0 0
        %1531 = vmatprep.subr.bf16.mxu0 0
        %1532 = vmatpush1.bf16.msra.mxu0 0
        %1533 = vmatprep.subr.bf16.mxu0 0
        %1534 = vmatpush1.bf16.msra.mxu0 0
        %1535 = vmatprep.subr.bf16.mxu0 0
        %1536 = vmatpush1.bf16.msra.mxu0 0
        %1537 = vmatprep.mubr.bf16.mxu0 0
        %1538 = vmatmul.mubr.bf16.gmra.mrb[0].mxu0 %v1503
        %v1539 = vpop.f32.mrb[0].mxu0
        %v1540 = vadd.f32 %v1487, %v1539
        %v1541 = vpop.f32.mrb[0].mxu0
        %v1542 = vpop.f32.mrb[0].mxu0
        %v1543 = vadd.f32 %v1487, %v1542
        %v1544 = vpop.f32.mrb[0].mxu0
        %1545 = vdwg.mxu0
        %v1546 = vmul.f32 %v1540, 0.35355338
        %v1547 = vmul.f32 %v1543, 0.35355338
        %v1549 = vlaneseq
        %v1550 = vshrl.u32 %v1549, 7
        %v1551 = vsub.s32 0, %v1550
        %v1552 = vrot.slane %v1068, %v1551
        %v1558 = vunpack.c.l.b16 %v1064
        %v1559 = vunpack.c.l.b16 %v1065
        %v1560 = vunpack.c.l.b16 %v1066
        %v1561 = vunpack.c.l.b16 %v1067
        %v1562 = vpack.c.b16 %v1559, %v1558
        %v1563 = vpack.c.b16 %v1561, %v1560
        %1566 = vmatprep.subr.bf16.mxu0 0
        %1567 = vmatpush1.bf16.msra.mxu0 %v1562
        %1568 = vmatprep.subr.bf16.mxu0 0
        %1569 = vmatpush1.bf16.msra.mxu0 %v1563
        %1570 = vmatprep.subr.bf16.mxu0 0
        %1571 = vmatpush1.bf16.msra.mxu0 0
        %1572 = vmatprep.subr.bf16.mxu0 0
        %1573 = vmatpush1.bf16.msra.mxu0 0
        %1574 = vmatprep.subr.bf16.mxu0 0
        %1575 = vmatpush1.bf16.msra.mxu0 0
        %1576 = vmatprep.subr.bf16.mxu0 0
        %1577 = vmatpush1.bf16.msra.mxu0 0
        %1578 = vmatprep.subr.bf16.mxu0 0
        %1579 = vmatpush1.bf16.msra.mxu0 0
        %1580 = vmatprep.subr.bf16.mxu0 0
        %1581 = vmatpush1.bf16.msra.mxu0 0
        %1582 = vmatprep.subr.bf16.mxu0 0
        %1583 = vmatpush1.bf16.msra.mxu0 0
        %1584 = vmatprep.subr.bf16.mxu0 0
        %1585 = vmatpush1.bf16.msra.mxu0 0
        %1586 = vmatprep.subr.bf16.mxu0 0
        %1587 = vmatpush1.bf16.msra.mxu0 0
        %1588 = vmatprep.subr.bf16.mxu0 0
        %1589 = vmatpush1.bf16.msra.mxu0 0
        %1590 = vmatprep.subr.bf16.mxu0 0
        %1591 = vmatpush1.bf16.msra.mxu0 0
        %1592 = vmatprep.subr.bf16.mxu0 0
        %1593 = vmatpush1.bf16.msra.mxu0 0
        %1594 = vmatprep.subr.bf16.mxu0 0
        %1595 = vmatpush1.bf16.msra.mxu0 0
        %1596 = vmatprep.subr.bf16.mxu0 0
        %1597 = vmatpush1.bf16.msra.mxu0 0
        %1598 = vmatprep.mubr.bf16.mxu0 0
        %1599 = vmatmul.mubr.bf16.gmra.mrb[0].mxu0 %v1503
        %v1600 = vpop.f32.mrb[0].mxu0
        %v1601 = vadd.f32 %v1552, %v1600
        %v1602 = vpop.f32.mrb[0].mxu0
        %v1603 = vpop.f32.mrb[0].mxu0
        %v1604 = vadd.f32 %v1552, %v1603
        %v1605 = vpop.f32.mrb[0].mxu0
        %1606 = vdwg.mxu0
        %v1608 = vlaneseq
        %v1609 = vshrl.u32 %v1608, 7
        %v1610 = vsub.s32 0, %v1609
        %v1611 = vrot.slane %v1073, %v1610
        %v1617 = vunpack.c.l.b16 %v1069
        %v1618 = vunpack.c.l.b16 %v1070
        %v1619 = vunpack.c.l.b16 %v1071
        %v1620 = vunpack.c.l.b16 %v1072
        %v1621 = vpack.c.b16 %v1618, %v1617
        %v1622 = vpack.c.b16 %v1620, %v1619
        %1625 = vmatprep.subr.bf16.mxu0 0
        %1626 = vmatpush1.bf16.msra.mxu0 %v1621
        %1627 = vmatprep.subr.bf16.mxu0 0
        %1628 = vmatpush1.bf16.msra.mxu0 %v1622
        %1629 = vmatprep.subr.bf16.mxu0 0
        %1630 = vmatpush1.bf16.msra.mxu0 0
        %1631 = vmatprep.subr.bf16.mxu0 0
        %1632 = vmatpush1.bf16.msra.mxu0 0
        %1633 = vmatprep.subr.bf16.mxu0 0
        %1634 = vmatpush1.bf16.msra.mxu0 0
        %1635 = vmatprep.subr.bf16.mxu0 0
        %1636 = vmatpush1.bf16.msra.mxu0 0
        %1637 = vmatprep.subr.bf16.mxu0 0
        %1638 = vmatpush1.bf16.msra.mxu0 0
        %1639 = vmatprep.subr.bf16.mxu0 0
        %1640 = vmatpush1.bf16.msra.mxu0 0
        %1641 = vmatprep.subr.bf16.mxu0 0
        %1642 = vmatpush1.bf16.msra.mxu0 0
        %1643 = vmatprep.subr.bf16.mxu0 0
        %1644 = vmatpush1.bf16.msra.mxu0 0
        %1645 = vmatprep.subr.bf16.mxu0 0
        %1646 = vmatpush1.bf16.msra.mxu0 0
        %1647 = vmatprep.subr.bf16.mxu0 0
        %1648 = vmatpush1.bf16.msra.mxu0 0
        %1649 = vmatprep.subr.bf16.mxu0 0
        %1650 = vmatpush1.bf16.msra.mxu0 0
        %1651 = vmatprep.subr.bf16.mxu0 0
        %1652 = vmatpush1.bf16.msra.mxu0 0
        %1653 = vmatprep.subr.bf16.mxu0 0
        %1654 = vmatpush1.bf16.msra.mxu0 0
        %1655 = vmatprep.subr.bf16.mxu0 0
        %1656 = vmatpush1.bf16.msra.mxu0 0
        %1657 = vmatprep.mubr.bf16.mxu0 0
        %1658 = vmatmul.mubr.bf16.gmra.mrb[0].mxu0 %v1503
        %v1659 = vpop.f32.mrb[0].mxu0
        %v1660 = vadd.f32 %v1611, %v1659
        %v1661 = vpop.f32.mrb[0].mxu0
        %v1662 = vpop.f32.mrb[0].mxu0
        %v1663 = vadd.f32 %v1611, %v1662
        %v1664 = vpop.f32.mrb[0].mxu0
        %1665 = vdwg.mxu0
        %v1666 = vpack.c.bf16 %v1604, %v1601
        %v1667 = vlaneseq
        %v1668 = vand.u32 %v1667, 127
        %vm1669 = vcmp.ge.s32.totalorder %v1668, 0
        %vm1670 = vcmp.lt.s32.totalorder %v1668, 8
        %vm1671 = vmand %vm1669, %vm1670
        %v1672 = vsel %vm1671, 1, 0
        %v1673 = vcvt.s32.f32 %v1672
        %v1674 = vmul.f32 %v1546, %v1673
        %v1675 = vmul.f32 %v1547, %v1673
        %v1676 = vpack.c.bf16 %v1675, %v1674
        %v1678 = vsel %vm1501, %v1676, 0
        %v1681 = vsel %vm1501, %v1666, 0
        %1683 = vmatprep.subr.bf16.mxu0 0
        %1684 = vmatpush1.bf16.xpose.msra.mxu0 %v1681
        %1685 = vmatprep.subr.bf16.mxu0 0
        %1686 = vmatpush1.bf16.xpose.msra.mxu0 0
        %1687 = vmatprep.subr.bf16.mxu0 0
        %1688 = vmatpush1.bf16.xpose.msra.mxu0 0
        %1689 = vmatprep.subr.bf16.mxu0 0
        %1690 = vmatpush1.bf16.xpose.msra.mxu0 0
        %1691 = vmatprep.subr.bf16.mxu0 0
        %1692 = vmatpush1.bf16.xpose.msra.mxu0 0
        %1693 = vmatprep.subr.bf16.mxu0 0
        %1694 = vmatpush1.bf16.xpose.msra.mxu0 0
        %1695 = vmatprep.subr.bf16.mxu0 0
        %1696 = vmatpush1.bf16.xpose.msra.mxu0 0
        %1697 = vmatprep.subr.bf16.mxu0 0
        %1698 = vmatpush1.bf16.xpose.msra.mxu0 0
        %1699 = vmatprep.subr.bf16.mxu0 0
        %1700 = vmatpush1.bf16.xpose.msra.mxu0 0
        %1701 = vmatprep.subr.bf16.mxu0 0
        %1702 = vmatpush1.bf16.xpose.msra.mxu0 0
        %1703 = vmatprep.subr.bf16.mxu0 0
        %1704 = vmatpush1.bf16.xpose.msra.mxu0 0
        %1705 = vmatprep.subr.bf16.mxu0 0
        %1706 = vmatpush1.bf16.xpose.msra.mxu0 0
        %1707 = vmatprep.subr.bf16.mxu0 0
        %1708 = vmatpush1.bf16.xpose.msra.mxu0 0
        %1709 = vmatprep.subr.bf16.mxu0 0
        %1710 = vmatpush1.bf16.xpose.msra.mxu0 0
        %1711 = vmatprep.subr.bf16.mxu0 0
        %1712 = vmatpush1.bf16.xpose.msra.mxu0 0
        %1713 = vmatprep.subr.bf16.mxu0 0
        %1714 = vmatpush1.bf16.xpose.msra.mxu0 0
        %1715 = vmatprep.mubr.bf16.mxu0 0
        %1716 = vmatmul.mubr.bf16.gmra.mrb[0].mxu0 %v1678
        %v1717 = vpop.f32.mrb[0].mxu0
        %v1718 = vadd.f32 %v1386, %v1717
        %v1719 = vpop.f32.mrb[0].mxu0
        %v1720 = vpop.f32.mrb[0].mxu0
        %v1721 = vadd.f32 %v1387, %v1720
        %v1722 = vpop.f32.mrb[0].mxu0
        %1723 = vdwg.mxu0
        %v1724 = vsel %vm1388, %v1718, -inf
        %1725 = vmax.xlane.f32.xlu0 %v1724
        %v1726 = vpop.xlane.xlu0 %1725
        %v1727 = vsel %vm1388, %v1721, -inf
        %1728 = vmax.xlane.f32.xlu0 %v1727
        %v1729 = vpop.xlane.xlu0 %1728
        %v1730 = vsub.f32 %v1718, %v1726
        %v1731 = vsub.f32 %v1721, %v1729
        %v1732 = vmul.f32 %v1730, 1.442695
        %v1733 = vpow.pop %v1732
        %v1734 = vmul.f32 %v1731, 1.442695
        %v1735 = vpow.pop %v1734
        %v1736 = vsel %vm1388, %v1733, 0.0
        %1737 = vadd.xlane.f32.xlu0 %v1736
        %v1738 = vpop.xlane.xlu0 %1737
        %v1739 = vsel %vm1388, %v1735, 0.0
        %1740 = vadd.xlane.f32.xlu0 %v1739
        %v1741 = vpop.xlane.xlu0 %1740
        %v1742 = vrcp.pop %v1738
        %v1743 = vrcp.pop %v1741
        %v1744 = vmul.f32 %v1733, %v1742
        %v1745 = vmul.f32 %v1735, %v1743
        %v1746 = vpack.c.bf16 %v1745, %v1744
        %v1747 = vmul.f32 %v1660, %v1673
        %v1748 = vmul.f32 %v1663, %v1673
        %v1749 = vpack.c.bf16 %v1748, %v1747
        %vm1750 = vcmp.ge.s32.totalorder %v1668, 8
        %vm1751 = vcmp.lt.s32.totalorder %v1668, 16
        %vm1752 = vmand %vm1750, %vm1751
        %v1753 = vsel %vm1752, 1, 0
        %v1754 = vcvt.s32.f32 %v1753
        %v1755 = vmul.f32 %v1546, %v1754
        %v1756 = vmul.f32 %v1547, %v1754
        %v1757 = vpack.c.bf16 %v1756, %v1755
        %v1759 = vsel %vm1501, %v1757, 0
        %1761 = vmatprep.subr.bf16.mxu0 0
        %1762 = vmatpush1.bf16.xpose.msra.mxu0 %v1681
        %1763 = vmatprep.subr.bf16.mxu0 0
        %1764 = vmatpush1.bf16.xpose.msra.mxu0 0
        %1765 = vmatprep.subr.bf16.mxu0 0
        %1766 = vmatpush1.bf16.xpose.msra.mxu0 0
        %1767 = vmatprep.subr.bf16.mxu0 0
        %1768 = vmatpush1.bf16.xpose.msra.mxu0 0
        %1769 = vmatprep.subr.bf16.mxu0 0
        %1770 = vmatpush1.bf16.xpose.msra.mxu0 0
        %1771 = vmatprep.subr.bf16.mxu0 0
        %1772 = vmatpush1.bf16.xpose.msra.mxu0 0
        %1773 = vmatprep.subr.bf16.mxu0 0
        %1774 = vmatpush1.bf16.xpose.msra.mxu0 0
        %1775 = vmatprep.subr.bf16.mxu0 0
        %1776 = vmatpush1.bf16.xpose.msra.mxu0 0
        %1777 = vmatprep.subr.bf16.mxu0 0
        %1778 = vmatpush1.bf16.xpose.msra.mxu0 0
        %1779 = vmatprep.subr.bf16.mxu0 0
        %1780 = vmatpush1.bf16.xpose.msra.mxu0 0
        %1781 = vmatprep.subr.bf16.mxu0 0
        %1782 = vmatpush1.bf16.xpose.msra.mxu0 0
        %1783 = vmatprep.subr.bf16.mxu0 0
        %1784 = vmatpush1.bf16.xpose.msra.mxu0 0
        %1785 = vmatprep.subr.bf16.mxu0 0
        %1786 = vmatpush1.bf16.xpose.msra.mxu0 0
        %1787 = vmatprep.subr.bf16.mxu0 0
        %1788 = vmatpush1.bf16.xpose.msra.mxu0 0
        %1789 = vmatprep.subr.bf16.mxu0 0
        %1790 = vmatpush1.bf16.xpose.msra.mxu0 0
        %1791 = vmatprep.subr.bf16.mxu0 0
        %1792 = vmatpush1.bf16.xpose.msra.mxu0 0
        %1793 = vmatprep.mubr.bf16.mxu0 0
        %1794 = vmatmul.mubr.bf16.gmra.mrb[0].mxu0 %v1759
        %v1795 = vpop.f32.mrb[0].mxu0
        %v1796 = vadd.f32 %v1386, %v1795
        %v1797 = vpop.f32.mrb[0].mxu0
        %v1798 = vpop.f32.mrb[0].mxu0
        %v1799 = vadd.f32 %v1387, %v1798
        %v1800 = vpop.f32.mrb[0].mxu0
        %1801 = vdwg.mxu0
        %v1802 = vsel %vm1388, %v1796, -inf
        %1803 = vmax.xlane.f32.xlu0 %v1802
        %v1804 = vpop.xlane.xlu0 %1803
        %v1805 = vsel %vm1388, %v1799, -inf
        %1806 = vmax.xlane.f32.xlu0 %v1805
        %v1807 = vpop.xlane.xlu0 %1806
        %v1808 = vsub.f32 %v1796, %v1804
        %v1809 = vsub.f32 %v1799, %v1807
        %v1810 = vmul.f32 %v1808, 1.442695
        %v1811 = vpow.pop %v1810
        %v1812 = vmul.f32 %v1809, 1.442695
        %v1813 = vpow.pop %v1812
        %v1814 = vsel %vm1388, %v1811, 0.0
        %1815 = vadd.xlane.f32.xlu0 %v1814
        %v1816 = vpop.xlane.xlu0 %1815
        %v1817 = vsel %vm1388, %v1813, 0.0
        %1818 = vadd.xlane.f32.xlu0 %v1817
        %v1819 = vpop.xlane.xlu0 %1818
        %v1820 = vrcp.pop %v1816
        %v1821 = vrcp.pop %v1819
        %v1822 = vmul.f32 %v1811, %v1820
        %v1823 = vmul.f32 %v1813, %v1821
        %v1824 = vpack.c.bf16 %v1823, %v1822
        %v1825 = vmul.f32 %v1660, %v1754
        %v1826 = vmul.f32 %v1663, %v1754
        %v1827 = vpack.c.bf16 %v1826, %v1825
        %v1829 = vsel %vm1388, %v1824, 0
        %1831 = vmatprep.subr.bf16.mxu0 0
        %1832 = vmatpush1.bf16.msra.mxu0 %v1827
        %1833 = vmatprep.subr.bf16.mxu0 0
        %1834 = vmatpush1.bf16.msra.mxu0 0
        %1835 = vmatprep.subr.bf16.mxu0 0
        %1836 = vmatpush1.bf16.msra.mxu0 0
        %1837 = vmatprep.subr.bf16.mxu0 0
        %1838 = vmatpush1.bf16.msra.mxu0 0
        %1839 = vmatprep.subr.bf16.mxu0 0
        %1840 = vmatpush1.bf16.msra.mxu0 0
        %1841 = vmatprep.subr.bf16.mxu0 0
        %1842 = vmatpush1.bf16.msra.mxu0 0
        %1843 = vmatprep.subr.bf16.mxu0 0
        %1844 = vmatpush1.bf16.msra.mxu0 0
        %1845 = vmatprep.subr.bf16.mxu0 0
        %1846 = vmatpush1.bf16.msra.mxu0 0
        %1847 = vmatprep.subr.bf16.mxu0 0
        %1848 = vmatpush1.bf16.msra.mxu0 0
        %1849 = vmatprep.subr.bf16.mxu0 0
        %1850 = vmatpush1.bf16.msra.mxu0 0
        %1851 = vmatprep.subr.bf16.mxu0 0
        %1852 = vmatpush1.bf16.msra.mxu0 0
        %1853 = vmatprep.subr.bf16.mxu0 0
        %1854 = vmatpush1.bf16.msra.mxu0 0
        %1855 = vmatprep.subr.bf16.mxu0 0
        %1856 = vmatpush1.bf16.msra.mxu0 0
        %1857 = vmatprep.subr.bf16.mxu0 0
        %1858 = vmatpush1.bf16.msra.mxu0 0
        %1859 = vmatprep.subr.bf16.mxu0 0
        %1860 = vmatpush1.bf16.msra.mxu0 0
        %1861 = vmatprep.subr.bf16.mxu0 0
        %1862 = vmatpush1.bf16.msra.mxu0 0
        %1863 = vmatprep.mubr.bf16.mxu0 0
        %1864 = vmatmul.mubr.bf16.gmra.mrb[0].mxu0 %v1829
        %v1865 = vpop.f32.mrb[0].mxu0
        %v1866 = vadd.f32 0.0, %v1865
        %v1867 = vpop.f32.mrb[0].mxu0
        %v1868 = vpop.f32.mrb[0].mxu0
        %v1869 = vadd.f32 0.0, %v1868
        %v1870 = vpop.f32.mrb[0].mxu0
        %1871 = vdwg.mxu0
        %v1873 = vsel %vm1388, %v1746, 0
        %1875 = vmatprep.subr.bf16.mxu0 0
        %1876 = vmatpush1.bf16.msra.mxu0 %v1749
        %1877 = vmatprep.subr.bf16.mxu0 0
        %1878 = vmatpush1.bf16.msra.mxu0 0
        %1879 = vmatprep.subr.bf16.mxu0 0
        %1880 = vmatpush1.bf16.msra.mxu0 0
        %1881 = vmatprep.subr.bf16.mxu0 0
        %1882 = vmatpush1.bf16.msra.mxu0 0
        %1883 = vmatprep.subr.bf16.mxu0 0
        %1884 = vmatpush1.bf16.msra.mxu0 0
        %1885 = vmatprep.subr.bf16.mxu0 0
        %1886 = vmatpush1.bf16.msra.mxu0 0
        %1887 = vmatprep.subr.bf16.mxu0 0
        %1888 = vmatpush1.bf16.msra.mxu0 0
        %1889 = vmatprep.subr.bf16.mxu0 0
        %1890 = vmatpush1.bf16.msra.mxu0 0
        %1891 = vmatprep.subr.bf16.mxu0 0
        %1892 = vmatpush1.bf16.msra.mxu0 0
        %1893 = vmatprep.subr.bf16.mxu0 0
        %1894 = vmatpush1.bf16.msra.mxu0 0
        %1895 = vmatprep.subr.bf16.mxu0 0
        %1896 = vmatpush1.bf16.msra.mxu0 0
        %1897 = vmatprep.subr.bf16.mxu0 0
        %1898 = vmatpush1.bf16.msra.mxu0 0
        %1899 = vmatprep.subr.bf16.mxu0 0
        %1900 = vmatpush1.bf16.msra.mxu0 0
        %1901 = vmatprep.subr.bf16.mxu0 0
        %1902 = vmatpush1.bf16.msra.mxu0 0
        %1903 = vmatprep.subr.bf16.mxu0 0
        %1904 = vmatpush1.bf16.msra.mxu0 0
        %1905 = vmatprep.subr.bf16.mxu0 0
        %1906 = vmatpush1.bf16.msra.mxu0 0
        %1907 = vmatprep.mubr.bf16.mxu0 0
        %1908 = vmatmul.mubr.bf16.gmra.mrb[0].mxu0 %v1873
        %v1909 = vpop.f32.mrb[0].mxu0
        %v1910 = vadd.f32 %v1866, %v1909
        %v1911 = vpop.f32.mrb[0].mxu0
        %v1912 = vpop.f32.mrb[0].mxu0
        %v1913 = vadd.f32 %v1869, %v1912
        %v1914 = vpop.f32.mrb[0].mxu0
        %1915 = vdwg.mxu0
        %vm1916 = vcmp.ge.s32.totalorder %v1668, 16
        %vm1917 = vcmp.lt.s32.totalorder %v1668, 24
        %vm1918 = vmand %vm1916, %vm1917
        %v1919 = vsel %vm1918, 1, 0
        %v1920 = vcvt.s32.f32 %v1919
        %v1921 = vmul.f32 %v1546, %v1920
        %v1922 = vmul.f32 %v1547, %v1920
        %v1923 = vpack.c.bf16 %v1922, %v1921
        %v1925 = vsel %vm1501, %v1923, 0
        %1927 = vmatprep.subr.bf16.mxu0 0
        %1928 = vmatpush1.bf16.xpose.msra.mxu0 %v1681
        %1929 = vmatprep.subr.bf16.mxu0 0
        %1930 = vmatpush1.bf16.xpose.msra.mxu0 0
        %1931 = vmatprep.subr.bf16.mxu0 0
        %1932 = vmatpush1.bf16.xpose.msra.mxu0 0
        %1933 = vmatprep.subr.bf16.mxu0 0
        %1934 = vmatpush1.bf16.xpose.msra.mxu0 0
        %1935 = vmatprep.subr.bf16.mxu0 0
        %1936 = vmatpush1.bf16.xpose.msra.mxu0 0
        %1937 = vmatprep.subr.bf16.mxu0 0
        %1938 = vmatpush1.bf16.xpose.msra.mxu0 0
        %1939 = vmatprep.subr.bf16.mxu0 0
        %1940 = vmatpush1.bf16.xpose.msra.mxu0 0
        %1941 = vmatprep.subr.bf16.mxu0 0
        %1942 = vmatpush1.bf16.xpose.msra.mxu0 0
        %1943 = vmatprep.subr.bf16.mxu0 0
        %1944 = vmatpush1.bf16.xpose.msra.mxu0 0
        %1945 = vmatprep.subr.bf16.mxu0 0
        %1946 = vmatpush1.bf16.xpose.msra.mxu0 0
        %1947 = vmatprep.subr.bf16.mxu0 0
        %1948 = vmatpush1.bf16.xpose.msra.mxu0 0
        %1949 = vmatprep.subr.bf16.mxu0 0
        %1950 = vmatpush1.bf16.xpose.msra.mxu0 0
        %1951 = vmatprep.subr.bf16.mxu0 0
        %1952 = vmatpush1.bf16.xpose.msra.mxu0 0
        %1953 = vmatprep.subr.bf16.mxu0 0
        %1954 = vmatpush1.bf16.xpose.msra.mxu0 0
        %1955 = vmatprep.subr.bf16.mxu0 0
        %1956 = vmatpush1.bf16.xpose.msra.mxu0 0
        %1957 = vmatprep.subr.bf16.mxu0 0
        %1958 = vmatpush1.bf16.xpose.msra.mxu0 0
        %1959 = vmatprep.mubr.bf16.mxu0 0
        %1960 = vmatmul.mubr.bf16.gmra.mrb[0].mxu0 %v1925
        %v1961 = vpop.f32.mrb[0].mxu0
        %v1962 = vadd.f32 %v1386, %v1961
        %v1963 = vpop.f32.mrb[0].mxu0
        %v1964 = vpop.f32.mrb[0].mxu0
        %v1965 = vadd.f32 %v1387, %v1964
        %v1966 = vpop.f32.mrb[0].mxu0
        %1967 = vdwg.mxu0
        %v1968 = vsel %vm1388, %v1962, -inf
        %1969 = vmax.xlane.f32.xlu0 %v1968
        %v1970 = vpop.xlane.xlu0 %1969
        %v1971 = vsel %vm1388, %v1965, -inf
        %1972 = vmax.xlane.f32.xlu0 %v1971
        %v1973 = vpop.xlane.xlu0 %1972
        %v1974 = vsub.f32 %v1962, %v1970
        %v1975 = vsub.f32 %v1965, %v1973
        %v1976 = vmul.f32 %v1974, 1.442695
        %v1977 = vpow.pop %v1976
        %v1978 = vmul.f32 %v1975, 1.442695
        %v1979 = vpow.pop %v1978
        %v1980 = vsel %vm1388, %v1977, 0.0
        %1981 = vadd.xlane.f32.xlu0 %v1980
        %v1982 = vpop.xlane.xlu0 %1981
        %v1983 = vsel %vm1388, %v1979, 0.0
        %1984 = vadd.xlane.f32.xlu0 %v1983
        %v1985 = vpop.xlane.xlu0 %1984
        %v1986 = vrcp.pop %v1982
        %v1987 = vrcp.pop %v1985
        %v1988 = vmul.f32 %v1977, %v1986
        %v1989 = vmul.f32 %v1979, %v1987
        %v1990 = vpack.c.bf16 %v1989, %v1988
        %v1991 = vmul.f32 %v1660, %v1920
        %v1992 = vmul.f32 %v1663, %v1920
        %v1993 = vpack.c.bf16 %v1992, %v1991
        %v1995 = vsel %vm1388, %v1990, 0
        %1997 = vmatprep.subr.bf16.mxu0 0
        %1998 = vmatpush1.bf16.msra.mxu0 %v1993
        %1999 = vmatprep.subr.bf16.mxu0 0
        %2000 = vmatpush1.bf16.msra.mxu0 0
        %2001 = vmatprep.subr.bf16.mxu0 0
        %2002 = vmatpush1.bf16.msra.mxu0 0
        %2003 = vmatprep.subr.bf16.mxu0 0
        %2004 = vmatpush1.bf16.msra.mxu0 0
        %2005 = vmatprep.subr.bf16.mxu0 0
        %2006 = vmatpush1.bf16.msra.mxu0 0
        %2007 = vmatprep.subr.bf16.mxu0 0
        %2008 = vmatpush1.bf16.msra.mxu0 0
        %2009 = vmatprep.subr.bf16.mxu0 0
        %2010 = vmatpush1.bf16.msra.mxu0 0
        %2011 = vmatprep.subr.bf16.mxu0 0
        %2012 = vmatpush1.bf16.msra.mxu0 0
        %2013 = vmatprep.subr.bf16.mxu0 0
        %2014 = vmatpush1.bf16.msra.mxu0 0
        %2015 = vmatprep.subr.bf16.mxu0 0
        %2016 = vmatpush1.bf16.msra.mxu0 0
        %2017 = vmatprep.subr.bf16.mxu0 0
        %2018 = vmatpush1.bf16.msra.mxu0 0
        %2019 = vmatprep.subr.bf16.mxu0 0
        %2020 = vmatpush1.bf16.msra.mxu0 0
        %2021 = vmatprep.subr.bf16.mxu0 0
        %2022 = vmatpush1.bf16.msra.mxu0 0
        %2023 = vmatprep.subr.bf16.mxu0 0
        %2024 = vmatpush1.bf16.msra.mxu0 0
        %2025 = vmatprep.subr.bf16.mxu0 0
        %2026 = vmatpush1.bf16.msra.mxu0 0
        %2027 = vmatprep.subr.bf16.mxu0 0
        %2028 = vmatpush1.bf16.msra.mxu0 0
        %2029 = vmatprep.mubr.bf16.mxu0 0
        %2030 = vmatmul.mubr.bf16.gmra.mrb[0].mxu0 %v1995
        %v2031 = vpop.f32.mrb[0].mxu0
        %v2032 = vadd.f32 0.0, %v2031
        %v2033 = vpop.f32.mrb[0].mxu0
        %v2034 = vpop.f32.mrb[0].mxu0
        %v2035 = vadd.f32 0.0, %v2034
        %v2036 = vpop.f32.mrb[0].mxu0
        %2037 = vdwg.mxu0
        %v2038 = vadd.f32 %v1910, %v2032
        %v2039 = vadd.f32 %v1913, %v2035
        %vm2040 = vcmp.ge.s32.totalorder %v1668, 24
        %vm2041 = vcmp.lt.s32.totalorder %v1668, 32
        %vm2042 = vmand %vm2040, %vm2041
        %v2043 = vsel %vm2042, 1, 0
        %v2044 = vcvt.s32.f32 %v2043
        %v2045 = vmul.f32 %v1546, %v2044
        %v2046 = vmul.f32 %v1547, %v2044
        %v2047 = vpack.c.bf16 %v2046, %v2045
        %v2049 = vsel %vm1501, %v2047, 0
        %2051 = vmatprep.subr.bf16.mxu0 0
        %2052 = vmatpush1.bf16.xpose.msra.mxu0 %v1681
        %2053 = vmatprep.subr.bf16.mxu0 0
        %2054 = vmatpush1.bf16.xpose.msra.mxu0 0
        %2055 = vmatprep.subr.bf16.mxu0 0
        %2056 = vmatpush1.bf16.xpose.msra.mxu0 0
        %2057 = vmatprep.subr.bf16.mxu0 0
        %2058 = vmatpush1.bf16.xpose.msra.mxu0 0
        %2059 = vmatprep.subr.bf16.mxu0 0
        %2060 = vmatpush1.bf16.xpose.msra.mxu0 0
        %2061 = vmatprep.subr.bf16.mxu0 0
        %2062 = vmatpush1.bf16.xpose.msra.mxu0 0
        %2063 = vmatprep.subr.bf16.mxu0 0
        %2064 = vmatpush1.bf16.xpose.msra.mxu0 0
        %2065 = vmatprep.subr.bf16.mxu0 0
        %2066 = vmatpush1.bf16.xpose.msra.mxu0 0
        %2067 = vmatprep.subr.bf16.mxu0 0
        %2068 = vmatpush1.bf16.xpose.msra.mxu0 0
        %2069 = vmatprep.subr.bf16.mxu0 0
        %2070 = vmatpush1.bf16.xpose.msra.mxu0 0
        %2071 = vmatprep.subr.bf16.mxu0 0
        %2072 = vmatpush1.bf16.xpose.msra.mxu0 0
        %2073 = vmatprep.subr.bf16.mxu0 0
        %2074 = vmatpush1.bf16.xpose.msra.mxu0 0
        %2075 = vmatprep.subr.bf16.mxu0 0
        %2076 = vmatpush1.bf16.xpose.msra.mxu0 0
        %2077 = vmatprep.subr.bf16.mxu0 0
        %2078 = vmatpush1.bf16.xpose.msra.mxu0 0
        %2079 = vmatprep.subr.bf16.mxu0 0
        %2080 = vmatpush1.bf16.xpose.msra.mxu0 0
        %2081 = vmatprep.subr.bf16.mxu0 0
        %2082 = vmatpush1.bf16.xpose.msra.mxu0 0
        %2083 = vmatprep.mubr.bf16.mxu0 0
        %2084 = vmatmul.mubr.bf16.gmra.mrb[0].mxu0 %v2049
        %v2085 = vpop.f32.mrb[0].mxu0
        %v2086 = vadd.f32 %v1386, %v2085
        %v2087 = vpop.f32.mrb[0].mxu0
        %v2088 = vpop.f32.mrb[0].mxu0
        %v2089 = vadd.f32 %v1387, %v2088
        %v2090 = vpop.f32.mrb[0].mxu0
        %2091 = vdwg.mxu0
        %v2092 = vsel %vm1388, %v2086, -inf
        %2093 = vmax.xlane.f32.xlu0 %v2092
        %v2094 = vpop.xlane.xlu0 %2093
        %v2095 = vsel %vm1388, %v2089, -inf
        %2096 = vmax.xlane.f32.xlu0 %v2095
        %v2097 = vpop.xlane.xlu0 %2096
        %v2098 = vsub.f32 %v2086, %v2094
        %v2099 = vsub.f32 %v2089, %v2097
        %v2100 = vmul.f32 %v2098, 1.442695
        %v2101 = vpow.pop %v2100
        %v2102 = vmul.f32 %v2099, 1.442695
        %v2103 = vpow.pop %v2102
        %v2104 = vsel %vm1388, %v2101, 0.0
        %2105 = vadd.xlane.f32.xlu0 %v2104
        %v2106 = vpop.xlane.xlu0 %2105
        %v2107 = vsel %vm1388, %v2103, 0.0
        %2108 = vadd.xlane.f32.xlu0 %v2107
        %v2109 = vpop.xlane.xlu0 %2108
        %v2110 = vrcp.pop %v2106
        %v2111 = vrcp.pop %v2109
        %v2112 = vmul.f32 %v2101, %v2110
        %v2113 = vmul.f32 %v2103, %v2111
        %v2114 = vpack.c.bf16 %v2113, %v2112
        %v2115 = vmul.f32 %v1660, %v2044
        %v2116 = vmul.f32 %v1663, %v2044
        %v2117 = vpack.c.bf16 %v2116, %v2115
        %v2119 = vsel %vm1388, %v2114, 0
        %2121 = vmatprep.subr.bf16.mxu0 0
        %2122 = vmatpush1.bf16.msra.mxu0 %v2117
        %2123 = vmatprep.subr.bf16.mxu0 0
        %2124 = vmatpush1.bf16.msra.mxu0 0
        %2125 = vmatprep.subr.bf16.mxu0 0
        %2126 = vmatpush1.bf16.msra.mxu0 0
        %2127 = vmatprep.subr.bf16.mxu0 0
        %2128 = vmatpush1.bf16.msra.mxu0 0
        %2129 = vmatprep.subr.bf16.mxu0 0
        %2130 = vmatpush1.bf16.msra.mxu0 0
        %2131 = vmatprep.subr.bf16.mxu0 0
        %2132 = vmatpush1.bf16.msra.mxu0 0
        %2133 = vmatprep.subr.bf16.mxu0 0
        %2134 = vmatpush1.bf16.msra.mxu0 0
        %2135 = vmatprep.subr.bf16.mxu0 0
        %2136 = vmatpush1.bf16.msra.mxu0 0
        %2137 = vmatprep.subr.bf16.mxu0 0
        %2138 = vmatpush1.bf16.msra.mxu0 0
        %2139 = vmatprep.subr.bf16.mxu0 0
        %2140 = vmatpush1.bf16.msra.mxu0 0
        %2141 = vmatprep.subr.bf16.mxu0 0
        %2142 = vmatpush1.bf16.msra.mxu0 0
        %2143 = vmatprep.subr.bf16.mxu0 0
        %2144 = vmatpush1.bf16.msra.mxu0 0
        %2145 = vmatprep.subr.bf16.mxu0 0
        %2146 = vmatpush1.bf16.msra.mxu0 0
        %2147 = vmatprep.subr.bf16.mxu0 0
        %2148 = vmatpush1.bf16.msra.mxu0 0
        %2149 = vmatprep.subr.bf16.mxu0 0
        %2150 = vmatpush1.bf16.msra.mxu0 0
        %2151 = vmatprep.subr.bf16.mxu0 0
        %2152 = vmatpush1.bf16.msra.mxu0 0
        %2153 = vmatprep.mubr.bf16.mxu0 0
        %2154 = vmatmul.mubr.bf16.gmra.mrb[0].mxu0 %v2119
        %v2155 = vpop.f32.mrb[0].mxu0
        %v2156 = vadd.f32 0.0, %v2155
        %v2157 = vpop.f32.mrb[0].mxu0
        %v2158 = vpop.f32.mrb[0].mxu0
        %v2159 = vadd.f32 0.0, %v2158
        %v2160 = vpop.f32.mrb[0].mxu0
        %2161 = vdwg.mxu0
        %v2162 = vadd.f32 %v2038, %v2156
        %v2163 = vadd.f32 %v2039, %v2159
        %v2164 = vpack.c.bf16 %v2163, %v2162
        %v2166 = vlaneseq
        %v2167 = vshrl.u32 %v2166, 7
        %v2168 = vsub.s32 0, %v2167
        %v2169 = vrot.slane %v1078, %v2168
        %v2175 = vunpack.c.l.b16 %v1074
        %v2176 = vunpack.c.l.b16 %v1075
        %v2177 = vunpack.c.l.b16 %v1076
        %v2178 = vunpack.c.l.b16 %v1077
        %v2179 = vpack.c.b16 %v2176, %v2175
        %v2180 = vpack.c.b16 %v2178, %v2177
        %v2184 = vsel %vm1501, %v2164, 0
        %2186 = vmatprep.subr.bf16.mxu0 0
        %2187 = vmatpush1.bf16.msra.mxu0 %v2179
        %2188 = vmatprep.subr.bf16.mxu0 0
        %2189 = vmatpush1.bf16.msra.mxu0 %v2180
        %2190 = vmatprep.subr.bf16.mxu0 0
        %2191 = vmatpush1.bf16.msra.mxu0 0
        %2192 = vmatprep.subr.bf16.mxu0 0
        %2193 = vmatpush1.bf16.msra.mxu0 0
        %2194 = vmatprep.subr.bf16.mxu0 0
        %2195 = vmatpush1.bf16.msra.mxu0 0
        %2196 = vmatprep.subr.bf16.mxu0 0
        %2197 = vmatpush1.bf16.msra.mxu0 0
        %2198 = vmatprep.subr.bf16.mxu0 0
        %2199 = vmatpush1.bf16.msra.mxu0 0
        %2200 = vmatprep.subr.bf16.mxu0 0
        %2201 = vmatpush1.bf16.msra.mxu0 0
        %2202 = vmatprep.subr.bf16.mxu0 0
        %2203 = vmatpush1.bf16.msra.mxu0 0
        %2204 = vmatprep.subr.bf16.mxu0 0
        %2205 = vmatpush1.bf16.msra.mxu0 0
        %2206 = vmatprep.subr.bf16.mxu0 0
        %2207 = vmatpush1.bf16.msra.mxu0 0
        %2208 = vmatprep.subr.bf16.mxu0 0
        %2209 = vmatpush1.bf16.msra.mxu0 0
        %2210 = vmatprep.subr.bf16.mxu0 0
        %2211 = vmatpush1.bf16.msra.mxu0 0
        %2212 = vmatprep.subr.bf16.mxu0 0
        %2213 = vmatpush1.bf16.msra.mxu0 0
        %2214 = vmatprep.subr.bf16.mxu0 0
        %2215 = vmatpush1.bf16.msra.mxu0 0
        %2216 = vmatprep.subr.bf16.mxu0 0
        %2217 = vmatpush1.bf16.msra.mxu0 0
        %2218 = vmatprep.mubr.bf16.mxu0 0
        %2219 = vmatmul.mubr.bf16.gmra.mrb[0].mxu0 %v2184
        %v2220 = vpop.f32.mrb[0].mxu0
        %v2221 = vadd.f32 %v2169, %v2220
        %v2222 = vpop.f32.mrb[0].mxu0
        %v2223 = vpop.f32.mrb[0].mxu0
        %v2224 = vadd.f32 %v2169, %v2223
        %v2225 = vpop.f32.mrb[0].mxu0
        %2226 = vdwg.mxu0
        %v2227 = vadd.f32 %v1476, %v2221
        %v2228 = vadd.f32 %v1479, %v2224
        %v2229 = vsel %vm1501, %v2227, 0.0
        %2230 = vadd.xlane.f32.xlu0 %v2229
        %v2231 = vpop.xlane.xlu0 %2230
        %v2232 = vsel %vm1501, %v2228, 0.0
        %2233 = vadd.xlane.f32.xlu0 %v2232
        %v2234 = vpop.xlane.xlu0 %2233
        %v2235 = vrcp.pop 32.0
        %v2236 = vmul.f32 %v2231, %v2235
        %v2237 = vmul.f32 %v2234, %v2235
        %v2238 = vsub.f32 %v2227, %v2236
        %v2239 = vsub.f32 %v2228, %v2237
        %v2240 = vmul.f32 %v2238, %v2238
        %v2241 = vmul.f32 %v2239, %v2239
        %v2242 = vsel %vm1501, %v2240, 0.0
        %2243 = vadd.xlane.f32.xlu0 %v2242
        %v2244 = vpop.xlane.xlu0 %2243
        %v2245 = vsel %vm1501, %v2241, 0.0
        %2246 = vadd.xlane.f32.xlu0 %v2245
        %v2247 = vpop.xlane.xlu0 %2246
        %v2248 = vmul.f32 %v2244, %v2235
        %v2249 = vmul.f32 %v2247, %v2235
        %v2250 = vadd.f32 %v2248, 1e-05
        %v2251 = vadd.f32 %v2249, 1e-05
        %v2252 = vrsqrt.pop %v2250
        %v2253 = vrsqrt.pop %v2251
        %v2254 = vmul.f32 %v2238, %v2252
        %v2255 = vmul.f32 %v2239, %v2253
        %v2257 = vlaneseq
        %v2258 = vshrl.u32 %v2257, 7
        %v2259 = vsub.s32 0, %v2258
        %v2260 = vrot.slane %v1079, %v2259
        %v2262 = vmul.f32 %v2254, %v2260
        %v2263 = vmul.f32 %v2255, %v2260
        %v2265 = vlaneseq
        %v2266 = vshrl.u32 %v2265, 7
        %v2267 = vsub.s32 0, %v2266
        %v2268 = vrot.slane %v1080, %v2267
        %v2270 = vadd.f32 %v2262, %v2268
        %v2271 = vadd.f32 %v2263, %v2268
        %v2272 = vpack.c.bf16 %v2271, %v2270
        %v2275 = vlaneseq
        %v2276 = vshrl.u32 %v2275, 7
        %v2277 = vsub.s32 0, %v2276
        %v2278 = vrot.slane %v1113, %v2277
        %v2279 = vlaneseq
        %v2280 = vshrl.u32 %v2279, 7
        %v2281 = vsub.s32 1, %v2280
        %v2282 = vrot.slane %v1113, %v2281
        %v2283 = vlaneseq
        %v2284 = vshrl.u32 %v2283, 7
        %v2285 = vsub.s32 2, %v2284
        %v2286 = vrot.slane %v1113, %v2285
        %v2287 = vlaneseq
        %v2288 = vshrl.u32 %v2287, 7
        %v2289 = vsub.s32 3, %v2288
        %v2290 = vrot.slane %v1113, %v2289
        %v2291 = vlaneseq
        %v2292 = vshrl.u32 %v2291, 7
        %v2293 = vsub.s32 4, %v2292
        %v2294 = vrot.slane %v1113, %v2293
        %v2295 = vlaneseq
        %v2296 = vshrl.u32 %v2295, 7
        %v2297 = vsub.s32 5, %v2296
        %v2298 = vrot.slane %v1113, %v2297
        %v2299 = vlaneseq
        %v2300 = vshrl.u32 %v2299, 7
        %v2301 = vsub.s32 6, %v2300
        %v2302 = vrot.slane %v1113, %v2301
        %v2303 = vlaneseq
        %v2304 = vshrl.u32 %v2303, 7
        %v2305 = vsub.s32 7, %v2304
        %v2306 = vrot.slane %v1113, %v2305
        %v2307 = vlaneseq
        %v2308 = vshrl.u32 %v2307, 7
        %v2309 = vsub.s32 0, %v2308
        %v2310 = vrot.slane %v1114, %v2309
        %v2311 = vlaneseq
        %v2312 = vshrl.u32 %v2311, 7
        %v2313 = vsub.s32 1, %v2312
        %v2314 = vrot.slane %v1114, %v2313
        %v2315 = vlaneseq
        %v2316 = vshrl.u32 %v2315, 7
        %v2317 = vsub.s32 2, %v2316
        %v2318 = vrot.slane %v1114, %v2317
        %v2319 = vlaneseq
        %v2320 = vshrl.u32 %v2319, 7
        %v2321 = vsub.s32 3, %v2320
        %v2322 = vrot.slane %v1114, %v2321
        %v2323 = vlaneseq
        %v2324 = vshrl.u32 %v2323, 7
        %v2325 = vsub.s32 4, %v2324
        %v2326 = vrot.slane %v1114, %v2325
        %v2327 = vlaneseq
        %v2328 = vshrl.u32 %v2327, 7
        %v2329 = vsub.s32 5, %v2328
        %v2330 = vrot.slane %v1114, %v2329
        %v2331 = vlaneseq
        %v2332 = vshrl.u32 %v2331, 7
        %v2333 = vsub.s32 6, %v2332
        %v2334 = vrot.slane %v1114, %v2333
        %v2335 = vlaneseq
        %v2336 = vshrl.u32 %v2335, 7
        %v2337 = vsub.s32 7, %v2336
        %v2338 = vrot.slane %v1114, %v2337
        %v2387 = vunpack.c.l.b16 %v1081
        %v2388 = vunpack.c.h.b16 %v1081
        %v2389 = vunpack.c.l.b16 %v1082
        %v2390 = vunpack.c.h.b16 %v1082
        %v2391 = vunpack.c.l.b16 %v1083
        %v2392 = vunpack.c.h.b16 %v1083
        %v2393 = vunpack.c.l.b16 %v1084
        %v2394 = vunpack.c.h.b16 %v1084
        %v2395 = vunpack.c.l.b16 %v1085
        %v2396 = vunpack.c.h.b16 %v1085
        %v2397 = vunpack.c.l.b16 %v1086
        %v2398 = vunpack.c.h.b16 %v1086
        %v2399 = vunpack.c.l.b16 %v1087
        %v2400 = vunpack.c.h.b16 %v1087
        %v2401 = vunpack.c.l.b16 %v1088
        %v2402 = vunpack.c.h.b16 %v1088
        %v2403 = vunpack.c.l.b16 %v1089
        %v2404 = vunpack.c.h.b16 %v1089
        %v2405 = vunpack.c.l.b16 %v1090
        %v2406 = vunpack.c.h.b16 %v1090
        %v2407 = vunpack.c.l.b16 %v1091
        %v2408 = vunpack.c.h.b16 %v1091
        %v2409 = vunpack.c.l.b16 %v1092
        %v2410 = vunpack.c.h.b16 %v1092
        %v2411 = vunpack.c.l.b16 %v1093
        %v2412 = vunpack.c.h.b16 %v1093
        %v2413 = vunpack.c.l.b16 %v1094
        %v2414 = vunpack.c.h.b16 %v1094
        %v2415 = vunpack.c.l.b16 %v1095
        %v2416 = vunpack.c.h.b16 %v1095
        %v2417 = vunpack.c.l.b16 %v1096
        %v2418 = vunpack.c.h.b16 %v1096
        %v2419 = vunpack.c.l.b16 %v1097
        %v2420 = vunpack.c.h.b16 %v1097
        %v2421 = vunpack.c.l.b16 %v1098
        %v2422 = vunpack.c.h.b16 %v1098
        %v2423 = vunpack.c.l.b16 %v1099
        %v2424 = vunpack.c.h.b16 %v1099
        %v2425 = vunpack.c.l.b16 %v1100
        %v2426 = vunpack.c.h.b16 %v1100
        %v2427 = vunpack.c.l.b16 %v1101
        %v2428 = vunpack.c.h.b16 %v1101
        %v2429 = vunpack.c.l.b16 %v1102
        %v2430 = vunpack.c.h.b16 %v1102
        %v2431 = vunpack.c.l.b16 %v1103
        %v2432 = vunpack.c.h.b16 %v1103
        %v2433 = vunpack.c.l.b16 %v1104
        %v2434 = vunpack.c.h.b16 %v1104
        %v2435 = vunpack.c.l.b16 %v1105
        %v2436 = vunpack.c.h.b16 %v1105
        %v2437 = vunpack.c.l.b16 %v1106
        %v2438 = vunpack.c.h.b16 %v1106
        %v2439 = vunpack.c.l.b16 %v1107
        %v2440 = vunpack.c.h.b16 %v1107
        %v2441 = vunpack.c.l.b16 %v1108
        %v2442 = vunpack.c.h.b16 %v1108
        %v2443 = vunpack.c.l.b16 %v1109
        %v2444 = vunpack.c.h.b16 %v1109
        %v2445 = vunpack.c.l.b16 %v1110
        %v2446 = vunpack.c.h.b16 %v1110
        %v2447 = vunpack.c.l.b16 %v1111
        %v2448 = vunpack.c.h.b16 %v1111
        %v2449 = vunpack.c.l.b16 %v1112
        %v2450 = vunpack.c.h.b16 %v1112
        %v2451 = vpack.c.b16 %v2403, %v2387
        %v2452 = vpack.c.b16 %v2404, %v2388
        %v2453 = vpack.c.b16 %v2405, %v2389
        %v2454 = vpack.c.b16 %v2406, %v2390
        %v2455 = vpack.c.b16 %v2407, %v2391
        %v2456 = vpack.c.b16 %v2408, %v2392
        %v2457 = vpack.c.b16 %v2409, %v2393
        %v2458 = vpack.c.b16 %v2410, %v2394
        %v2459 = vpack.c.b16 %v2411, %v2395
        %v2460 = vpack.c.b16 %v2412, %v2396
        %v2461 = vpack.c.b16 %v2413, %v2397
        %v2462 = vpack.c.b16 %v2414, %v2398
        %v2463 = vpack.c.b16 %v2415, %v2399
        %v2464 = vpack.c.b16 %v2416, %v2400
        %v2465 = vpack.c.b16 %v2417, %v2401
        %v2466 = vpack.c.b16 %v2418, %v2402
        %v2467 = vpack.c.b16 %v2435, %v2419
        %v2468 = vpack.c.b16 %v2436, %v2420
        %v2469 = vpack.c.b16 %v2437, %v2421
        %v2470 = vpack.c.b16 %v2438, %v2422
        %v2471 = vpack.c.b16 %v2439, %v2423
        %v2472 = vpack.c.b16 %v2440, %v2424
        %v2473 = vpack.c.b16 %v2441, %v2425
        %v2474 = vpack.c.b16 %v2442, %v2426
        %v2475 = vpack.c.b16 %v2443, %v2427
        %v2476 = vpack.c.b16 %v2444, %v2428
        %v2477 = vpack.c.b16 %v2445, %v2429
        %v2478 = vpack.c.b16 %v2446, %v2430
        %v2479 = vpack.c.b16 %v2447, %v2431
        %v2480 = vpack.c.b16 %v2448, %v2432
        %v2481 = vpack.c.b16 %v2449, %v2433
        %v2482 = vpack.c.b16 %v2450, %v2434
        %v2516 = vsel %vm1501, %v2272, 0
        %2518 = vmatprep.subr.bf16.mxu0 %v2452
        %2519 = vmatpush1.bf16.msra.mxu0 %v2451
        %2520 = vmatprep.subr.bf16.mxu0 %v2468
        %2521 = vmatpush1.bf16.msra.mxu0 %v2467
        %2522 = vmatprep.subr.bf16.mxu0 0
        %2523 = vmatpush1.bf16.msra.mxu0 0
        %2524 = vmatprep.subr.bf16.mxu0 0
        %2525 = vmatpush1.bf16.msra.mxu0 0
        %2526 = vmatprep.subr.bf16.mxu0 0
        %2527 = vmatpush1.bf16.msra.mxu0 0
        %2528 = vmatprep.subr.bf16.mxu0 0
        %2529 = vmatpush1.bf16.msra.mxu0 0
        %2530 = vmatprep.subr.bf16.mxu0 0
        %2531 = vmatpush1.bf16.msra.mxu0 0
        %2532 = vmatprep.subr.bf16.mxu0 0
        %2533 = vmatpush1.bf16.msra.mxu0 0
        %2534 = vmatprep.subr.bf16.mxu0 0
        %2535 = vmatpush1.bf16.msra.mxu0 0
        %2536 = vmatprep.subr.bf16.mxu0 0
        %2537 = vmatpush1.bf16.msra.mxu0 0
        %2538 = vmatprep.subr.bf16.mxu0 0
        %2539 = vmatpush1.bf16.msra.mxu0 0
        %2540 = vmatprep.subr.bf16.mxu0 0
        %2541 = vmatpush1.bf16.msra.mxu0 0
        %2542 = vmatprep.subr.bf16.mxu0 0
        %2543 = vmatpush1.bf16.msra.mxu0 0
        %2544 = vmatprep.subr.bf16.mxu0 0
        %2545 = vmatpush1.bf16.msra.mxu0 0
        %2546 = vmatprep.subr.bf16.mxu0 0
        %2547 = vmatpush1.bf16.msra.mxu0 0
        %2548 = vmatprep.subr.bf16.mxu0 0
        %2549 = vmatpush1.bf16.msra.mxu0 0
        %2550 = vmatprep.mubr.bf16.mxu0 0
        %2551 = vmatmul.mubr.bf16.gmra.mrb[0].mxu0 %v2516
        %v2552 = vpop.f32.mrb[0].mxu0
        %v2553 = vadd.f32 %v2278, %v2552
        %v2554 = vpop.f32.mrb[0].mxu0
        %v2555 = vadd.f32 %v2282, %v2554
        %v2556 = vpop.f32.mrb[0].mxu0
        %v2557 = vadd.f32 %v2278, %v2556
        %v2558 = vpop.f32.mrb[0].mxu0
        %v2559 = vadd.f32 %v2282, %v2558
        %2560 = vdwg.mxu0
        %2561 = vmatprep.subr.bf16.mxu0 %v2454
        %2562 = vmatpush1.bf16.msra.mxu0 %v2453
        %2563 = vmatprep.subr.bf16.mxu0 %v2470
        %2564 = vmatpush1.bf16.msra.mxu0 %v2469
        %2565 = vmatprep.subr.bf16.mxu0 0
        %2566 = vmatpush1.bf16.msra.mxu0 0
        %2567 = vmatprep.subr.bf16.mxu0 0
        %2568 = vmatpush1.bf16.msra.mxu0 0
        %2569 = vmatprep.subr.bf16.mxu0 0
        %2570 = vmatpush1.bf16.msra.mxu0 0
        %2571 = vmatprep.subr.bf16.mxu0 0
        %2572 = vmatpush1.bf16.msra.mxu0 0
        %2573 = vmatprep.subr.bf16.mxu0 0
        %2574 = vmatpush1.bf16.msra.mxu0 0
        %2575 = vmatprep.subr.bf16.mxu0 0
        %2576 = vmatpush1.bf16.msra.mxu0 0
        %2577 = vmatprep.subr.bf16.mxu0 0
        %2578 = vmatpush1.bf16.msra.mxu0 0
        %2579 = vmatprep.subr.bf16.mxu0 0
        %2580 = vmatpush1.bf16.msra.mxu0 0
        %2581 = vmatprep.subr.bf16.mxu0 0
        %2582 = vmatpush1.bf16.msra.mxu0 0
        %2583 = vmatprep.subr.bf16.mxu0 0
        %2584 = vmatpush1.bf16.msra.mxu0 0
        %2585 = vmatprep.subr.bf16.mxu0 0
        %2586 = vmatpush1.bf16.msra.mxu0 0
        %2587 = vmatprep.subr.bf16.mxu0 0
        %2588 = vmatpush1.bf16.msra.mxu0 0
        %2589 = vmatprep.subr.bf16.mxu0 0
        %2590 = vmatpush1.bf16.msra.mxu0 0
        %2591 = vmatprep.subr.bf16.mxu0 0
        %2592 = vmatpush1.bf16.msra.mxu0 0
        %2593 = vmatprep.mubr.bf16.mxu0 0
        %2594 = vmatmul.mubr.bf16.gmra.mrb[0].mxu0 %v2516
        %v2595 = vpop.f32.mrb[0].mxu0
        %v2596 = vadd.f32 %v2286, %v2595
        %v2597 = vpop.f32.mrb[0].mxu0
        %v2598 = vadd.f32 %v2290, %v2597
        %v2599 = vpop.f32.mrb[0].mxu0
        %v2600 = vadd.f32 %v2286, %v2599
        %v2601 = vpop.f32.mrb[0].mxu0
        %v2602 = vadd.f32 %v2290, %v2601
        %2603 = vdwg.mxu0
        %2604 = vmatprep.subr.bf16.mxu0 %v2456
        %2605 = vmatpush1.bf16.msra.mxu0 %v2455
        %2606 = vmatprep.subr.bf16.mxu0 %v2472
        %2607 = vmatpush1.bf16.msra.mxu0 %v2471
        %2608 = vmatprep.subr.bf16.mxu0 0
        %2609 = vmatpush1.bf16.msra.mxu0 0
        %2610 = vmatprep.subr.bf16.mxu0 0
        %2611 = vmatpush1.bf16.msra.mxu0 0
        %2612 = vmatprep.subr.bf16.mxu0 0
        %2613 = vmatpush1.bf16.msra.mxu0 0
        %2614 = vmatprep.subr.bf16.mxu0 0
        %2615 = vmatpush1.bf16.msra.mxu0 0
        %2616 = vmatprep.subr.bf16.mxu0 0
        %2617 = vmatpush1.bf16.msra.mxu0 0
        %2618 = vmatprep.subr.bf16.mxu0 0
        %2619 = vmatpush1.bf16.msra.mxu0 0
        %2620 = vmatprep.subr.bf16.mxu0 0
        %2621 = vmatpush1.bf16.msra.mxu0 0
        %2622 = vmatprep.subr.bf16.mxu0 0
        %2623 = vmatpush1.bf16.msra.mxu0 0
        %2624 = vmatprep.subr.bf16.mxu0 0
        %2625 = vmatpush1.bf16.msra.mxu0 0
        %2626 = vmatprep.subr.bf16.mxu0 0
        %2627 = vmatpush1.bf16.msra.mxu0 0
        %2628 = vmatprep.subr.bf16.mxu0 0
        %2629 = vmatpush1.bf16.msra.mxu0 0
        %2630 = vmatprep.subr.bf16.mxu0 0
        %2631 = vmatpush1.bf16.msra.mxu0 0
        %2632 = vmatprep.subr.bf16.mxu0 0
        %2633 = vmatpush1.bf16.msra.mxu0 0
        %2634 = vmatprep.subr.bf16.mxu0 0
        %2635 = vmatpush1.bf16.msra.mxu0 0
        %2636 = vmatprep.mubr.bf16.mxu0 0
        %2637 = vmatmul.mubr.bf16.gmra.mrb[0].mxu0 %v2516
        %v2638 = vpop.f32.mrb[0].mxu0
        %v2639 = vadd.f32 %v2294, %v2638
        %v2640 = vpop.f32.mrb[0].mxu0
        %v2641 = vadd.f32 %v2298, %v2640
        %v2642 = vpop.f32.mrb[0].mxu0
        %v2643 = vadd.f32 %v2294, %v2642
        %v2644 = vpop.f32.mrb[0].mxu0
        %v2645 = vadd.f32 %v2298, %v2644
        %2646 = vdwg.mxu0
        %2647 = vmatprep.subr.bf16.mxu0 %v2458
        %2648 = vmatpush1.bf16.msra.mxu0 %v2457
        %2649 = vmatprep.subr.bf16.mxu0 %v2474
        %2650 = vmatpush1.bf16.msra.mxu0 %v2473
        %2651 = vmatprep.subr.bf16.mxu0 0
        %2652 = vmatpush1.bf16.msra.mxu0 0
        %2653 = vmatprep.subr.bf16.mxu0 0
        %2654 = vmatpush1.bf16.msra.mxu0 0
        %2655 = vmatprep.subr.bf16.mxu0 0
        %2656 = vmatpush1.bf16.msra.mxu0 0
        %2657 = vmatprep.subr.bf16.mxu0 0
        %2658 = vmatpush1.bf16.msra.mxu0 0
        %2659 = vmatprep.subr.bf16.mxu0 0
        %2660 = vmatpush1.bf16.msra.mxu0 0
        %2661 = vmatprep.subr.bf16.mxu0 0
        %2662 = vmatpush1.bf16.msra.mxu0 0
        %2663 = vmatprep.subr.bf16.mxu0 0
        %2664 = vmatpush1.bf16.msra.mxu0 0
        %2665 = vmatprep.subr.bf16.mxu0 0
        %2666 = vmatpush1.bf16.msra.mxu0 0
        %2667 = vmatprep.subr.bf16.mxu0 0
        %2668 = vmatpush1.bf16.msra.mxu0 0
        %2669 = vmatprep.subr.bf16.mxu0 0
        %2670 = vmatpush1.bf16.msra.mxu0 0
        %2671 = vmatprep.subr.bf16.mxu0 0
        %2672 = vmatpush1.bf16.msra.mxu0 0
        %2673 = vmatprep.subr.bf16.mxu0 0
        %2674 = vmatpush1.bf16.msra.mxu0 0
        %2675 = vmatprep.subr.bf16.mxu0 0
        %2676 = vmatpush1.bf16.msra.mxu0 0
        %2677 = vmatprep.subr.bf16.mxu0 0
        %2678 = vmatpush1.bf16.msra.mxu0 0
        %2679 = vmatprep.mubr.bf16.mxu0 0
        %2680 = vmatmul.mubr.bf16.gmra.mrb[0].mxu0 %v2516
        %v2681 = vpop.f32.mrb[0].mxu0
        %v2682 = vadd.f32 %v2302, %v2681
        %v2683 = vpop.f32.mrb[0].mxu0
        %v2684 = vadd.f32 %v2306, %v2683
        %v2685 = vpop.f32.mrb[0].mxu0
        %v2686 = vadd.f32 %v2302, %v2685
        %v2687 = vpop.f32.mrb[0].mxu0
        %v2688 = vadd.f32 %v2306, %v2687
        %2689 = vdwg.mxu0
        %2690 = vmatprep.subr.bf16.mxu0 %v2460
        %2691 = vmatpush1.bf16.msra.mxu0 %v2459
        %2692 = vmatprep.subr.bf16.mxu0 %v2476
        %2693 = vmatpush1.bf16.msra.mxu0 %v2475
        %2694 = vmatprep.subr.bf16.mxu0 0
        %2695 = vmatpush1.bf16.msra.mxu0 0
        %2696 = vmatprep.subr.bf16.mxu0 0
        %2697 = vmatpush1.bf16.msra.mxu0 0
        %2698 = vmatprep.subr.bf16.mxu0 0
        %2699 = vmatpush1.bf16.msra.mxu0 0
        %2700 = vmatprep.subr.bf16.mxu0 0
        %2701 = vmatpush1.bf16.msra.mxu0 0
        %2702 = vmatprep.subr.bf16.mxu0 0
        %2703 = vmatpush1.bf16.msra.mxu0 0
        %2704 = vmatprep.subr.bf16.mxu0 0
        %2705 = vmatpush1.bf16.msra.mxu0 0
        %2706 = vmatprep.subr.bf16.mxu0 0
        %2707 = vmatpush1.bf16.msra.mxu0 0
        %2708 = vmatprep.subr.bf16.mxu0 0
        %2709 = vmatpush1.bf16.msra.mxu0 0
        %2710 = vmatprep.subr.bf16.mxu0 0
        %2711 = vmatpush1.bf16.msra.mxu0 0
        %2712 = vmatprep.subr.bf16.mxu0 0
        %2713 = vmatpush1.bf16.msra.mxu0 0
        %2714 = vmatprep.subr.bf16.mxu0 0
        %2715 = vmatpush1.bf16.msra.mxu0 0
        %2716 = vmatprep.subr.bf16.mxu0 0
        %2717 = vmatpush1.bf16.msra.mxu0 0
        %2718 = vmatprep.subr.bf16.mxu0 0
        %2719 = vmatpush1.bf16.msra.mxu0 0
        %2720 = vmatprep.subr.bf16.mxu0 0
        %2721 = vmatpush1.bf16.msra.mxu0 0
        %2722 = vmatprep.mubr.bf16.mxu0 0
        %2723 = vmatmul.mubr.bf16.gmra.mrb[0].mxu0 %v2516
        %v2724 = vpop.f32.mrb[0].mxu0
        %v2725 = vadd.f32 %v2310, %v2724
        %v2726 = vpop.f32.mrb[0].mxu0
        %v2727 = vadd.f32 %v2314, %v2726
        %v2728 = vpop.f32.mrb[0].mxu0
        %v2729 = vadd.f32 %v2310, %v2728
        %v2730 = vpop.f32.mrb[0].mxu0
        %v2731 = vadd.f32 %v2314, %v2730
        %2732 = vdwg.mxu0
        %2733 = vmatprep.subr.bf16.mxu0 %v2462
        %2734 = vmatpush1.bf16.msra.mxu0 %v2461
        %2735 = vmatprep.subr.bf16.mxu0 %v2478
        %2736 = vmatpush1.bf16.msra.mxu0 %v2477
        %2737 = vmatprep.subr.bf16.mxu0 0
        %2738 = vmatpush1.bf16.msra.mxu0 0
        %2739 = vmatprep.subr.bf16.mxu0 0
        %2740 = vmatpush1.bf16.msra.mxu0 0
        %2741 = vmatprep.subr.bf16.mxu0 0
        %2742 = vmatpush1.bf16.msra.mxu0 0
        %2743 = vmatprep.subr.bf16.mxu0 0
        %2744 = vmatpush1.bf16.msra.mxu0 0
        %2745 = vmatprep.subr.bf16.mxu0 0
        %2746 = vmatpush1.bf16.msra.mxu0 0
        %2747 = vmatprep.subr.bf16.mxu0 0
        %2748 = vmatpush1.bf16.msra.mxu0 0
        %2749 = vmatprep.subr.bf16.mxu0 0
        %2750 = vmatpush1.bf16.msra.mxu0 0
        %2751 = vmatprep.subr.bf16.mxu0 0
        %2752 = vmatpush1.bf16.msra.mxu0 0
        %2753 = vmatprep.subr.bf16.mxu0 0
        %2754 = vmatpush1.bf16.msra.mxu0 0
        %2755 = vmatprep.subr.bf16.mxu0 0
        %2756 = vmatpush1.bf16.msra.mxu0 0
        %2757 = vmatprep.subr.bf16.mxu0 0
        %2758 = vmatpush1.bf16.msra.mxu0 0
        %2759 = vmatprep.subr.bf16.mxu0 0
        %2760 = vmatpush1.bf16.msra.mxu0 0
        %2761 = vmatprep.subr.bf16.mxu0 0
        %2762 = vmatpush1.bf16.msra.mxu0 0
        %2763 = vmatprep.subr.bf16.mxu0 0
        %2764 = vmatpush1.bf16.msra.mxu0 0
        %2765 = vmatprep.mubr.bf16.mxu0 0
        %2766 = vmatmul.mubr.bf16.gmra.mrb[0].mxu0 %v2516
        %v2767 = vpop.f32.mrb[0].mxu0
        %v2768 = vadd.f32 %v2318, %v2767
        %v2769 = vpop.f32.mrb[0].mxu0
        %v2770 = vadd.f32 %v2322, %v2769
        %v2771 = vpop.f32.mrb[0].mxu0
        %v2772 = vadd.f32 %v2318, %v2771
        %v2773 = vpop.f32.mrb[0].mxu0
        %v2774 = vadd.f32 %v2322, %v2773
        %2775 = vdwg.mxu0
        %2776 = vmatprep.subr.bf16.mxu0 %v2464
        %2777 = vmatpush1.bf16.msra.mxu0 %v2463
        %2778 = vmatprep.subr.bf16.mxu0 %v2480
        %2779 = vmatpush1.bf16.msra.mxu0 %v2479
        %2780 = vmatprep.subr.bf16.mxu0 0
        %2781 = vmatpush1.bf16.msra.mxu0 0
        %2782 = vmatprep.subr.bf16.mxu0 0
        %2783 = vmatpush1.bf16.msra.mxu0 0
        %2784 = vmatprep.subr.bf16.mxu0 0
        %2785 = vmatpush1.bf16.msra.mxu0 0
        %2786 = vmatprep.subr.bf16.mxu0 0
        %2787 = vmatpush1.bf16.msra.mxu0 0
        %2788 = vmatprep.subr.bf16.mxu0 0
        %2789 = vmatpush1.bf16.msra.mxu0 0
        %2790 = vmatprep.subr.bf16.mxu0 0
        %2791 = vmatpush1.bf16.msra.mxu0 0
        %2792 = vmatprep.subr.bf16.mxu0 0
        %2793 = vmatpush1.bf16.msra.mxu0 0
        %2794 = vmatprep.subr.bf16.mxu0 0
        %2795 = vmatpush1.bf16.msra.mxu0 0
        %2796 = vmatprep.subr.bf16.mxu0 0
        %2797 = vmatpush1.bf16.msra.mxu0 0
        %2798 = vmatprep.subr.bf16.mxu0 0
        %2799 = vmatpush1.bf16.msra.mxu0 0
        %2800 = vmatprep.subr.bf16.mxu0 0
        %2801 = vmatpush1.bf16.msra.mxu0 0
        %2802 = vmatprep.subr.bf16.mxu0 0
        %2803 = vmatpush1.bf16.msra.mxu0 0
        %2804 = vmatprep.subr.bf16.mxu0 0
        %2805 = vmatpush1.bf16.msra.mxu0 0
        %2806 = vmatprep.subr.bf16.mxu0 0
        %2807 = vmatpush1.bf16.msra.mxu0 0
        %2808 = vmatprep.mubr.bf16.mxu0 0
        %2809 = vmatmul.mubr.bf16.gmra.mrb[0].mxu0 %v2516
        %v2810 = vpop.f32.mrb[0].mxu0
        %v2811 = vadd.f32 %v2326, %v2810
        %v2812 = vpop.f32.mrb[0].mxu0
        %v2813 = vadd.f32 %v2330, %v2812
        %v2814 = vpop.f32.mrb[0].mxu0
        %v2815 = vadd.f32 %v2326, %v2814
        %v2816 = vpop.f32.mrb[0].mxu0
        %v2817 = vadd.f32 %v2330, %v2816
        %2818 = vdwg.mxu0
        %2819 = vmatprep.subr.bf16.mxu0 %v2466
        %2820 = vmatpush1.bf16.msra.mxu0 %v2465
        %2821 = vmatprep.subr.bf16.mxu0 %v2482
        %2822 = vmatpush1.bf16.msra.mxu0 %v2481
        %2823 = vmatprep.subr.bf16.mxu0 0
        %2824 = vmatpush1.bf16.msra.mxu0 0
        %2825 = vmatprep.subr.bf16.mxu0 0
        %2826 = vmatpush1.bf16.msra.mxu0 0
        %2827 = vmatprep.subr.bf16.mxu0 0
        %2828 = vmatpush1.bf16.msra.mxu0 0
        %2829 = vmatprep.subr.bf16.mxu0 0
        %2830 = vmatpush1.bf16.msra.mxu0 0
        %2831 = vmatprep.subr.bf16.mxu0 0
        %2832 = vmatpush1.bf16.msra.mxu0 0
        %2833 = vmatprep.subr.bf16.mxu0 0
        %2834 = vmatpush1.bf16.msra.mxu0 0
        %2835 = vmatprep.subr.bf16.mxu0 0
        %2836 = vmatpush1.bf16.msra.mxu0 0
        %2837 = vmatprep.subr.bf16.mxu0 0
        %2838 = vmatpush1.bf16.msra.mxu0 0
        %2839 = vmatprep.subr.bf16.mxu0 0
        %2840 = vmatpush1.bf16.msra.mxu0 0
        %2841 = vmatprep.subr.bf16.mxu0 0
        %2842 = vmatpush1.bf16.msra.mxu0 0
        %2843 = vmatprep.subr.bf16.mxu0 0
        %2844 = vmatpush1.bf16.msra.mxu0 0
        %2845 = vmatprep.subr.bf16.mxu0 0
        %2846 = vmatpush1.bf16.msra.mxu0 0
        %2847 = vmatprep.subr.bf16.mxu0 0
        %2848 = vmatpush1.bf16.msra.mxu0 0
        %2849 = vmatprep.subr.bf16.mxu0 0
        %2850 = vmatpush1.bf16.msra.mxu0 0
        %2851 = vmatprep.mubr.bf16.mxu0 0
        %2852 = vmatmul.mubr.bf16.gmra.mrb[0].mxu0 %v2516
        %v2853 = vpop.f32.mrb[0].mxu0
        %v2854 = vadd.f32 %v2334, %v2853
        %v2855 = vpop.f32.mrb[0].mxu0
        %v2856 = vadd.f32 %v2338, %v2855
        %v2857 = vpop.f32.mrb[0].mxu0
        %v2858 = vadd.f32 %v2334, %v2857
        %v2859 = vpop.f32.mrb[0].mxu0
        %v2860 = vadd.f32 %v2338, %v2859
        %2861 = vdwg.mxu0
        %v2862 = vmax.f32 %v2553, 0.0
        %v2863 = vmax.f32 %v2555, 0.0
        %v2864 = vmax.f32 %v2596, 0.0
        %v2865 = vmax.f32 %v2598, 0.0
        %v2866 = vmax.f32 %v2639, 0.0
        %v2867 = vmax.f32 %v2641, 0.0
        %v2868 = vmax.f32 %v2682, 0.0
        %v2869 = vmax.f32 %v2684, 0.0
        %v2870 = vmax.f32 %v2725, 0.0
        %v2871 = vmax.f32 %v2727, 0.0
        %v2872 = vmax.f32 %v2768, 0.0
        %v2873 = vmax.f32 %v2770, 0.0
        %v2874 = vmax.f32 %v2811, 0.0
        %v2875 = vmax.f32 %v2813, 0.0
        %v2876 = vmax.f32 %v2854, 0.0
        %v2877 = vmax.f32 %v2856, 0.0
        %v2878 = vmax.f32 %v2557, 0.0
        %v2879 = vmax.f32 %v2559, 0.0
        %v2880 = vmax.f32 %v2600, 0.0
        %v2881 = vmax.f32 %v2602, 0.0
        %v2882 = vmax.f32 %v2643, 0.0
        %v2883 = vmax.f32 %v2645, 0.0
        %v2884 = vmax.f32 %v2686, 0.0
        %v2885 = vmax.f32 %v2688, 0.0
        %v2886 = vmax.f32 %v2729, 0.0
        %v2887 = vmax.f32 %v2731, 0.0
        %v2888 = vmax.f32 %v2772, 0.0
        %v2889 = vmax.f32 %v2774, 0.0
        %v2890 = vmax.f32 %v2815, 0.0
        %v2891 = vmax.f32 %v2817, 0.0
        %v2892 = vmax.f32 %v2858, 0.0
        %v2893 = vmax.f32 %v2860, 0.0
        %v2894 = vpack.c.bf16 %v2878, %v2862
        %v2895 = vpack.c.bf16 %v2879, %v2863
        %v2896 = vpack.c.bf16 %v2880, %v2864
        %v2897 = vpack.c.bf16 %v2881, %v2865
        %v2898 = vpack.c.bf16 %v2882, %v2866
        %v2899 = vpack.c.bf16 %v2883, %v2867
        %v2900 = vpack.c.bf16 %v2884, %v2868
        %v2901 = vpack.c.bf16 %v2885, %v2869
        %v2902 = vpack.c.bf16 %v2886, %v2870
        %v2903 = vpack.c.bf16 %v2887, %v2871
        %v2904 = vpack.c.bf16 %v2888, %v2872
        %v2905 = vpack.c.bf16 %v2889, %v2873
        %v2906 = vpack.c.bf16 %v2890, %v2874
        %v2907 = vpack.c.bf16 %v2891, %v2875
        %v2908 = vpack.c.bf16 %v2892, %v2876
        %v2909 = vpack.c.bf16 %v2893, %v2877
        %v2911 = vlaneseq
        %v2912 = vshrl.u32 %v2911, 7
        %v2913 = vsub.s32 0, %v2912
        %v2914 = vrot.slane %v1371, %v2913
        %v3172 = vunpack.c.l.b16 %v1115
        %v3173 = vunpack.c.l.b16 %v1116
        %v3174 = vunpack.c.l.b16 %v1117
        %v3175 = vunpack.c.l.b16 %v1118
        %v3176 = vunpack.c.l.b16 %v1119
        %v3177 = vunpack.c.l.b16 %v1120
        %v3178 = vunpack.c.l.b16 %v1121
        %v3179 = vunpack.c.l.b16 %v1122
        %v3180 = vunpack.c.l.b16 %v1123
        %v3181 = vunpack.c.l.b16 %v1124
        %v3182 = vunpack.c.l.b16 %v1125
        %v3183 = vunpack.c.l.b16 %v1126
        %v3184 = vunpack.c.l.b16 %v1127
        %v3185 = vunpack.c.l.b16 %v1128
        %v3186 = vunpack.c.l.b16 %v1129
        %v3187 = vunpack.c.l.b16 %v1130
        %v3188 = vunpack.c.l.b16 %v1131
        %v3189 = vunpack.c.l.b16 %v1132
        %v3190 = vunpack.c.l.b16 %v1133
        %v3191 = vunpack.c.l.b16 %v1134
        %v3192 = vunpack.c.l.b16 %v1135
        %v3193 = vunpack.c.l.b16 %v1136
        %v3194 = vunpack.c.l.b16 %v1137
        %v3195 = vunpack.c.l.b16 %v1138
        %v3196 = vunpack.c.l.b16 %v1139
        %v3197 = vunpack.c.l.b16 %v1140
        %v3198 = vunpack.c.l.b16 %v1141
        %v3199 = vunpack.c.l.b16 %v1142
        %v3200 = vunpack.c.l.b16 %v1143
        %v3201 = vunpack.c.l.b16 %v1144
        %v3202 = vunpack.c.l.b16 %v1145
        %v3203 = vunpack.c.l.b16 %v1146
        %v3204 = vunpack.c.l.b16 %v1147
        %v3205 = vunpack.c.l.b16 %v1148
        %v3206 = vunpack.c.l.b16 %v1149
        %v3207 = vunpack.c.l.b16 %v1150
        %v3208 = vunpack.c.l.b16 %v1151
        %v3209 = vunpack.c.l.b16 %v1152
        %v3210 = vunpack.c.l.b16 %v1153
        %v3211 = vunpack.c.l.b16 %v1154
        %v3212 = vunpack.c.l.b16 %v1155
        %v3213 = vunpack.c.l.b16 %v1156
        %v3214 = vunpack.c.l.b16 %v1157
        %v3215 = vunpack.c.l.b16 %v1158
        %v3216 = vunpack.c.l.b16 %v1159
        %v3217 = vunpack.c.l.b16 %v1160
        %v3218 = vunpack.c.l.b16 %v1161
        %v3219 = vunpack.c.l.b16 %v1162
        %v3220 = vunpack.c.l.b16 %v1163
        %v3221 = vunpack.c.l.b16 %v1164
        %v3222 = vunpack.c.l.b16 %v1165
        %v3223 = vunpack.c.l.b16 %v1166
        %v3224 = vunpack.c.l.b16 %v1167
        %v3225 = vunpack.c.l.b16 %v1168
        %v3226 = vunpack.c.l.b16 %v1169
        %v3227 = vunpack.c.l.b16 %v1170
        %v3228 = vunpack.c.l.b16 %v1171
        %v3229 = vunpack.c.l.b16 %v1172
        %v3230 = vunpack.c.l.b16 %v1173
        %v3231 = vunpack.c.l.b16 %v1174
        %v3232 = vunpack.c.l.b16 %v1175
        %v3233 = vunpack.c.l.b16 %v1176
        %v3234 = vunpack.c.l.b16 %v1177
        %v3235 = vunpack.c.l.b16 %v1178
        %v3236 = vunpack.c.l.b16 %v1179
        %v3237 = vunpack.c.l.b16 %v1180
        %v3238 = vunpack.c.l.b16 %v1181
        %v3239 = vunpack.c.l.b16 %v1182
        %v3240 = vunpack.c.l.b16 %v1183
        %v3241 = vunpack.c.l.b16 %v1184
        %v3242 = vunpack.c.l.b16 %v1185
        %v3243 = vunpack.c.l.b16 %v1186
        %v3244 = vunpack.c.l.b16 %v1187
        %v3245 = vunpack.c.l.b16 %v1188
        %v3246 = vunpack.c.l.b16 %v1189
        %v3247 = vunpack.c.l.b16 %v1190
        %v3248 = vunpack.c.l.b16 %v1191
        %v3249 = vunpack.c.l.b16 %v1192
        %v3250 = vunpack.c.l.b16 %v1193
        %v3251 = vunpack.c.l.b16 %v1194
        %v3252 = vunpack.c.l.b16 %v1195
        %v3253 = vunpack.c.l.b16 %v1196
        %v3254 = vunpack.c.l.b16 %v1197
        %v3255 = vunpack.c.l.b16 %v1198
        %v3256 = vunpack.c.l.b16 %v1199
        %v3257 = vunpack.c.l.b16 %v1200
        %v3258 = vunpack.c.l.b16 %v1201
        %v3259 = vunpack.c.l.b16 %v1202
        %v3260 = vunpack.c.l.b16 %v1203
        %v3261 = vunpack.c.l.b16 %v1204
        %v3262 = vunpack.c.l.b16 %v1205
        %v3263 = vunpack.c.l.b16 %v1206
        %v3264 = vunpack.c.l.b16 %v1207
        %v3265 = vunpack.c.l.b16 %v1208
        %v3266 = vunpack.c.l.b16 %v1209
        %v3267 = vunpack.c.l.b16 %v1210
        %v3268 = vunpack.c.l.b16 %v1211
        %v3269 = vunpack.c.l.b16 %v1212
        %v3270 = vunpack.c.l.b16 %v1213
        %v3271 = vunpack.c.l.b16 %v1214
        %v3272 = vunpack.c.l.b16 %v1215
        %v3273 = vunpack.c.l.b16 %v1216
        %v3274 = vunpack.c.l.b16 %v1217
        %v3275 = vunpack.c.l.b16 %v1218
        %v3276 = vunpack.c.l.b16 %v1219
        %v3277 = vunpack.c.l.b16 %v1220
        %v3278 = vunpack.c.l.b16 %v1221
        %v3279 = vunpack.c.l.b16 %v1222
        %v3280 = vunpack.c.l.b16 %v1223
        %v3281 = vunpack.c.l.b16 %v1224
        %v3282 = vunpack.c.l.b16 %v1225
        %v3283 = vunpack.c.l.b16 %v1226
        %v3284 = vunpack.c.l.b16 %v1227
        %v3285 = vunpack.c.l.b16 %v1228
        %v3286 = vunpack.c.l.b16 %v1229
        %v3287 = vunpack.c.l.b16 %v1230
        %v3288 = vunpack.c.l.b16 %v1231
        %v3289 = vunpack.c.l.b16 %v1232
        %v3290 = vunpack.c.l.b16 %v1233
        %v3291 = vunpack.c.l.b16 %v1234
        %v3292 = vunpack.c.l.b16 %v1235
        %v3293 = vunpack.c.l.b16 %v1236
        %v3294 = vunpack.c.l.b16 %v1237
        %v3295 = vunpack.c.l.b16 %v1238
        %v3296 = vunpack.c.l.b16 %v1239
        %v3297 = vunpack.c.l.b16 %v1240
        %v3298 = vunpack.c.l.b16 %v1241
        %v3299 = vunpack.c.l.b16 %v1242
        %v3300 = vunpack.c.l.b16 %v1243
        %v3301 = vunpack.c.l.b16 %v1244
        %v3302 = vunpack.c.l.b16 %v1245
        %v3303 = vunpack.c.l.b16 %v1246
        %v3304 = vunpack.c.l.b16 %v1247
        %v3305 = vunpack.c.l.b16 %v1248
        %v3306 = vunpack.c.l.b16 %v1249
        %v3307 = vunpack.c.l.b16 %v1250
        %v3308 = vunpack.c.l.b16 %v1251
        %v3309 = vunpack.c.l.b16 %v1252
        %v3310 = vunpack.c.l.b16 %v1253
        %v3311 = vunpack.c.l.b16 %v1254
        %v3312 = vunpack.c.l.b16 %v1255
        %v3313 = vunpack.c.l.b16 %v1256
        %v3314 = vunpack.c.l.b16 %v1257
        %v3315 = vunpack.c.l.b16 %v1258
        %v3316 = vunpack.c.l.b16 %v1259
        %v3317 = vunpack.c.l.b16 %v1260
        %v3318 = vunpack.c.l.b16 %v1261
        %v3319 = vunpack.c.l.b16 %v1262
        %v3320 = vunpack.c.l.b16 %v1263
        %v3321 = vunpack.c.l.b16 %v1264
        %v3322 = vunpack.c.l.b16 %v1265
        %v3323 = vunpack.c.l.b16 %v1266
        %v3324 = vunpack.c.l.b16 %v1267
        %v3325 = vunpack.c.l.b16 %v1268
        %v3326 = vunpack.c.l.b16 %v1269
        %v3327 = vunpack.c.l.b16 %v1270
        %v3328 = vunpack.c.l.b16 %v1271
        %v3329 = vunpack.c.l.b16 %v1272
        %v3330 = vunpack.c.l.b16 %v1273
        %v3331 = vunpack.c.l.b16 %v1274
        %v3332 = vunpack.c.l.b16 %v1275
        %v3333 = vunpack.c.l.b16 %v1276
        %v3334 = vunpack.c.l.b16 %v1277
        %v3335 = vunpack.c.l.b16 %v1278
        %v3336 = vunpack.c.l.b16 %v1279
        %v3337 = vunpack.c.l.b16 %v1280
        %v3338 = vunpack.c.l.b16 %v1281
        %v3339 = vunpack.c.l.b16 %v1282
        %v3340 = vunpack.c.l.b16 %v1283
        %v3341 = vunpack.c.l.b16 %v1284
        %v3342 = vunpack.c.l.b16 %v1285
        %v3343 = vunpack.c.l.b16 %v1286
        %v3344 = vunpack.c.l.b16 %v1287
        %v3345 = vunpack.c.l.b16 %v1288
        %v3346 = vunpack.c.l.b16 %v1289
        %v3347 = vunpack.c.l.b16 %v1290
        %v3348 = vunpack.c.l.b16 %v1291
        %v3349 = vunpack.c.l.b16 %v1292
        %v3350 = vunpack.c.l.b16 %v1293
        %v3351 = vunpack.c.l.b16 %v1294
        %v3352 = vunpack.c.l.b16 %v1295
        %v3353 = vunpack.c.l.b16 %v1296
        %v3354 = vunpack.c.l.b16 %v1297
        %v3355 = vunpack.c.l.b16 %v1298
        %v3356 = vunpack.c.l.b16 %v1299
        %v3357 = vunpack.c.l.b16 %v1300
        %v3358 = vunpack.c.l.b16 %v1301
        %v3359 = vunpack.c.l.b16 %v1302
        %v3360 = vunpack.c.l.b16 %v1303
        %v3361 = vunpack.c.l.b16 %v1304
        %v3362 = vunpack.c.l.b16 %v1305
        %v3363 = vunpack.c.l.b16 %v1306
        %v3364 = vunpack.c.l.b16 %v1307
        %v3365 = vunpack.c.l.b16 %v1308
        %v3366 = vunpack.c.l.b16 %v1309
        %v3367 = vunpack.c.l.b16 %v1310
        %v3368 = vunpack.c.l.b16 %v1311
        %v3369 = vunpack.c.l.b16 %v1312
        %v3370 = vunpack.c.l.b16 %v1313
        %v3371 = vunpack.c.l.b16 %v1314
        %v3372 = vunpack.c.l.b16 %v1315
        %v3373 = vunpack.c.l.b16 %v1316
        %v3374 = vunpack.c.l.b16 %v1317
        %v3375 = vunpack.c.l.b16 %v1318
        %v3376 = vunpack.c.l.b16 %v1319
        %v3377 = vunpack.c.l.b16 %v1320
        %v3378 = vunpack.c.l.b16 %v1321
        %v3379 = vunpack.c.l.b16 %v1322
        %v3380 = vunpack.c.l.b16 %v1323
        %v3381 = vunpack.c.l.b16 %v1324
        %v3382 = vunpack.c.l.b16 %v1325
        %v3383 = vunpack.c.l.b16 %v1326
        %v3384 = vunpack.c.l.b16 %v1327
        %v3385 = vunpack.c.l.b16 %v1328
        %v3386 = vunpack.c.l.b16 %v1329
        %v3387 = vunpack.c.l.b16 %v1330
        %v3388 = vunpack.c.l.b16 %v1331
        %v3389 = vunpack.c.l.b16 %v1332
        %v3390 = vunpack.c.l.b16 %v1333
        %v3391 = vunpack.c.l.b16 %v1334
        %v3392 = vunpack.c.l.b16 %v1335
        %v3393 = vunpack.c.l.b16 %v1336
        %v3394 = vunpack.c.l.b16 %v1337
        %v3395 = vunpack.c.l.b16 %v1338
        %v3396 = vunpack.c.l.b16 %v1339
        %v3397 = vunpack.c.l.b16 %v1340
        %v3398 = vunpack.c.l.b16 %v1341
        %v3399 = vunpack.c.l.b16 %v1342
        %v3400 = vunpack.c.l.b16 %v1343
        %v3401 = vunpack.c.l.b16 %v1344
        %v3402 = vunpack.c.l.b16 %v1345
        %v3403 = vunpack.c.l.b16 %v1346
        %v3404 = vunpack.c.l.b16 %v1347
        %v3405 = vunpack.c.l.b16 %v1348
        %v3406 = vunpack.c.l.b16 %v1349
        %v3407 = vunpack.c.l.b16 %v1350
        %v3408 = vunpack.c.l.b16 %v1351
        %v3409 = vunpack.c.l.b16 %v1352
        %v3410 = vunpack.c.l.b16 %v1353
        %v3411 = vunpack.c.l.b16 %v1354
        %v3412 = vunpack.c.l.b16 %v1355
        %v3413 = vunpack.c.l.b16 %v1356
        %v3414 = vunpack.c.l.b16 %v1357
        %v3415 = vunpack.c.l.b16 %v1358
        %v3416 = vunpack.c.l.b16 %v1359
        %v3417 = vunpack.c.l.b16 %v1360
        %v3418 = vunpack.c.l.b16 %v1361
        %v3419 = vunpack.c.l.b16 %v1362
        %v3420 = vunpack.c.l.b16 %v1363
        %v3421 = vunpack.c.l.b16 %v1364
        %v3422 = vunpack.c.l.b16 %v1365
        %v3423 = vunpack.c.l.b16 %v1366
        %v3424 = vunpack.c.l.b16 %v1367
        %v3425 = vunpack.c.l.b16 %v1368
        %v3426 = vunpack.c.l.b16 %v1369
        %v3427 = vunpack.c.l.b16 %v1370
        %v3428 = vpack.c.b16 %v3173, %v3172
        %v3429 = vpack.c.b16 %v3175, %v3174
        %v3430 = vpack.c.b16 %v3177, %v3176
        %v3431 = vpack.c.b16 %v3179, %v3178
        %v3432 = vpack.c.b16 %v3181, %v3180
        %v3433 = vpack.c.b16 %v3183, %v3182
        %v3434 = vpack.c.b16 %v3185, %v3184
        %v3435 = vpack.c.b16 %v3187, %v3186
        %v3436 = vpack.c.b16 %v3189, %v3188
        %v3437 = vpack.c.b16 %v3191, %v3190
        %v3438 = vpack.c.b16 %v3193, %v3192
        %v3439 = vpack.c.b16 %v3195, %v3194
        %v3440 = vpack.c.b16 %v3197, %v3196
        %v3441 = vpack.c.b16 %v3199, %v3198
        %v3442 = vpack.c.b16 %v3201, %v3200
        %v3443 = vpack.c.b16 %v3203, %v3202
        %v3444 = vpack.c.b16 %v3205, %v3204
        %v3445 = vpack.c.b16 %v3207, %v3206
        %v3446 = vpack.c.b16 %v3209, %v3208
        %v3447 = vpack.c.b16 %v3211, %v3210
        %v3448 = vpack.c.b16 %v3213, %v3212
        %v3449 = vpack.c.b16 %v3215, %v3214
        %v3450 = vpack.c.b16 %v3217, %v3216
        %v3451 = vpack.c.b16 %v3219, %v3218
        %v3452 = vpack.c.b16 %v3221, %v3220
        %v3453 = vpack.c.b16 %v3223, %v3222
        %v3454 = vpack.c.b16 %v3225, %v3224
        %v3455 = vpack.c.b16 %v3227, %v3226
        %v3456 = vpack.c.b16 %v3229, %v3228
        %v3457 = vpack.c.b16 %v3231, %v3230
        %v3458 = vpack.c.b16 %v3233, %v3232
        %v3459 = vpack.c.b16 %v3235, %v3234
        %v3460 = vpack.c.b16 %v3237, %v3236
        %v3461 = vpack.c.b16 %v3239, %v3238
        %v3462 = vpack.c.b16 %v3241, %v3240
        %v3463 = vpack.c.b16 %v3243, %v3242
        %v3464 = vpack.c.b16 %v3245, %v3244
        %v3465 = vpack.c.b16 %v3247, %v3246
        %v3466 = vpack.c.b16 %v3249, %v3248
        %v3467 = vpack.c.b16 %v3251, %v3250
        %v3468 = vpack.c.b16 %v3253, %v3252
        %v3469 = vpack.c.b16 %v3255, %v3254
        %v3470 = vpack.c.b16 %v3257, %v3256
        %v3471 = vpack.c.b16 %v3259, %v3258
        %v3472 = vpack.c.b16 %v3261, %v3260
        %v3473 = vpack.c.b16 %v3263, %v3262
        %v3474 = vpack.c.b16 %v3265, %v3264
        %v3475 = vpack.c.b16 %v3267, %v3266
        %v3476 = vpack.c.b16 %v3269, %v3268
        %v3477 = vpack.c.b16 %v3271, %v3270
        %v3478 = vpack.c.b16 %v3273, %v3272
        %v3479 = vpack.c.b16 %v3275, %v3274
        %v3480 = vpack.c.b16 %v3277, %v3276
        %v3481 = vpack.c.b16 %v3279, %v3278
        %v3482 = vpack.c.b16 %v3281, %v3280
        %v3483 = vpack.c.b16 %v3283, %v3282
        %v3484 = vpack.c.b16 %v3285, %v3284
        %v3485 = vpack.c.b16 %v3287, %v3286
        %v3486 = vpack.c.b16 %v3289, %v3288
        %v3487 = vpack.c.b16 %v3291, %v3290
        %v3488 = vpack.c.b16 %v3293, %v3292
        %v3489 = vpack.c.b16 %v3295, %v3294
        %v3490 = vpack.c.b16 %v3297, %v3296
        %v3491 = vpack.c.b16 %v3299, %v3298
        %v3492 = vpack.c.b16 %v3301, %v3300
        %v3493 = vpack.c.b16 %v3303, %v3302
        %v3494 = vpack.c.b16 %v3305, %v3304
        %v3495 = vpack.c.b16 %v3307, %v3306
        %v3496 = vpack.c.b16 %v3309, %v3308
        %v3497 = vpack.c.b16 %v3311, %v3310
        %v3498 = vpack.c.b16 %v3313, %v3312
        %v3499 = vpack.c.b16 %v3315, %v3314
        %v3500 = vpack.c.b16 %v3317, %v3316
        %v3501 = vpack.c.b16 %v3319, %v3318
        %v3502 = vpack.c.b16 %v3321, %v3320
        %v3503 = vpack.c.b16 %v3323, %v3322
        %v3504 = vpack.c.b16 %v3325, %v3324
        %v3505 = vpack.c.b16 %v3327, %v3326
        %v3506 = vpack.c.b16 %v3329, %v3328
        %v3507 = vpack.c.b16 %v3331, %v3330
        %v3508 = vpack.c.b16 %v3333, %v3332
        %v3509 = vpack.c.b16 %v3335, %v3334
        %v3510 = vpack.c.b16 %v3337, %v3336
        %v3511 = vpack.c.b16 %v3339, %v3338
        %v3512 = vpack.c.b16 %v3341, %v3340
        %v3513 = vpack.c.b16 %v3343, %v3342
        %v3514 = vpack.c.b16 %v3345, %v3344
        %v3515 = vpack.c.b16 %v3347, %v3346
        %v3516 = vpack.c.b16 %v3349, %v3348
        %v3517 = vpack.c.b16 %v3351, %v3350
        %v3518 = vpack.c.b16 %v3353, %v3352
        %v3519 = vpack.c.b16 %v3355, %v3354
        %v3520 = vpack.c.b16 %v3357, %v3356
        %v3521 = vpack.c.b16 %v3359, %v3358
        %v3522 = vpack.c.b16 %v3361, %v3360
        %v3523 = vpack.c.b16 %v3363, %v3362
        %v3524 = vpack.c.b16 %v3365, %v3364
        %v3525 = vpack.c.b16 %v3367, %v3366
        %v3526 = vpack.c.b16 %v3369, %v3368
        %v3527 = vpack.c.b16 %v3371, %v3370
        %v3528 = vpack.c.b16 %v3373, %v3372
        %v3529 = vpack.c.b16 %v3375, %v3374
        %v3530 = vpack.c.b16 %v3377, %v3376
        %v3531 = vpack.c.b16 %v3379, %v3378
        %v3532 = vpack.c.b16 %v3381, %v3380
        %v3533 = vpack.c.b16 %v3383, %v3382
        %v3534 = vpack.c.b16 %v3385, %v3384
        %v3535 = vpack.c.b16 %v3387, %v3386
        %v3536 = vpack.c.b16 %v3389, %v3388
        %v3537 = vpack.c.b16 %v3391, %v3390
        %v3538 = vpack.c.b16 %v3393, %v3392
        %v3539 = vpack.c.b16 %v3395, %v3394
        %v3540 = vpack.c.b16 %v3397, %v3396
        %v3541 = vpack.c.b16 %v3399, %v3398
        %v3542 = vpack.c.b16 %v3401, %v3400
        %v3543 = vpack.c.b16 %v3403, %v3402
        %v3544 = vpack.c.b16 %v3405, %v3404
        %v3545 = vpack.c.b16 %v3407, %v3406
        %v3546 = vpack.c.b16 %v3409, %v3408
        %v3547 = vpack.c.b16 %v3411, %v3410
        %v3548 = vpack.c.b16 %v3413, %v3412
        %v3549 = vpack.c.b16 %v3415, %v3414
        %v3550 = vpack.c.b16 %v3417, %v3416
        %v3551 = vpack.c.b16 %v3419, %v3418
        %v3552 = vpack.c.b16 %v3421, %v3420
        %v3553 = vpack.c.b16 %v3423, %v3422
        %v3554 = vpack.c.b16 %v3425, %v3424
        %v3555 = vpack.c.b16 %v3427, %v3426
        %3684 = vmatprep.subr.bf16.mxu0 0
        %3685 = vmatpush1.bf16.msra.mxu0 %v3428
        %3686 = vmatprep.subr.bf16.mxu0 0
        %3687 = vmatpush1.bf16.msra.mxu0 %v3429
        %3688 = vmatprep.subr.bf16.mxu0 0
        %3689 = vmatpush1.bf16.msra.mxu0 %v3430
        %3690 = vmatprep.subr.bf16.mxu0 0
        %3691 = vmatpush1.bf16.msra.mxu0 %v3431
        %3692 = vmatprep.subr.bf16.mxu0 0
        %3693 = vmatpush1.bf16.msra.mxu0 %v3432
        %3694 = vmatprep.subr.bf16.mxu0 0
        %3695 = vmatpush1.bf16.msra.mxu0 %v3433
        %3696 = vmatprep.subr.bf16.mxu0 0
        %3697 = vmatpush1.bf16.msra.mxu0 %v3434
        %3698 = vmatprep.subr.bf16.mxu0 0
        %3699 = vmatpush1.bf16.msra.mxu0 %v3435
        %3700 = vmatprep.subr.bf16.mxu0 0
        %3701 = vmatpush1.bf16.msra.mxu0 %v3436
        %3702 = vmatprep.subr.bf16.mxu0 0
        %3703 = vmatpush1.bf16.msra.mxu0 %v3437
        %3704 = vmatprep.subr.bf16.mxu0 0
        %3705 = vmatpush1.bf16.msra.mxu0 %v3438
        %3706 = vmatprep.subr.bf16.mxu0 0
        %3707 = vmatpush1.bf16.msra.mxu0 %v3439
        %3708 = vmatprep.subr.bf16.mxu0 0
        %3709 = vmatpush1.bf16.msra.mxu0 %v3440
        %3710 = vmatprep.subr.bf16.mxu0 0
        %3711 = vmatpush1.bf16.msra.mxu0 %v3441
        %3712 = vmatprep.subr.bf16.mxu0 0
        %3713 = vmatpush1.bf16.msra.mxu0 %v3442
        %3714 = vmatprep.subr.bf16.mxu0 0
        %3715 = vmatpush1.bf16.msra.mxu0 %v3443
        %3716 = vmatprep.mubr.bf16.mxu0 %v2895
        %3717 = vmatmul.mubr.bf16.gmra.mrb[0].mxu0 %v2894
        %v3718 = vpop.f32.mrb[0].mxu0
        %v3719 = vadd.f32 %v2914, %v3718
        %v3720 = vpop.f32.mrb[0].mxu0
        %v3721 = vpop.f32.mrb[0].mxu0
        %v3722 = vadd.f32 %v2914, %v3721
        %v3723 = vpop.f32.mrb[0].mxu0
        %3724 = vdwg.mxu0
        %3725 = vmatprep.subr.bf16.mxu0 0
        %3726 = vmatpush1.bf16.msra.mxu0 %v3444
        %3727 = vmatprep.subr.bf16.mxu0 0
        %3728 = vmatpush1.bf16.msra.mxu0 %v3445
        %3729 = vmatprep.subr.bf16.mxu0 0
        %3730 = vmatpush1.bf16.msra.mxu0 %v3446
        %3731 = vmatprep.subr.bf16.mxu0 0
        %3732 = vmatpush1.bf16.msra.mxu0 %v3447
        %3733 = vmatprep.subr.bf16.mxu0 0
        %3734 = vmatpush1.bf16.msra.mxu0 %v3448
        %3735 = vmatprep.subr.bf16.mxu0 0
        %3736 = vmatpush1.bf16.msra.mxu0 %v3449
        %3737 = vmatprep.subr.bf16.mxu0 0
        %3738 = vmatpush1.bf16.msra.mxu0 %v3450
        %3739 = vmatprep.subr.bf16.mxu0 0
        %3740 = vmatpush1.bf16.msra.mxu0 %v3451
        %3741 = vmatprep.subr.bf16.mxu0 0
        %3742 = vmatpush1.bf16.msra.mxu0 %v3452
        %3743 = vmatprep.subr.bf16.mxu0 0
        %3744 = vmatpush1.bf16.msra.mxu0 %v3453
        %3745 = vmatprep.subr.bf16.mxu0 0
        %3746 = vmatpush1.bf16.msra.mxu0 %v3454
        %3747 = vmatprep.subr.bf16.mxu0 0
        %3748 = vmatpush1.bf16.msra.mxu0 %v3455
        %3749 = vmatprep.subr.bf16.mxu0 0
        %3750 = vmatpush1.bf16.msra.mxu0 %v3456
        %3751 = vmatprep.subr.bf16.mxu0 0
        %3752 = vmatpush1.bf16.msra.mxu0 %v3457
        %3753 = vmatprep.subr.bf16.mxu0 0
        %3754 = vmatpush1.bf16.msra.mxu0 %v3458
        %3755 = vmatprep.subr.bf16.mxu0 0
        %3756 = vmatpush1.bf16.msra.mxu0 %v3459
        %3757 = vmatprep.mubr.bf16.mxu0 %v2897
        %3758 = vmatmul.mubr.bf16.gmra.mrb[0].mxu0 %v2896
        %v3759 = vpop.f32.mrb[0].mxu0
        %v3760 = vadd.f32 %v3719, %v3759
        %v3761 = vpop.f32.mrb[0].mxu0
        %v3762 = vpop.f32.mrb[0].mxu0
        %v3763 = vadd.f32 %v3722, %v3762
        %v3764 = vpop.f32.mrb[0].mxu0
        %3765 = vdwg.mxu0
        %3766 = vmatprep.subr.bf16.mxu0 0
        %3767 = vmatpush1.bf16.msra.mxu0 %v3460
        %3768 = vmatprep.subr.bf16.mxu0 0
        %3769 = vmatpush1.bf16.msra.mxu0 %v3461
        %3770 = vmatprep.subr.bf16.mxu0 0
        %3771 = vmatpush1.bf16.msra.mxu0 %v3462
        %3772 = vmatprep.subr.bf16.mxu0 0
        %3773 = vmatpush1.bf16.msra.mxu0 %v3463
        %3774 = vmatprep.subr.bf16.mxu0 0
        %3775 = vmatpush1.bf16.msra.mxu0 %v3464
        %3776 = vmatprep.subr.bf16.mxu0 0
        %3777 = vmatpush1.bf16.msra.mxu0 %v3465
        %3778 = vmatprep.subr.bf16.mxu0 0
        %3779 = vmatpush1.bf16.msra.mxu0 %v3466
        %3780 = vmatprep.subr.bf16.mxu0 0
        %3781 = vmatpush1.bf16.msra.mxu0 %v3467
        %3782 = vmatprep.subr.bf16.mxu0 0
        %3783 = vmatpush1.bf16.msra.mxu0 %v3468
        %3784 = vmatprep.subr.bf16.mxu0 0
        %3785 = vmatpush1.bf16.msra.mxu0 %v3469
        %3786 = vmatprep.subr.bf16.mxu0 0
        %3787 = vmatpush1.bf16.msra.mxu0 %v3470
        %3788 = vmatprep.subr.bf16.mxu0 0
        %3789 = vmatpush1.bf16.msra.mxu0 %v3471
        %3790 = vmatprep.subr.bf16.mxu0 0
        %3791 = vmatpush1.bf16.msra.mxu0 %v3472
        %3792 = vmatprep.subr.bf16.mxu0 0
        %3793 = vmatpush1.bf16.msra.mxu0 %v3473
        %3794 = vmatprep.subr.bf16.mxu0 0
        %3795 = vmatpush1.bf16.msra.mxu0 %v3474
        %3796 = vmatprep.subr.bf16.mxu0 0
        %3797 = vmatpush1.bf16.msra.mxu0 %v3475
        %3798 = vmatprep.mubr.bf16.mxu0 %v2899
        %3799 = vmatmul.mubr.bf16.gmra.mrb[0].mxu0 %v2898
        %v3800 = vpop.f32.mrb[0].mxu0
        %v3801 = vadd.f32 %v3760, %v3800
        %v3802 = vpop.f32.mrb[0].mxu0
        %v3803 = vpop.f32.mrb[0].mxu0
        %v3804 = vadd.f32 %v3763, %v3803
        %v3805 = vpop.f32.mrb[0].mxu0
        %3806 = vdwg.mxu0
        %3807 = vmatprep.subr.bf16.mxu0 0
        %3808 = vmatpush1.bf16.msra.mxu0 %v3476
        %3809 = vmatprep.subr.bf16.mxu0 0
        %3810 = vmatpush1.bf16.msra.mxu0 %v3477
        %3811 = vmatprep.subr.bf16.mxu0 0
        %3812 = vmatpush1.bf16.msra.mxu0 %v3478
        %3813 = vmatprep.subr.bf16.mxu0 0
        %3814 = vmatpush1.bf16.msra.mxu0 %v3479
        %3815 = vmatprep.subr.bf16.mxu0 0
        %3816 = vmatpush1.bf16.msra.mxu0 %v3480
        %3817 = vmatprep.subr.bf16.mxu0 0
        %3818 = vmatpush1.bf16.msra.mxu0 %v3481
        %3819 = vmatprep.subr.bf16.mxu0 0
        %3820 = vmatpush1.bf16.msra.mxu0 %v3482
        %3821 = vmatprep.subr.bf16.mxu0 0
        %3822 = vmatpush1.bf16.msra.mxu0 %v3483
        %3823 = vmatprep.subr.bf16.mxu0 0
        %3824 = vmatpush1.bf16.msra.mxu0 %v3484
        %3825 = vmatprep.subr.bf16.mxu0 0
        %3826 = vmatpush1.bf16.msra.mxu0 %v3485
        %3827 = vmatprep.subr.bf16.mxu0 0
        %3828 = vmatpush1.bf16.msra.mxu0 %v3486
        %3829 = vmatprep.subr.bf16.mxu0 0
        %3830 = vmatpush1.bf16.msra.mxu0 %v3487
        %3831 = vmatprep.subr.bf16.mxu0 0
        %3832 = vmatpush1.bf16.msra.mxu0 %v3488
        %3833 = vmatprep.subr.bf16.mxu0 0
        %3834 = vmatpush1.bf16.msra.mxu0 %v3489
        %3835 = vmatprep.subr.bf16.mxu0 0
        %3836 = vmatpush1.bf16.msra.mxu0 %v3490
        %3837 = vmatprep.subr.bf16.mxu0 0
        %3838 = vmatpush1.bf16.msra.mxu0 %v3491
        %3839 = vmatprep.mubr.bf16.mxu0 %v2901
        %3840 = vmatmul.mubr.bf16.gmra.mrb[0].mxu0 %v2900
        %v3841 = vpop.f32.mrb[0].mxu0
        %v3842 = vadd.f32 %v3801, %v3841
        %v3843 = vpop.f32.mrb[0].mxu0
        %v3844 = vpop.f32.mrb[0].mxu0
        %v3845 = vadd.f32 %v3804, %v3844
        %v3846 = vpop.f32.mrb[0].mxu0
        %3847 = vdwg.mxu0
        %3848 = vmatprep.subr.bf16.mxu0 0
        %3849 = vmatpush1.bf16.msra.mxu0 %v3492
        %3850 = vmatprep.subr.bf16.mxu0 0
        %3851 = vmatpush1.bf16.msra.mxu0 %v3493
        %3852 = vmatprep.subr.bf16.mxu0 0
        %3853 = vmatpush1.bf16.msra.mxu0 %v3494
        %3854 = vmatprep.subr.bf16.mxu0 0
        %3855 = vmatpush1.bf16.msra.mxu0 %v3495
        %3856 = vmatprep.subr.bf16.mxu0 0
        %3857 = vmatpush1.bf16.msra.mxu0 %v3496
        %3858 = vmatprep.subr.bf16.mxu0 0
        %3859 = vmatpush1.bf16.msra.mxu0 %v3497
        %3860 = vmatprep.subr.bf16.mxu0 0
        %3861 = vmatpush1.bf16.msra.mxu0 %v3498
        %3862 = vmatprep.subr.bf16.mxu0 0
        %3863 = vmatpush1.bf16.msra.mxu0 %v3499
        %3864 = vmatprep.subr.bf16.mxu0 0
        %3865 = vmatpush1.bf16.msra.mxu0 %v3500
        %3866 = vmatprep.subr.bf16.mxu0 0
        %3867 = vmatpush1.bf16.msra.mxu0 %v3501
        %3868 = vmatprep.subr.bf16.mxu0 0
        %3869 = vmatpush1.bf16.msra.mxu0 %v3502
        %3870 = vmatprep.subr.bf16.mxu0 0
        %3871 = vmatpush1.bf16.msra.mxu0 %v3503
        %3872 = vmatprep.subr.bf16.mxu0 0
        %3873 = vmatpush1.bf16.msra.mxu0 %v3504
        %3874 = vmatprep.subr.bf16.mxu0 0
        %3875 = vmatpush1.bf16.msra.mxu0 %v3505
        %3876 = vmatprep.subr.bf16.mxu0 0
        %3877 = vmatpush1.bf16.msra.mxu0 %v3506
        %3878 = vmatprep.subr.bf16.mxu0 0
        %3879 = vmatpush1.bf16.msra.mxu0 %v3507
        %3880 = vmatprep.mubr.bf16.mxu0 %v2903
        %3881 = vmatmul.mubr.bf16.gmra.mrb[0].mxu0 %v2902
        %v3882 = vpop.f32.mrb[0].mxu0
        %v3883 = vadd.f32 %v3842, %v3882
        %v3884 = vpop.f32.mrb[0].mxu0
        %v3885 = vpop.f32.mrb[0].mxu0
        %v3886 = vadd.f32 %v3845, %v3885
        %v3887 = vpop.f32.mrb[0].mxu0
        %3888 = vdwg.mxu0
        %3889 = vmatprep.subr.bf16.mxu0 0
        %3890 = vmatpush1.bf16.msra.mxu0 %v3508
        %3891 = vmatprep.subr.bf16.mxu0 0
        %3892 = vmatpush1.bf16.msra.mxu0 %v3509
        %3893 = vmatprep.subr.bf16.mxu0 0
        %3894 = vmatpush1.bf16.msra.mxu0 %v3510
        %3895 = vmatprep.subr.bf16.mxu0 0
        %3896 = vmatpush1.bf16.msra.mxu0 %v3511
        %3897 = vmatprep.subr.bf16.mxu0 0
        %3898 = vmatpush1.bf16.msra.mxu0 %v3512
        %3899 = vmatprep.subr.bf16.mxu0 0
        %3900 = vmatpush1.bf16.msra.mxu0 %v3513
        %3901 = vmatprep.subr.bf16.mxu0 0
        %3902 = vmatpush1.bf16.msra.mxu0 %v3514
        %3903 = vmatprep.subr.bf16.mxu0 0
        %3904 = vmatpush1.bf16.msra.mxu0 %v3515
        %3905 = vmatprep.subr.bf16.mxu0 0
        %3906 = vmatpush1.bf16.msra.mxu0 %v3516
        %3907 = vmatprep.subr.bf16.mxu0 0
        %3908 = vmatpush1.bf16.msra.mxu0 %v3517
        %3909 = vmatprep.subr.bf16.mxu0 0
        %3910 = vmatpush1.bf16.msra.mxu0 %v3518
        %3911 = vmatprep.subr.bf16.mxu0 0
        %3912 = vmatpush1.bf16.msra.mxu0 %v3519
        %3913 = vmatprep.subr.bf16.mxu0 0
        %3914 = vmatpush1.bf16.msra.mxu0 %v3520
        %3915 = vmatprep.subr.bf16.mxu0 0
        %3916 = vmatpush1.bf16.msra.mxu0 %v3521
        %3917 = vmatprep.subr.bf16.mxu0 0
        %3918 = vmatpush1.bf16.msra.mxu0 %v3522
        %3919 = vmatprep.subr.bf16.mxu0 0
        %3920 = vmatpush1.bf16.msra.mxu0 %v3523
        %3921 = vmatprep.mubr.bf16.mxu0 %v2905
        %3922 = vmatmul.mubr.bf16.gmra.mrb[0].mxu0 %v2904
        %v3923 = vpop.f32.mrb[0].mxu0
        %v3924 = vadd.f32 %v3883, %v3923
        %v3925 = vpop.f32.mrb[0].mxu0
        %v3926 = vpop.f32.mrb[0].mxu0
        %v3927 = vadd.f32 %v3886, %v3926
        %v3928 = vpop.f32.mrb[0].mxu0
        %3929 = vdwg.mxu0
        %3930 = vmatprep.subr.bf16.mxu0 0
        %3931 = vmatpush1.bf16.msra.mxu0 %v3524
        %3932 = vmatprep.subr.bf16.mxu0 0
        %3933 = vmatpush1.bf16.msra.mxu0 %v3525
        %3934 = vmatprep.subr.bf16.mxu0 0
        %3935 = vmatpush1.bf16.msra.mxu0 %v3526
        %3936 = vmatprep.subr.bf16.mxu0 0
        %3937 = vmatpush1.bf16.msra.mxu0 %v3527
        %3938 = vmatprep.subr.bf16.mxu0 0
        %3939 = vmatpush1.bf16.msra.mxu0 %v3528
        %3940 = vmatprep.subr.bf16.mxu0 0
        %3941 = vmatpush1.bf16.msra.mxu0 %v3529
        %3942 = vmatprep.subr.bf16.mxu0 0
        %3943 = vmatpush1.bf16.msra.mxu0 %v3530
        %3944 = vmatprep.subr.bf16.mxu0 0
        %3945 = vmatpush1.bf16.msra.mxu0 %v3531
        %3946 = vmatprep.subr.bf16.mxu0 0
        %3947 = vmatpush1.bf16.msra.mxu0 %v3532
        %3948 = vmatprep.subr.bf16.mxu0 0
        %3949 = vmatpush1.bf16.msra.mxu0 %v3533
        %3950 = vmatprep.subr.bf16.mxu0 0
        %3951 = vmatpush1.bf16.msra.mxu0 %v3534
        %3952 = vmatprep.subr.bf16.mxu0 0
        %3953 = vmatpush1.bf16.msra.mxu0 %v3535
        %3954 = vmatprep.subr.bf16.mxu0 0
        %3955 = vmatpush1.bf16.msra.mxu0 %v3536
        %3956 = vmatprep.subr.bf16.mxu0 0
        %3957 = vmatpush1.bf16.msra.mxu0 %v3537
        %3958 = vmatprep.subr.bf16.mxu0 0
        %3959 = vmatpush1.bf16.msra.mxu0 %v3538
        %3960 = vmatprep.subr.bf16.mxu0 0
        %3961 = vmatpush1.bf16.msra.mxu0 %v3539
        %3962 = vmatprep.mubr.bf16.mxu0 %v2907
        %3963 = vmatmul.mubr.bf16.gmra.mrb[0].mxu0 %v2906
        %v3964 = vpop.f32.mrb[0].mxu0
        %v3965 = vadd.f32 %v3924, %v3964
        %v3966 = vpop.f32.mrb[0].mxu0
        %v3967 = vpop.f32.mrb[0].mxu0
        %v3968 = vadd.f32 %v3927, %v3967
        %v3969 = vpop.f32.mrb[0].mxu0
        %3970 = vdwg.mxu0
        %3971 = vmatprep.subr.bf16.mxu0 0
        %3972 = vmatpush1.bf16.msra.mxu0 %v3540
        %3973 = vmatprep.subr.bf16.mxu0 0
        %3974 = vmatpush1.bf16.msra.mxu0 %v3541
        %3975 = vmatprep.subr.bf16.mxu0 0
        %3976 = vmatpush1.bf16.msra.mxu0 %v3542
        %3977 = vmatprep.subr.bf16.mxu0 0
        %3978 = vmatpush1.bf16.msra.mxu0 %v3543
        %3979 = vmatprep.subr.bf16.mxu0 0
        %3980 = vmatpush1.bf16.msra.mxu0 %v3544
        %3981 = vmatprep.subr.bf16.mxu0 0
        %3982 = vmatpush1.bf16.msra.mxu0 %v3545
        %3983 = vmatprep.subr.bf16.mxu0 0
        %3984 = vmatpush1.bf16.msra.mxu0 %v3546
        %3985 = vmatprep.subr.bf16.mxu0 0
        %3986 = vmatpush1.bf16.msra.mxu0 %v3547
        %3987 = vmatprep.subr.bf16.mxu0 0
        %3988 = vmatpush1.bf16.msra.mxu0 %v3548
        %3989 = vmatprep.subr.bf16.mxu0 0
        %3990 = vmatpush1.bf16.msra.mxu0 %v3549
        %3991 = vmatprep.subr.bf16.mxu0 0
        %3992 = vmatpush1.bf16.msra.mxu0 %v3550
        %3993 = vmatprep.subr.bf16.mxu0 0
        %3994 = vmatpush1.bf16.msra.mxu0 %v3551
        %3995 = vmatprep.subr.bf16.mxu0 0
        %3996 = vmatpush1.bf16.msra.mxu0 %v3552
        %3997 = vmatprep.subr.bf16.mxu0 0
        %3998 = vmatpush1.bf16.msra.mxu0 %v3553
        %3999 = vmatprep.subr.bf16.mxu0 0
        %4000 = vmatpush1.bf16.msra.mxu0 %v3554
        %4001 = vmatprep.subr.bf16.mxu0 0
        %4002 = vmatpush1.bf16.msra.mxu0 %v3555
        %4003 = vmatprep.mubr.bf16.mxu0 %v2909
        %4004 = vmatmul.mubr.bf16.gmra.mrb[0].mxu0 %v2908
        %v4005 = vpop.f32.mrb[0].mxu0
        %v4006 = vadd.f32 %v3965, %v4005
        %v4007 = vpop.f32.mrb[0].mxu0
        %v4008 = vpop.f32.mrb[0].mxu0
        %v4009 = vadd.f32 %v3968, %v4008
        %v4010 = vpop.f32.mrb[0].mxu0
        %4011 = vdwg.mxu0
        %v4012 = vadd.f32 %v2270, %v4006
        %v4013 = vadd.f32 %v2271, %v4009
        %v4014 = vsel %vm1501, %v4012, 0.0
        %4015 = vadd.xlane.f32.xlu0 %v4014
        %v4016 = vpop.xlane.xlu0 %4015
        %v4017 = vsel %vm1501, %v4013, 0.0
        %4018 = vadd.xlane.f32.xlu0 %v4017
        %v4019 = vpop.xlane.xlu0 %4018
        %v4020 = vmul.f32 %v4016, %v2235
        %v4021 = vmul.f32 %v4019, %v2235
        %v4022 = vsub.f32 %v4012, %v4020
        %v4023 = vsub.f32 %v4013, %v4021
        %v4024 = vmul.f32 %v4022, %v4022
        %v4025 = vmul.f32 %v4023, %v4023
        %v4026 = vsel %vm1501, %v4024, 0.0
        %4027 = vadd.xlane.f32.xlu0 %v4026
        %v4028 = vpop.xlane.xlu0 %4027
        %v4029 = vsel %vm1501, %v4025, 0.0
        %4030 = vadd.xlane.f32.xlu0 %v4029
        %v4031 = vpop.xlane.xlu0 %4030
        %v4032 = vmul.f32 %v4028, %v2235
        %v4033 = vmul.f32 %v4031, %v2235
        %v4034 = vadd.f32 %v4032, 1e-05
        %v4035 = vadd.f32 %v4033, 1e-05
        %v4036 = vrsqrt.pop %v4034
        %v4037 = vrsqrt.pop %v4035
        %v4038 = vmul.f32 %v4022, %v4036
        %v4039 = vmul.f32 %v4023, %v4037
        %v4041 = vlaneseq
        %v4042 = vshrl.u32 %v4041, 7
        %v4043 = vsub.s32 0, %v4042
        %v4044 = vrot.slane %v1372, %v4043
        %v4046 = vmul.f32 %v4038, %v4044
        %v4047 = vmul.f32 %v4039, %v4044
        %v4049 = vlaneseq
        %v4050 = vshrl.u32 %v4049, 7
        %v4051 = vsub.s32 0, %v4050
        %v4052 = vrot.slane %v1373, %v4051
        %v4054 = vadd.f32 %v4046, %v4052
        %v4055 = vadd.f32 %v4047, %v4052
        %v4056 = vpack.c.bf16 %v4055, %v4054
        %v4058 = vlaneseq
        %v4059 = vshrl.u32 %v4058, 7
        %v4060 = vsub.s32 0, %v4059
        %v4061 = vrot.slane %v1385, %v4060
        %v4067 = vunpack.c.l.b16 %v1381
        %v4068 = vunpack.c.l.b16 %v1382
        %v4069 = vunpack.c.l.b16 %v1383
        %v4070 = vunpack.c.l.b16 %v1384
        %v4071 = vpack.c.b16 %v4068, %v4067
        %v4072 = vpack.c.b16 %v4070, %v4069
        %v4076 = vsel %vm1501, %v4056, 0
        %4078 = vmatprep.subr.bf16.mxu0 0
        %4079 = vmatpush1.bf16.msra.mxu0 %v4071
        %4080 = vmatprep.subr.bf16.mxu0 0
        %4081 = vmatpush1.bf16.msra.mxu0 %v4072
        %4082 = vmatprep.subr.bf16.mxu0 0
        %4083 = vmatpush1.bf16.msra.mxu0 0
        %4084 = vmatprep.subr.bf16.mxu0 0
        %4085 = vmatpush1.bf16.msra.mxu0 0
        %4086 = vmatprep.subr.bf16.mxu0 0
        %4087 = vmatpush1.bf16.msra.mxu0 0
        %4088 = vmatprep.subr.bf16.mxu0 0
        %4089 = vmatpush1.bf16.msra.mxu0 0
        %4090 = vmatprep.subr.bf16.mxu0 0
        %4091 = vmatpush1.bf16.msra.mxu0 0
        %4092 = vmatprep.subr.bf16.mxu0 0
        %4093 = vmatpush1.bf16.msra.mxu0 0
        %4094 = vmatprep.subr.bf16.mxu0 0
        %4095 = vmatpush1.bf16.msra.mxu0 0
        %4096 = vmatprep.subr.bf16.mxu0 0
        %4097 = vmatpush1.bf16.msra.mxu0 0
        %4098 = vmatprep.subr.bf16.mxu0 0
        %4099 = vmatpush1.bf16.msra.mxu0 0
        %4100 = vmatprep.subr.bf16.mxu0 0
        %4101 = vmatpush1.bf16.msra.mxu0 0
        %4102 = vmatprep.subr.bf16.mxu0 0
        %4103 = vmatpush1.bf16.msra.mxu0 0
        %4104 = vmatprep.subr.bf16.mxu0 0
        %4105 = vmatpush1.bf16.msra.mxu0 0
        %4106 = vmatprep.subr.bf16.mxu0 0
        %4107 = vmatpush1.bf16.msra.mxu0 0
        %4108 = vmatprep.subr.bf16.mxu0 0
        %4109 = vmatpush1.bf16.msra.mxu0 0
        %4110 = vmatprep.mubr.bf16.mxu0 0
        %4111 = vmatmul.mubr.bf16.gmra.mrb[0].mxu0 %v4076
        %v4112 = vpop.f32.mrb[0].mxu0
        %v4113 = vadd.f32 %v4061, %v4112
        %v4114 = vpop.f32.mrb[0].mxu0
        %v4115 = vpop.f32.mrb[0].mxu0
        %v4116 = vadd.f32 %v4061, %v4115
        %v4117 = vpop.f32.mrb[0].mxu0
        %4118 = vdwg.mxu0
        %v4119 = vpack.c.bf16 %v4116, %v4113
        %v4121 = vlaneseq
        %v4122 = vshrl.u32 %v4121, 7
        %v4123 = vsub.s32 0, %v4122
        %v4124 = vrot.slane %v1378, %v4123
        %v4130 = vunpack.c.l.b16 %v1374
        %v4131 = vunpack.c.l.b16 %v1375
        %v4132 = vunpack.c.l.b16 %v1376
        %v4133 = vunpack.c.l.b16 %v1377
        %v4134 = vpack.c.b16 %v4131, %v4130
        %v4135 = vpack.c.b16 %v4133, %v4132
        %v4139 = vsel %vm1501, %v4119, 0
        %4141 = vmatprep.subr.bf16.mxu0 0
        %4142 = vmatpush1.bf16.msra.mxu0 %v4134
        %4143 = vmatprep.subr.bf16.mxu0 0
        %4144 = vmatpush1.bf16.msra.mxu0 %v4135
        %4145 = vmatprep.subr.bf16.mxu0 0
        %4146 = vmatpush1.bf16.msra.mxu0 0
        %4147 = vmatprep.subr.bf16.mxu0 0
        %4148 = vmatpush1.bf16.msra.mxu0 0
        %4149 = vmatprep.subr.bf16.mxu0 0
        %4150 = vmatpush1.bf16.msra.mxu0 0
        %4151 = vmatprep.subr.bf16.mxu0 0
        %4152 = vmatpush1.bf16.msra.mxu0 0
        %4153 = vmatprep.subr.bf16.mxu0 0
        %4154 = vmatpush1.bf16.msra.mxu0 0
        %4155 = vmatprep.subr.bf16.mxu0 0
        %4156 = vmatpush1.bf16.msra.mxu0 0
        %4157 = vmatprep.subr.bf16.mxu0 0
        %4158 = vmatpush1.bf16.msra.mxu0 0
        %4159 = vmatprep.subr.bf16.mxu0 0
        %4160 = vmatpush1.bf16.msra.mxu0 0
        %4161 = vmatprep.subr.bf16.mxu0 0
        %4162 = vmatpush1.bf16.msra.mxu0 0
        %4163 = vmatprep.subr.bf16.mxu0 0
        %4164 = vmatpush1.bf16.msra.mxu0 0
        %4165 = vmatprep.subr.bf16.mxu0 0
        %4166 = vmatpush1.bf16.msra.mxu0 0
        %4167 = vmatprep.subr.bf16.mxu0 0
        %4168 = vmatpush1.bf16.msra.mxu0 0
        %4169 = vmatprep.subr.bf16.mxu0 0
        %4170 = vmatpush1.bf16.msra.mxu0 0
        %4171 = vmatprep.subr.bf16.mxu0 0
        %4172 = vmatpush1.bf16.msra.mxu0 0
        %4173 = vmatprep.mubr.bf16.mxu0 0
        %4174 = vmatmul.mubr.bf16.gmra.mrb[0].mxu0 %v4139
        %v4175 = vpop.f32.mrb[0].mxu0
        %v4176 = vadd.f32 %v4124, %v4175
        %v4177 = vpop.f32.mrb[0].mxu0
        %v4178 = vpop.f32.mrb[0].mxu0
        %v4179 = vadd.f32 %v4124, %v4178
        %v4180 = vpop.f32.mrb[0].mxu0
        %4181 = vdwg.mxu0
        %v4182 = vsub.f32 %v4176, %v1423
        %v4183 = vsub.f32 %v4179, %v1424
        %v4184 = vmul.f32 %v4182, %v4182
        %v4185 = vmul.f32 %v4183, %v4183
        %v4186 = vsel %vm1388, %v4184, 0.0
        %v4187 = vsel %vm1388, %v4185, 0.0
        %v4188 = vadd.f32 %v4186, %v4187
        %4189 = vadd.xlane.f32.xlu0 %v4188
        %v4190 = vpop.xlane.xlu0 %4189
        %v4191 = vrot.slane %v4190, 4
        %v4192 = vadd.f32 %v4190, %v4191
        %v4193 = vrot.slane %v4192, 2
        %v4194 = vadd.f32 %v4192, %v4193
        %v4195 = vrot.slane %v4194, 1
        %v4196 = vadd.f32 %v4194, %v4195
        %s4197 = vtos %v4196
        %v4198 = vrcp.pop 256.0
        %s4199 = vtos %v4198
        %s4200 = smul.f32 %s4197, %s4199
        %p4201 = scmp.eq.s32.totalorder %s36, 0
        // Predicated region
        $region117: #{transformer_encoder_forward.1} parent=115 // pred_check
          %p4202 = pneg %p4201
        $region118: #{transformer_encoder_forward.1} parent=115 // pred_check_branch
          %4204 = sbr.rel (%p4202) target = $region120
        $region119: #{transformer_encoder_forward.1} parent=115 // pred_region
          %4205 = vst.msk [vmem:[#allocation2] sm:$0xff] %vm1501, %v4113
          %4206 = vst.msk [vmem:[#allocation2 + $0x8] sm:$0xff] %vm1501, %v4116
          %s4207 = scalar_lea.smem [#allocation3], 0
          %4208 = sst [smem:[%s4207]] %s4200
        $region120: #{transformer_encoder_forward.1} parent=115 // pred_fallthru
          _
        %p4209 = scmp.eq.s32.totalorder %s36, 1
        // Predicated region
        $region121: #{transformer_encoder_forward.1} parent=115 // pred_check
          %p4210 = pneg %p4209
        $region122: #{transformer_encoder_forward.1} parent=115 // pred_check_branch
          %4212 = sbr.rel (%p4210) target = $region124
        $region123: #{transformer_encoder_forward.1} parent=115 // pred_region
          %v4213 = vld [vmem:[#allocation2] sm:$0xff]
          %v4214 = vld [vmem:[#allocation2 + $0x8] sm:$0xff]
          %v4215 = vsel %vm1501, %v4113, 0.0
          %v4216 = vrot.slane %v4215, 4
          %v4217 = vadd.f32 %v4215, %v4216
          %v4218 = vrot.slane %v4217, 2
          %v4219 = vadd.f32 %v4217, %v4218
          %v4220 = vrot.slane %v4219, 1
          %v4221 = vadd.f32 %v4219, %v4220
          %v4222 = vsel %vm1501, %v4116, 0.0
          %v4223 = vrot.slane %v4222, 4
          %v4224 = vadd.f32 %v4222, %v4223
          %v4225 = vrot.slane %v4224, 2
          %v4226 = vadd.f32 %v4224, %v4225
          %v4227 = vrot.slane %v4226, 1
          %v4228 = vadd.f32 %v4226, %v4227
          %v4229 = vrcp.pop 8.0
          %v4230 = vmul.f32 %v4221, %v4229
          %v4231 = vmul.f32 %v4228, %v4229
          %vm4234 = vcmask 1041409
          %v4235 = vsel %vm4234, %v4231, %v4230
          %v4237 = vsel %vm1501, %v4213, 0
          %v4240 = vsel %vm1501, %v4214, 0
          %v4242 = vsel %vm1501, %v4235, 0
          %4244 = vmatprep.subr.mxu0 0.0
          %4245 = vmatpush1.xpose.msra.mxu0 %v4242
          %4246 = vmatprep.subr.mxu0 0.0
          %4247 = vmatpush1.xpose.msra.mxu0 0.0
          %4248 = vmatprep.subr.mxu0 0.0
          %4249 = vmatpush1.xpose.msra.mxu0 0.0
          %4250 = vmatprep.subr.mxu0 0.0
          %4251 = vmatpush1.xpose.msra.mxu0 0.0
          %4252 = vmatprep.subr.mxu0 0.0
          %4253 = vmatpush1.xpose.msra.mxu0 0.0
          %4254 = vmatprep.subr.mxu0 0.0
          %4255 = vmatpush1.xpose.msra.mxu0 0.0
          %4256 = vmatprep.subr.mxu0 0.0
          %4257 = vmatpush1.xpose.msra.mxu0 0.0
          %4258 = vmatprep.subr.mxu0 0.0
          %4259 = vmatpush1.xpose.msra.mxu0 0.0
          %4260 = vmatprep.subr.mxu0 0.0
          %4261 = vmatpush1.xpose.msra.mxu0 0.0
          %4262 = vmatprep.subr.mxu0 0.0
          %4263 = vmatpush1.xpose.msra.mxu0 0.0
          %4264 = vmatprep.subr.mxu0 0.0
          %4265 = vmatpush1.xpose.msra.mxu0 0.0
          %4266 = vmatprep.subr.mxu0 0.0
          %4267 = vmatpush1.xpose.msra.mxu0 0.0
          %4268 = vmatprep.subr.mxu0 0.0
          %4269 = vmatpush1.xpose.msra.mxu0 0.0
          %4270 = vmatprep.subr.mxu0 0.0
          %4271 = vmatpush1.xpose.msra.mxu0 0.0
          %4272 = vmatprep.subr.mxu0 0.0
          %4273 = vmatpush1.xpose.msra.mxu0 0.0
          %4274 = vmatprep.subr.mxu0 0.0
          %4275 = vmatpush1.xpose.msra.mxu0 0.0
          %4276 = vmatprep.subr.mxu0 0.0
          %4277 = vmatpush1.xpose.msra.mxu0 0.0
          %4278 = vmatprep.subr.mxu0 0.0
          %4279 = vmatpush1.xpose.msra.mxu0 0.0
          %4280 = vmatprep.subr.mxu0 0.0
          %4281 = vmatpush1.xpose.msra.mxu0 0.0
          %4282 = vmatprep.subr.mxu0 0.0
          %4283 = vmatpush1.xpose.msra.mxu0 0.0
          %4284 = vmatprep.subr.mxu0 0.0
          %4285 = vmatpush1.xpose.msra.mxu0 0.0
          %4286 = vmatprep.subr.mxu0 0.0
          %4287 = vmatpush1.xpose.msra.mxu0 0.0
          %4288 = vmatprep.subr.mxu0 0.0
          %4289 = vmatpush1.xpose.msra.mxu0 0.0
          %4290 = vmatprep.subr.mxu0 0.0
          %4291 = vmatpush1.xpose.msra.mxu0 0.0
          %4292 = vmatprep.subr.mxu0 0.0
          %4293 = vmatpush1.xpose.msra.mxu0 0.0
          %4294 = vmatprep.subr.mxu0 0.0
          %4295 = vmatpush1.xpose.msra.mxu0 0.0
          %4296 = vmatprep.subr.mxu0 0.0
          %4297 = vmatpush1.xpose.msra.mxu0 0.0
          %4298 = vmatprep.subr.mxu0 0.0
          %4299 = vmatpush1.xpose.msra.mxu0 0.0
          %4300 = vmatprep.subr.mxu0 0.0
          %4301 = vmatpush1.xpose.msra.mxu0 0.0
          %4302 = vmatprep.subr.mxu0 0.0
          %4303 = vmatpush1.xpose.msra.mxu0 0.0
          %4304 = vmatprep.subr.mxu0 0.0
          %4305 = vmatpush1.xpose.msra.mxu0 0.0
          %4306 = vmatprep.subr.mxu0 0.0
          %4307 = vmatpush1.xpose.msra.mxu0 0.0
          %4308 = vmatprep.mubr.f32.mxu0 0.0
          %4309 = vmatmul.mubr.f32.gmra.mrb[0].mxu0 %v4237
          %v4310 = vpop.f32.mrb[0].mxu0
          %v4311 = vadd.f32 0.0, %v4310
          %v4312 = vpop.f32.mrb[0].mxu0
          %4313 = vmatprep.mubr.f32.mxu0 0.0
          %4314 = vmatmul.mubr.f32.gmra.mrb[0].mxu0 %v4240
          %v4315 = vpop.f32.mrb[0].mxu0
          %v4316 = vadd.f32 0.0, %v4315
          %v4317 = vpop.f32.mrb[0].mxu0
          %4318 = vdwg.mxu0
          %v4319 = vmul.f32 %v4213, %v4213
          %v4320 = vmul.f32 %v4214, %v4214
          %v4321 = vsel %vm1501, %v4319, 0.0
          %4322 = vadd.xlane.f32.xlu0 %v4321
          %v4323 = vpop.xlane.xlu0 %4322
          %v4324 = vsel %vm1501, %v4320, 0.0
          %4325 = vadd.xlane.f32.xlu0 %v4324
          %v4326 = vpop.xlane.xlu0 %4325
          %v4327 = vmul.f32 %v4230, %v4230
          %v4328 = vmul.f32 %v4231, %v4231
          %v4331 = vsel %vm4234, %v4328, %v4327
          %v4333 = vsel %vm1501, 1.0, 0
          %v4335 = vsel %vm1501, %v4331, 0
          %4337 = vmatprep.subr.mxu0 0.0
          %4338 = vmatpush1.xpose.msra.mxu0 %v4335
          %4339 = vmatprep.subr.mxu0 0.0
          %4340 = vmatpush1.xpose.msra.mxu0 0.0
          %4341 = vmatprep.subr.mxu0 0.0
          %4342 = vmatpush1.xpose.msra.mxu0 0.0
          %4343 = vmatprep.subr.mxu0 0.0
          %4344 = vmatpush1.xpose.msra.mxu0 0.0
          %4345 = vmatprep.subr.mxu0 0.0
          %4346 = vmatpush1.xpose.msra.mxu0 0.0
          %4347 = vmatprep.subr.mxu0 0.0
          %4348 = vmatpush1.xpose.msra.mxu0 0.0
          %4349 = vmatprep.subr.mxu0 0.0
          %4350 = vmatpush1.xpose.msra.mxu0 0.0
          %4351 = vmatprep.subr.mxu0 0.0
          %4352 = vmatpush1.xpose.msra.mxu0 0.0
          %4353 = vmatprep.subr.mxu0 0.0
          %4354 = vmatpush1.xpose.msra.mxu0 0.0
          %4355 = vmatprep.subr.mxu0 0.0
          %4356 = vmatpush1.xpose.msra.mxu0 0.0
          %4357 = vmatprep.subr.mxu0 0.0
          %4358 = vmatpush1.xpose.msra.mxu0 0.0
          %4359 = vmatprep.subr.mxu0 0.0
          %4360 = vmatpush1.xpose.msra.mxu0 0.0
          %4361 = vmatprep.subr.mxu0 0.0
          %4362 = vmatpush1.xpose.msra.mxu0 0.0
          %4363 = vmatprep.subr.mxu0 0.0
          %4364 = vmatpush1.xpose.msra.mxu0 0.0
          %4365 = vmatprep.subr.mxu0 0.0
          %4366 = vmatpush1.xpose.msra.mxu0 0.0
          %4367 = vmatprep.subr.mxu0 0.0
          %4368 = vmatpush1.xpose.msra.mxu0 0.0
          %4369 = vmatprep.subr.mxu0 0.0
          %4370 = vmatpush1.xpose.msra.mxu0 0.0
          %4371 = vmatprep.subr.mxu0 0.0
          %4372 = vmatpush1.xpose.msra.mxu0 0.0
          %4373 = vmatprep.subr.mxu0 0.0
          %4374 = vmatpush1.xpose.msra.mxu0 0.0
          %4375 = vmatprep.subr.mxu0 0.0
          %4376 = vmatpush1.xpose.msra.mxu0 0.0
          %4377 = vmatprep.subr.mxu0 0.0
          %4378 = vmatpush1.xpose.msra.mxu0 0.0
          %4379 = vmatprep.subr.mxu0 0.0
          %4380 = vmatpush1.xpose.msra.mxu0 0.0
          %4381 = vmatprep.subr.mxu0 0.0
          %4382 = vmatpush1.xpose.msra.mxu0 0.0
          %4383 = vmatprep.subr.mxu0 0.0
          %4384 = vmatpush1.xpose.msra.mxu0 0.0
          %4385 = vmatprep.subr.mxu0 0.0
          %4386 = vmatpush1.xpose.msra.mxu0 0.0
          %4387 = vmatprep.subr.mxu0 0.0
          %4388 = vmatpush1.xpose.msra.mxu0 0.0
          %4389 = vmatprep.subr.mxu0 0.0
          %4390 = vmatpush1.xpose.msra.mxu0 0.0
          %4391 = vmatprep.subr.mxu0 0.0
          %4392 = vmatpush1.xpose.msra.mxu0 0.0
          %4393 = vmatprep.subr.mxu0 0.0
          %4394 = vmatpush1.xpose.msra.mxu0 0.0
          %4395 = vmatprep.subr.mxu0 0.0
          %4396 = vmatpush1.xpose.msra.mxu0 0.0
          %4397 = vmatprep.subr.mxu0 0.0
          %4398 = vmatpush1.xpose.msra.mxu0 0.0
          %4399 = vmatprep.subr.mxu0 0.0
          %4400 = vmatpush1.xpose.msra.mxu0 0.0
          %4401 = vmatprep.mubr.f32.mxu0 0.0
          %4402 = vmatmul.mubr.f32.gmra.mrb[0].mxu0 %v4333
          %v4403 = vpop.f32.mrb[0].mxu0
          %v4404 = vadd.f32 0.0, %v4403
          %v4405 = vpop.f32.mrb[0].mxu0
          %4406 = vdwg.mxu0
          %v4407 = vlaneseq
          %v4408 = vshrl.u32 %v4407, 7
          %v4409 = vsub.s32 0, %v4408
          %v4410 = vrot.slane %v4404, %v4409
          %v4411 = vadd.f32 %v4323, %v4410
          %v4412 = vadd.f32 %v4326, %v4410
          %v4413 = vmul.f32 %v4311, 2.0
          %v4414 = vmul.f32 %v4316, 2.0
          %v4415 = vsub.f32 %v4411, %v4413
          %v4416 = vsub.f32 %v4412, %v4414
          %v4417 = vsub.f32 0.0, %v4415
          %v4418 = vsub.f32 0.0, %v4416
          %vm4419 = vcmask 15360
          %v4420 = vsel %vm4419, %v4417, -inf
          %4421 = vmax.xlane.f32.xlu0 %v4420
          %v4422 = vpop.xlane.xlu0 %4421
          %v4423 = vsel %vm4419, %v4418, -inf
          %4424 = vmax.xlane.f32.xlu0 %v4423
          %v4425 = vpop.xlane.xlu0 %4424
          %v4426 = vsub.f32 %v4417, %v4422
          %v4427 = vsub.f32 %v4418, %v4425
          %v4428 = vmul.f32 %v4426, 1.442695
          %v4429 = vpow.pop %v4428
          %v4430 = vmul.f32 %v4427, 1.442695
          %v4431 = vpow.pop %v4430
          %v4432 = vsel %vm4419, %v4429, 0.0
          %4433 = vadd.xlane.f32.xlu0 %v4432
          %v4434 = vpop.xlane.xlu0 %4433
          %v4435 = vsel %vm4419, %v4431, 0.0
          %4436 = vadd.xlane.f32.xlu0 %v4435
          %v4437 = vpop.xlane.xlu0 %4436
          %v4438 = vlog2.pop %v4434
          %v4439 = vmul.f32 %v4438, 0.6931472
          %v4440 = vlog2.pop %v4437
          %v4441 = vmul.f32 %v4440, 0.6931472
          %v4442 = vsub.f32 %v4426, %v4439
          %v4443 = vsub.f32 %v4427, %v4441
          %v4444 = vlaneseq
          %v4445 = vshrl.u32 %v4444, 7
          %v4446 = vadd.s32 %v4445, 8
          %vm4447 = vcmp.lt.s32.totalorder %v4445, 0
          %v4448 = vsub.s32 0, %v4445
          %v4449 = vsel %vm4447, %v4448, %v4445
          %v4450 = vshrl.u32 %v4449, 1
          %v4451 = vand.u32 %v4449, 1
          %v4452 = vsub.s32 0, %v4451
          %v4453 = vsel %vm4447, %v4452, %v4451
          %vm4454 = vcmp.lt.s32.totalorder %v4446, 0
          %v4455 = vsub.s32 0, %v4446
          %v4456 = vsel %vm4454, %v4455, %v4446
          %v4457 = vshrl.u32 %v4456, 1
          %v4458 = vand.u32 %v4456, 1
          %v4459 = vsub.s32 0, %v4458
          %v4460 = vsel %vm4454, %v4459, %v4458
          %vm4461 = vcmp.ne.s32.totalorder %v4453, 0
          %vm4462 = vcmp.ne.s32.totalorder %v4460, 0
          %vm4463 = vcmp.lt.s32.totalorder %v4453, 0
          %vm4464 = vcmp.lt.s32.totalorder %v4460, 0
          %vm4465 = vmand %vm4463, %vm4461
          %vm4466 = vmand %vm4464, %vm4462
          %v4467 = vadd.s32 %v4453, 2
          %v4468 = vadd.s32 %v4460, 2
          %v4469 = vsel %vm4465, %v4467, %v4453
          %v4470 = vsel %vm4466, %v4468, %v4460
          %vm4471 = vcmp.eq.s32.totalorder %v1668, %v4469
          %vm4472 = vcmp.eq.s32.totalorder %v1668, %v4470
          %v4473 = vsel %vm4471, 1, 0
          %v4474 = vsel %vm4472, 1, 0
          %v4475 = vcvt.s32.f32 %v4473
          %v4476 = vcvt.s32.f32 %v4474
          %v4477 = vmul.f32 %v4442, %v4475
          %v4478 = vmul.f32 %v4443, %v4476
          %v4479 = vsel %vm4419, %v4477, 0.0
          %4480 = vadd.xlane.f32.xlu0 %v4479
          %v4481 = vpop.xlane.xlu0 %4480
          %v4482 = vsel %vm4419, %v4478, 0.0
          %4483 = vadd.xlane.f32.xlu0 %v4482
          %v4484 = vpop.xlane.xlu0 %4483
          %vm4485 = vcmask 7168
          %v4486 = vsel %vm4485, %v4481, 0.0
          %v4487 = vsel %vm4485, %v4484, 0.0
          %v4488 = vadd.f32 %v4486, %v4487
          %4489 = vadd.xlane.f32.xlu0 %v4488
          %v4490 = vpop.xlane.xlu0 %4489
          %v4491 = vrot.slane %v4490, 4
          %v4492 = vadd.f32 %v4490, %v4491
          %v4493 = vrot.slane %v4492, 2
          %v4494 = vadd.f32 %v4492, %v4493
          %v4495 = vrot.slane %v4494, 1
          %v4496 = vadd.f32 %v4494, %v4495
          %s4497 = vtos %v4496
          %v4498 = vrcp.pop 16.0
          %s4499 = vtos %v4498
          %s4500 = smul.f32 %s4497, %s4499
          %s4501 = ssub.f32 0.0, %s4500
          %v4502 = vsel %vm4419, %v4415, inf
          %4503 = vmin.xlane.f32.xlu0 %v4502
          %v4504 = vpop.xlane.xlu0 %4503
          %v4505 = vsel %vm4419, %v4416, inf
          %4506 = vmin.xlane.f32.xlu0 %v4505
          %v4507 = vpop.xlane.xlu0 %4506
          %v4508 = vcvt.s32.f32 %v1668
          %vm4509 = vcmp.le.f32.partialorder %v4415, %v4504
          %vm4510 = vcmp.le.f32.partialorder %v4416, %v4507
          %v4511 = vsel %vm4509, %v4508, 2.0
          %v4512 = vsel %vm4510, %v4508, 2.0
          %v4513 = vsel %vm4419, %v4511, inf
          %4514 = vmin.xlane.f32.xlu0 %v4513
          %v4515 = vpop.xlane.xlu0 %4514
          %v4516 = vsel %vm4419, %v4512, inf
          %4517 = vmin.xlane.f32.xlu0 %v4516
          %v4518 = vpop.xlane.xlu0 %4517
          %v4519 = vcvt.s32.f32 %v4469
          %v4520 = vcvt.s32.f32 %v4470
          %vm4521 = vcmp.eq.f32.partialorder %v4515, %v4519
          %vm4522 = vcmp.eq.f32.partialorder %v4518, %v4520
          %v4523 = vsel %vm4521, 1, 0
          %v4524 = vsel %vm4522, 1, 0
          %v4525 = vcvt.s32.f32 %v4523
          %v4526 = vcvt.s32.f32 %v4524
          %v4527 = vsel %vm4485, %v4525, 0.0
          %v4528 = vsel %vm4485, %v4526, 0.0
          %v4529 = vadd.f32 %v4527, %v4528
          %4530 = vadd.xlane.f32.xlu0 %v4529
          %v4531 = vpop.xlane.xlu0 %4530
          %v4532 = vrot.slane %v4531, 4
          %v4533 = vadd.f32 %v4531, %v4532
          %v4534 = vrot.slane %v4533, 2
          %v4535 = vadd.f32 %v4533, %v4534
          %v4536 = vrot.slane %v4535, 1
          %v4537 = vadd.f32 %v4535, %v4536
          %s4538 = vtos %v4537
          %v4539 = vrcp.pop 16.0
          %s4540 = vtos %v4539
          %s4541 = smul.f32 %s4538, %s4540
          %s4542 = scalar_lea.smem [#allocation4], 0
          %4543 = sst [smem:[%s4542]] %s4501
          %s4544 = sld [smem:[#allocation3]]
          %s4545 = scalar_lea.smem [#allocation4], 1
          %4546 = sst [smem:[%s4545]] %s4544
          %s4547 = scalar_lea.smem [#allocation4], 2
          %4548 = sst [smem:[%s4547]] %s4200
          %s4549 = scalar_lea.smem [#allocation4], 3
          %4550 = sst [smem:[%s4549]] %s4541
        $region124: #{transformer_encoder_forward.1} parent=115 // pred_fallthru
          _
        // Predicated region
        $region125: #{transformer_encoder_forward.1} parent=115 // pred_check
          %p4551 = pneg %p658
        $region126: #{transformer_encoder_forward.1} parent=115 // pred_check_branch
          %4553 = sbr.rel (%p4551) target = $region128
        $region127: #{transformer_encoder_forward.1} parent=115 // pred_region
          %s4555 = ssub.s32 16, 16
          %4556 = vsyncadd [#allocation5], %s4555
          %s4558 = sshll.u32 %s24, 4
          %s4559 = int_to_ptr.vmem [resolvable:$true] %s4558
          %4561 = dma.smem_to_vmem [#allocation4], 16, %s4559, [#allocation5]
        $region128: #{transformer_encoder_forward.1} parent=115 // pred_fallthru
          _
        // Predicated region
        $region129: #{transformer_encoder_forward.1} parent=115 // pred_check
          %p4562 = pneg %p658
        $region130: #{transformer_encoder_forward.1} parent=115 // pred_check_branch
          %4564 = sbr.rel (%p4562) target = $region132
        $region131: #{transformer_encoder_forward.1} parent=115 // pred_region
          %4565 = dma.done [#allocation5], 16
        $region132: #{transformer_encoder_forward.1} parent=115 // pred_fallthru
          _
        %4566 = sfence
      $region116: #{transformer_encoder_forward.1} parent=5 // pred_fallthru
        _
      %p4567 = scmp.le.s32.totalorder 2, %s31
      // Predicated region
      $region133: #{transformer_encoder_forward.1} parent=5 // pred_check
        %p4568 = pneg %p4567
      $region134: #{transformer_encoder_forward.1} parent=5 // pred_check_branch
        %4570 = sbr.rel (%p4568) target = $region136
      $region135: #{transformer_encoder_forward.1} parent=5 // pred_region
        %s4571 = ssub.s32 %s31, 2
      $region136: #{transformer_encoder_forward.1} parent=5 // pred_fallthru
        _
    $region6: #{transformer_encoder_forward.1} parent=1 // loop_footer
      %s35 = sadd.s32 1, %s31
    $region7: #{transformer_encoder_forward.1} parent=1 // loop_footer_branch
      %30 = sbr.rel target = $region3
    $region8: #{transformer_encoder_forward.1} parent=1 // loop_exit
      _
    %4572 = vsyncpa [#allocation5], 1
    %s4573 = scalar_lea.sflag [#allocation5], 1
    %4574 = vsyncpa %s4573, 1

</llo_original>
